<compile_context>
chip_gen: v7x
topology: tpu7x:2x2x1
jax: 0.10.0
libtpu: 0.0.40
codegen_flags: <defaults>
</compile_context>

<pallas_src>
import math
import functools
import numpy as np

import jax
import jax.numpy as jnp
from jax.experimental import pallas as pl
from jax.experimental.pallas import tpu as pltpu

# ------------------------- model hyper-parameters (args) -------------------------
INPUT_SIZE = 4
D_MODEL = 32
N_HEAD = 8
N_LAYERS = 2
OUTPUT_SIZE = 1
DIM_FF = 2048                    # nn.TransformerEncoderLayer default
HEAD_DIM = D_MODEL // N_HEAD
LN_EPS = 1e-5
MAX_LEN = 64
ATTN_SCALE = 1.0 / math.sqrt(HEAD_DIM)

FF_CHUNK = 512                   # FFN inner-dim chunk (bounds the live ReLU slab)
P_PER_LAYER = 12                 # params per encoder layer passed to the kernel
BATCH_BLOCK_TARGET = 8           # sequences per grid step


# --------------------------------- fused kernel ----------------------------------
def _layer_norm(x, g, b):
    mean = jnp.mean(x, axis=-1, keepdims=True)
    c = x - mean
    var = jnp.mean(c * c, axis=-1, keepdims=True)
    return c * jax.lax.rsqrt(var + LN_EPS) * g + b


def _encoder_kernel(*refs, n_layers, bb, seq):
    """One grid step = `bb` full sequences; weights VMEM-resident across the grid.

    refs layout:
      [src (bb*S, In), pos (S, D), head_mask (H*S, D), emb_w (In, D), emb_b (1, D)]
      + n_layers * [wqkv (D, 3D), bqkv (1, 3D), wo (D, D), bo (1, D),
                    ln1_g (1, D), ln1_b (1, D), w1 (D, FF), b1 (1, FF),
                    w2 (FF, D), b2 (1, D), ln2_g (1, D), ln2_b (1, D)]
      + [fc_w (D, Out), fc_b (1, Out)]
      + [out (bb*S, Out)]
    """
    it = iter(refs)
    src_ref, pos_ref, mask_ref, emb_w, emb_b = (next(it) for _ in range(5))
    layers = [[next(it) for _ in range(P_PER_LAYER)] for _ in range(n_layers)]
    fc_w, fc_b = next(it), next(it)
    out_ref = next(it)

    rows = bb * seq
    head_mask = mask_ref[...]                                   # (H*S, D) block-diagonal

    # ---- embedding + positional encoding (dropout p=0.1 -> eval identity) ----
    pos_rep = jnp.concatenate([pos_ref[...]] * bb, axis=0)      # (rows, D)
    x = (jnp.dot(src_ref[...], emb_w[...], preferred_element_type=jnp.float32)
         + emb_b[...] + pos_rep)                                # (rows, D)

    for (wqkv, bqkv, wo, bo, g1, bn1, w1, bf1, w2, bf2, g2, bn2) in layers:
        # ---------------- multi-head self-attention (all heads batched) ----------------
        qkv = jnp.dot(x, wqkv[...], preferred_element_type=jnp.float32) + bqkv[...]
        q3 = qkv[:, 0 * D_MODEL:1 * D_MODEL].reshape(bb, seq, D_MODEL)
        k3 = qkv[:, 1 * D_MODEL:2 * D_MODEL].reshape(bb, seq, D_MODEL)
        v3 = qkv[:, 2 * D_MODEL:3 * D_MODEL].reshape(bb, seq, D_MODEL)

        # Replicate K/V rows per head along the sublane axis and zero cross-head columns:
        # per-head attention becomes ONE batched einsum each (no head loop, no 4-wide slices).
        k_rep = jnp.concatenate([k3] * N_HEAD, axis=1) * head_mask[None]   # (bb, H*S, D)
        v_rep = jnp.concatenate([v3] * N_HEAD, axis=1) * head_mask[None]   # (bb, H*S, D)

        # scores packed on the lane axis: s[b, q, h*S + k]
        s = jnp.einsum('bqc,bmc->bqm', q3, k_rep,
                       preferred_element_type=jnp.float32) * ATTN_SCALE
        # row-global max is constant within every head block -> softmax-invariant & stable
        s = s - jnp.max(s, axis=-1, keepdims=True)
        p = jnp.exp(s)                                                      # (bb, S, H*S)
        o_un = jnp.einsum('bqm,bmc->bqc', p, v_rep,
                          preferred_element_type=jnp.float32)               # (bb, S, D)
        # per-head softmax denominator broadcast onto that head's output columns
        denom = jnp.dot(p.reshape(rows, N_HEAD * seq), head_mask,
                        preferred_element_type=jnp.float32)                 # (rows, D)
        o = o_un.reshape(rows, D_MODEL) / denom                             # exact softmax

        # single output projection over the full (H*Dh)=D axis
        attn = jnp.dot(o, wo[...], preferred_element_type=jnp.float32) + bo[...]
        x = _layer_norm(x + attn, g1[...], bn1[...])            # post-norm residual 1

        # ---------------- feed-forward, chunked over DIM_FF ----------------
        ff = jnp.zeros((rows, D_MODEL), jnp.float32)
        for c0 in range(0, DIM_FF, FF_CHUNK):
            h = jnp.maximum(
                jnp.dot(x, w1[:, c0:c0 + FF_CHUNK], preferred_element_type=jnp.float32)
                + bf1[:, c0:c0 + FF_CHUNK], 0.0)
            ff = ff + jnp.dot(h, w2[c0:c0 + FF_CHUNK, :],
                              preferred_element_type=jnp.float32)
        ff = ff + bf2[...]
        x = _layer_norm(x + ff, g2[...], bn2[...])              # post-norm residual 2

    # final fc: d_model -> output_size
    out_ref[...] = (jnp.dot(x, fc_w[...], preferred_element_type=jnp.float32)
                    + fc_b[...]).astype(out_ref.dtype)


# ------------------------------------ wrapper ------------------------------------
def _pick_batch_block(B, target=BATCH_BLOCK_TARGET):
    bb = min(B, target)
    while B % bb:
        bb -= 1
    return bb


def transformer_encoder_forward(params, src):
    B, S, _ = src.shape
    assert S <= MAX_LEN
    bb = _pick_batch_block(B)
    rows_blk = bb * S
    grid = (B // bb,)

    src2 = src.reshape(B * S, INPUT_SIZE)
    pos = params["pos_table"][:S]                                   # (S, D)
    # constant block-diagonal head mask: mask[h*S + k, h'*Dh + d] = (h == h')
    head_mask = jnp.asarray(
        (np.arange(N_HEAD * S)[:, None] // S
         == np.arange(D_MODEL)[None, :] // HEAD_DIM).astype(np.float32))

    def row(v):
        return v.reshape(1, -1)

    inputs = [src2, pos, head_mask, params["embed_w"], row(params["embed_b"])]
    for lp in params["layers"]:
        inputs += [
            lp["wqkv"], row(lp["bqkv"]), lp["wo"], row(lp["bo"]),
            row(lp["ln1_g"]), row(lp["ln1_b"]),
            lp["w1"], row(lp["b1"]), lp["w2"], row(lp["b2"]),
            row(lp["ln2_g"]), row(lp["ln2_b"]),
        ]
    inputs += [params["fc_w"], row(params["fc_b"])]

    def resident(a):                    # full-shape block, same index every grid step
        z = (0,) * a.ndim
        return pl.BlockSpec(a.shape, lambda i, _z=z: _z)

    in_specs = ([pl.BlockSpec((rows_blk, INPUT_SIZE), lambda i: (i, 0))]
                + [resident(a) for a in inputs[1:]])
    out_spec = pl.BlockSpec((rows_blk, OUTPUT_SIZE), lambda i: (i, 0))

    out2 = pl.pallas_call(
        functools.partial(_encoder_kernel, n_layers=len(params["layers"]),
                          bb=bb, seq=S),
        grid=grid,
        in_specs=in_specs,
        out_specs=out_spec,
        out_shape=jax.ShapeDtypeStruct((B * S, OUTPUT_SIZE), jnp.float32),
        compiler_params=pltpu.CompilerParams(
            dimension_semantics=("parallel",),
            vmem_limit_bytes=32 * 1024 * 1024),
    )(*inputs)
    return out2.reshape(B, S, OUTPUT_SIZE)


# ------------------------------- parameter set-up --------------------------------
def make_pos_table(d_model, max_len):
    # exact reproduction of PositionalEncoding.__init__
    pos_table = np.array(
        [[pos / np.power(10000, 2 * i / d_model) for i in range(d_model)]
         if pos != 0 else np.zeros(d_model) for pos in range(max_len)])
    pos_table[1:, 0::2] = np.sin(pos_table[1:, 0::2])
    pos_table[1:, 1::2] = np.cos(pos_table[1:, 1::2])
    return jnp.asarray(pos_table, dtype=jnp.float32)


def init_params(key):
    keys = iter(jax.random.split(key, 128))

    def w(shape, scale=0.05):
        return scale * jax.random.normal(next(keys), shape, dtype=jnp.float32)

    def zeros(shape):
        return jnp.zeros(shape, jnp.float32)

    def ones(shape):
        return jnp.ones(shape, jnp.float32)

    def layer_params():
        return dict(
            # fused QKV weight, column blocks [0:D]=Q, [D:2D]=K, [2D:3D]=V,
            # head-major within each block (c = h*HEAD_DIM + d), matching PyTorch MHA.
            wqkv=w((D_MODEL, 3 * D_MODEL)), bqkv=zeros((3 * D_MODEL,)),
            wo=w((D_MODEL, D_MODEL)), bo=zeros((D_MODEL,)),
            ln1_g=ones((D_MODEL,)), ln1_b=zeros((D_MODEL,)),
            w1=w((D_MODEL, DIM_FF)), b1=zeros((DIM_FF,)),
            w2=w((DIM_FF, D_MODEL)), b2=zeros((D_MODEL,)),
            ln2_g=ones((D_MODEL,)), ln2_b=zeros((D_MODEL,)),
        )

    return dict(
        embed_w=w((INPUT_SIZE, D_MODEL)), embed_b=zeros((D_MODEL,)),
        pos_table=make_pos_table(D_MODEL, MAX_LEN),
        layers=[layer_params() for _ in range(N_LAYERS)],
        fc_w=w((D_MODEL, OUTPUT_SIZE)), fc_b=zeros((OUTPUT_SIZE,)),
    )


# -------------------------------------- main --------------------------------------
if __name__ == "__main__":
    key = jax.random.PRNGKey(0)
    kp, kx = jax.random.split(key)

    params = init_params(kp)

    B, S = 2, 8
    src = jax.random.normal(kx, (B, S, INPUT_SIZE), dtype=jnp.float32)

    fwd = jax.jit(transformer_encoder_forward)
    out = fwd(params, src)
    out = jax.block_until_ready(out)

    assert out.shape == (B, S, OUTPUT_SIZE), out.shape
    assert bool(jnp.all(jnp.isfinite(out)))
    print("KERNEL_OK")
</pallas_src>

<mosaic_0001>
module attributes {stable_mosaic.version = 11 : i64} {
  func.func @_encoder_kernel(%arg0: i32, %arg1: memref<16x4xf32, #tpu.memory_space<vmem>>, %arg2: memref<8x32xf32, #tpu.memory_space<vmem>>, %arg3: memref<64x32xf32, #tpu.memory_space<vmem>>, %arg4: memref<4x32xf32, #tpu.memory_space<vmem>>, %arg5: memref<1x32xf32, #tpu.memory_space<vmem>>, %arg6: memref<32x96xf32, #tpu.memory_space<vmem>>, %arg7: memref<1x96xf32, #tpu.memory_space<vmem>>, %arg8: memref<32x32xf32, #tpu.memory_space<vmem>>, %arg9: memref<1x32xf32, #tpu.memory_space<vmem>>, %arg10: memref<1x32xf32, #tpu.memory_space<vmem>>, %arg11: memref<1x32xf32, #tpu.memory_space<vmem>>, %arg12: memref<32x2048xf32, #tpu.memory_space<vmem>>, %arg13: memref<1x2048xf32, #tpu.memory_space<vmem>>, %arg14: memref<2048x32xf32, #tpu.memory_space<vmem>>, %arg15: memref<1x32xf32, #tpu.memory_space<vmem>>, %arg16: memref<1x32xf32, #tpu.memory_space<vmem>>, %arg17: memref<1x32xf32, #tpu.memory_space<vmem>>, %arg18: memref<32x96xf32, #tpu.memory_space<vmem>>, %arg19: memref<1x96xf32, #tpu.memory_space<vmem>>, %arg20: memref<32x32xf32, #tpu.memory_space<vmem>>, %arg21: memref<1x32xf32, #tpu.memory_space<vmem>>, %arg22: memref<1x32xf32, #tpu.memory_space<vmem>>, %arg23: memref<1x32xf32, #tpu.memory_space<vmem>>, %arg24: memref<32x2048xf32, #tpu.memory_space<vmem>>, %arg25: memref<1x2048xf32, #tpu.memory_space<vmem>>, %arg26: memref<2048x32xf32, #tpu.memory_space<vmem>>, %arg27: memref<1x32xf32, #tpu.memory_space<vmem>>, %arg28: memref<1x32xf32, #tpu.memory_space<vmem>>, %arg29: memref<1x32xf32, #tpu.memory_space<vmem>>, %arg30: memref<32x1xf32, #tpu.memory_space<vmem>>, %arg31: memref<1x1xf32, #tpu.memory_space<vmem>>, %arg32: memref<16x1xf32, #tpu.memory_space<vmem>>) attributes {dimension_semantics = [#tpu.dimension_semantics<parallel>], iteration_bounds = array<i64: 1>, scalar_prefetch = 0 : i64, scratch_operands = 0 : i64, tpu.core_type = #tpu.core_type<tc>, window_params = [{transform_indices = @transform_0, window_bounds = array<i64: 16, 4>}, {pipeline_mode = #tpu.pipeline_mode<synchronous>, transform_indices = @transform_1, window_bounds = array<i64: 8, 32>}, {pipeline_mode = #tpu.pipeline_mode<synchronous>, transform_indices = @transform_2, window_bounds = array<i64: 64, 32>}, {pipeline_mode = #tpu.pipeline_mode<synchronous>, transform_indices = @transform_3, window_bounds = array<i64: 4, 32>}, {pipeline_mode = #tpu.pipeline_mode<synchronous>, transform_indices = @transform_4, window_bounds = array<i64: 1, 32>}, {pipeline_mode = #tpu.pipeline_mode<synchronous>, transform_indices = @transform_5, window_bounds = array<i64: 32, 96>}, {pipeline_mode = #tpu.pipeline_mode<synchronous>, transform_indices = @transform_6, window_bounds = array<i64: 1, 96>}, {pipeline_mode = #tpu.pipeline_mode<synchronous>, transform_indices = @transform_7, window_bounds = array<i64: 32, 32>}, {pipeline_mode = #tpu.pipeline_mode<synchronous>, transform_indices = @transform_8, window_bounds = array<i64: 1, 32>}, {pipeline_mode = #tpu.pipeline_mode<synchronous>, transform_indices = @transform_9, window_bounds = array<i64: 1, 32>}, {pipeline_mode = #tpu.pipeline_mode<synchronous>, transform_indices = @transform_10, window_bounds = array<i64: 1, 32>}, {pipeline_mode = #tpu.pipeline_mode<synchronous>, transform_indices = @transform_11, window_bounds = array<i64: 32, 2048>}, {pipeline_mode = #tpu.pipeline_mode<synchronous>, transform_indices = @transform_12, window_bounds = array<i64: 1, 2048>}, {pipeline_mode = #tpu.pipeline_mode<synchronous>, transform_indices = @transform_13, window_bounds = array<i64: 2048, 32>}, {pipeline_mode = #tpu.pipeline_mode<synchronous>, transform_indices = @transform_14, window_bounds = array<i64: 1, 32>}, {pipeline_mode = #tpu.pipeline_mode<synchronous>, transform_indices = @transform_15, window_bounds = array<i64: 1, 32>}, {pipeline_mode = #tpu.pipeline_mode<synchronous>, transform_indices = @transform_16, window_bounds = array<i64: 1, 32>}, {pipeline_mode = #tpu.pipeline_mode<synchronous>, transform_indices = @transform_17, window_bounds = array<i64: 32, 96>}, {pipeline_mode = #tpu.pipeline_mode<synchronous>, transform_indices = @transform_18, window_bounds = array<i64: 1, 96>}, {pipeline_mode = #tpu.pipeline_mode<synchronous>, transform_indices = @transform_19, window_bounds = array<i64: 32, 32>}, {pipeline_mode = #tpu.pipeline_mode<synchronous>, transform_indices = @transform_20, window_bounds = array<i64: 1, 32>}, {pipeline_mode = #tpu.pipeline_mode<synchronous>, transform_indices = @transform_21, window_bounds = array<i64: 1, 32>}, {pipeline_mode = #tpu.pipeline_mode<synchronous>, transform_indices = @transform_22, window_bounds = array<i64: 1, 32>}, {pipeline_mode = #tpu.pipeline_mode<synchronous>, transform_indices = @transform_23, window_bounds = array<i64: 32, 2048>}, {pipeline_mode = #tpu.pipeline_mode<synchronous>, transform_indices = @transform_24, window_bounds = array<i64: 1, 2048>}, {pipeline_mode = #tpu.pipeline_mode<synchronous>, transform_indices = @transform_25, window_bounds = array<i64: 2048, 32>}, {pipeline_mode = #tpu.pipeline_mode<synchronous>, transform_indices = @transform_26, window_bounds = array<i64: 1, 32>}, {pipeline_mode = #tpu.pipeline_mode<synchronous>, transform_indices = @transform_27, window_bounds = array<i64: 1, 32>}, {pipeline_mode = #tpu.pipeline_mode<synchronous>, transform_indices = @transform_28, window_bounds = array<i64: 1, 32>}, {pipeline_mode = #tpu.pipeline_mode<synchronous>, transform_indices = @transform_29, window_bounds = array<i64: 32, 1>}, {pipeline_mode = #tpu.pipeline_mode<synchronous>, transform_indices = @transform_30, window_bounds = array<i64: 1, 1>}, {transform_indices = @transform_31, window_bounds = array<i64: 16, 1>}]} {
    %c0 = arith.constant 0 : index
    %c0_0 = arith.constant 0 : index
    %0 = vector.load %arg3[%c0, %c0_0] : memref<64x32xf32, #tpu.memory_space<vmem>>, vector<64x32xf32>
    %c0_1 = arith.constant 0 : index
    %c0_2 = arith.constant 0 : index
    %1 = vector.load %arg2[%c0_1, %c0_2] : memref<8x32xf32, #tpu.memory_space<vmem>>, vector<8x32xf32>
    %2 = tpu.concatenate %1, %1 in 0 : vector<8x32xf32>, vector<8x32xf32> -> vector<16x32xf32>
    %c0_3 = arith.constant 0 : index
    %c0_4 = arith.constant 0 : index
    %3 = vector.load %arg1[%c0_3, %c0_4] : memref<16x4xf32, #tpu.memory_space<vmem>>, vector<16x4xf32>
    %c0_5 = arith.constant 0 : index
    %c0_6 = arith.constant 0 : index
    %4 = vector.load %arg4[%c0_5, %c0_6] : memref<4x32xf32, #tpu.memory_space<vmem>>, vector<4x32xf32>
    %cst = arith.constant dense<0.000000e+00> : vector<16x32xf32>
    %5 = tpu.matmul %3, %4, %cst {dimension_numbers = #tpu.dot_dimension_numbers<[1], [0], [0], [1], [0, 0, 1, 1], [], []>} : vector<16x4xf32>, vector<4x32xf32>, vector<16x32xf32> -> vector<16x32xf32>
    %c0_7 = arith.constant 0 : index
    %c0_8 = arith.constant 0 : index
    %6 = vector.load %arg5[%c0_7, %c0_8] : memref<1x32xf32, #tpu.memory_space<vmem>>, vector<1x32xf32>
    %7 = vector.broadcast %6 : vector<1x32xf32> to vector<16x32xf32>
    %8 = arith.addf %5, %7 : vector<16x32xf32>
    %9 = arith.addf %8, %2 : vector<16x32xf32>
    %c0_9 = arith.constant 0 : index
    %c0_10 = arith.constant 0 : index
    %10 = vector.load %arg6[%c0_9, %c0_10] : memref<32x96xf32, #tpu.memory_space<vmem>>, vector<32x96xf32>
    %cst_11 = arith.constant dense<0.000000e+00> : vector<16x96xf32>
    %11 = tpu.matmul %9, %10, %cst_11 {dimension_numbers = #tpu.dot_dimension_numbers<[1], [0], [0], [1], [0, 0, 1, 1], [], []>} : vector<16x32xf32>, vector<32x96xf32>, vector<16x96xf32> -> vector<16x96xf32>
    %c0_12 = arith.constant 0 : index
    %c0_13 = arith.constant 0 : index
    %12 = vector.load %arg7[%c0_12, %c0_13] : memref<1x96xf32, #tpu.memory_space<vmem>>, vector<1x96xf32>
    %13 = vector.broadcast %12 : vector<1x96xf32> to vector<16x96xf32>
    %14 = arith.addf %11, %13 : vector<16x96xf32>
    %15 = vector.extract_strided_slice %14 {offsets = [0, 0], sizes = [16, 32], strides = [1, 1]} : vector<16x96xf32> to vector<16x32xf32>
    %16 = vector.shape_cast %15 : vector<16x32xf32> to vector<2x8x32xf32>
    %17 = vector.extract_strided_slice %14 {offsets = [0, 32], sizes = [16, 32], strides = [1, 1]} : vector<16x96xf32> to vector<16x32xf32>
    %18 = vector.shape_cast %17 : vector<16x32xf32> to vector<2x8x32xf32>
    %19 = vector.extract_strided_slice %14 {offsets = [0, 64], sizes = [16, 32], strides = [1, 1]} : vector<16x96xf32> to vector<16x32xf32>
    %20 = vector.shape_cast %19 : vector<16x32xf32> to vector<2x8x32xf32>
    %21 = tpu.concatenate %18, %18, %18, %18, %18, %18, %18, %18 in 1 : vector<2x8x32xf32>, vector<2x8x32xf32>, vector<2x8x32xf32>, vector<2x8x32xf32>, vector<2x8x32xf32>, vector<2x8x32xf32>, vector<2x8x32xf32>, vector<2x8x32xf32> -> vector<2x64x32xf32>
    %22 = vector.shape_cast %0 : vector<64x32xf32> to vector<1x64x32xf32>
    %23 = vector.broadcast %22 : vector<1x64x32xf32> to vector<2x64x32xf32>
    %24 = arith.mulf %21, %23 : vector<2x64x32xf32>
    %25 = tpu.concatenate %20, %20, %20, %20, %20, %20, %20, %20 in 1 : vector<2x8x32xf32>, vector<2x8x32xf32>, vector<2x8x32xf32>, vector<2x8x32xf32>, vector<2x8x32xf32>, vector<2x8x32xf32>, vector<2x8x32xf32>, vector<2x8x32xf32> -> vector<2x64x32xf32>
    %26 = vector.shape_cast %0 : vector<64x32xf32> to vector<1x64x32xf32>
    %27 = vector.broadcast %26 : vector<1x64x32xf32> to vector<2x64x32xf32>
    %28 = arith.mulf %25, %27 : vector<2x64x32xf32>
    "tpu.trace_start"() <{level = 10 : i32, message = "bqc,bmc->bqm"}> : () -> ()
    %cst_14 = arith.constant dense<0.000000e+00> : vector<2x8x64xf32>
    %29 = tpu.matmul %16, %24, %cst_14 {dimension_numbers = #tpu.dot_dimension_numbers<[2], [2], [1], [1], [0, 0, 0, 1, 1, 1], [0], [0]>} : vector<2x8x32xf32>, vector<2x64x32xf32>, vector<2x8x64xf32> -> vector<2x8x64xf32>
    "tpu.trace_stop"() : () -> ()
    %cst_15 = arith.constant 5.000000e-01 : f32
    %30 = vector.broadcast %cst_15 : f32 to vector<2x8x64xf32>
    %31 = arith.mulf %29, %30 : vector<2x8x64xf32>
    %cst_16 = arith.constant dense<0xFF800000> : vector<2x8xf32>
    %32 = vector.multi_reduction <maximumf>, %31, %cst_16 [2] : vector<2x8x64xf32> to vector<2x8xf32>
    %33 = vector.shape_cast %32 : vector<2x8xf32> to vector<2x8x1xf32>
    %34 = vector.broadcast %33 : vector<2x8x1xf32> to vector<2x8x64xf32>
    %35 = arith.subf %31, %34 : vector<2x8x64xf32>
    %36 = math.exp %35 : vector<2x8x64xf32>
    "tpu.trace_start"() <{level = 10 : i32, message = "bqm,bmc->bqc"}> : () -> ()
    %cst_17 = arith.constant dense<0.000000e+00> : vector<2x8x32xf32>
    %37 = tpu.matmul %36, %28, %cst_17 {dimension_numbers = #tpu.dot_dimension_numbers<[2], [1], [1], [2], [0, 0, 0, 1, 1, 2], [0], [0]>} : vector<2x8x64xf32>, vector<2x64x32xf32>, vector<2x8x32xf32> -> vector<2x8x32xf32>
    "tpu.trace_stop"() : () -> ()
    %38 = vector.shape_cast %36 : vector<2x8x64xf32> to vector<16x64xf32>
    %cst_18 = arith.constant dense<0.000000e+00> : vector<16x32xf32>
    %39 = tpu.matmul %38, %0, %cst_18 {dimension_numbers = #tpu.dot_dimension_numbers<[1], [0], [0], [1], [0, 0, 1, 1], [], []>} : vector<16x64xf32>, vector<64x32xf32>, vector<16x32xf32> -> vector<16x32xf32>
    %40 = vector.shape_cast %37 : vector<2x8x32xf32> to vector<16x32xf32>
    %41 = arith.divf %40, %39 : vector<16x32xf32>
    %c0_19 = arith.constant 0 : index
    %c0_20 = arith.constant 0 : index
    %42 = vector.load %arg8[%c0_19, %c0_20] : memref<32x32xf32, #tpu.memory_space<vmem>>, vector<32x32xf32>
    %cst_21 = arith.constant dense<0.000000e+00> : vector<16x32xf32>
    %43 = tpu.matmul %41, %42, %cst_21 {dimension_numbers = #tpu.dot_dimension_numbers<[1], [0], [0], [1], [0, 0, 1, 1], [], []>} : vector<16x32xf32>, vector<32x32xf32>, vector<16x32xf32> -> vector<16x32xf32>
    %c0_22 = arith.constant 0 : index
    %c0_23 = arith.constant 0 : index
    %44 = vector.load %arg9[%c0_22, %c0_23] : memref<1x32xf32, #tpu.memory_space<vmem>>, vector<1x32xf32>
    %45 = vector.broadcast %44 : vector<1x32xf32> to vector<16x32xf32>
    %46 = arith.addf %43, %45 : vector<16x32xf32>
    %47 = arith.addf %9, %46 : vector<16x32xf32>
    %c0_24 = arith.constant 0 : index
    %c0_25 = arith.constant 0 : index
    %48 = vector.load %arg10[%c0_24, %c0_25] : memref<1x32xf32, #tpu.memory_space<vmem>>, vector<1x32xf32>
    %c0_26 = arith.constant 0 : index
    %c0_27 = arith.constant 0 : index
    %49 = vector.load %arg11[%c0_26, %c0_27] : memref<1x32xf32, #tpu.memory_space<vmem>>, vector<1x32xf32>
    %cst_28 = arith.constant dense<0.000000e+00> : vector<16xf32>
    %50 = vector.multi_reduction <add>, %47, %cst_28 [1] : vector<16x32xf32> to vector<16xf32>
    %51 = vector.shape_cast %50 : vector<16xf32> to vector<16x1xf32>
    %cst_29 = arith.constant 3.200000e+01 : f32
    %52 = vector.broadcast %cst_29 : f32 to vector<16x1xf32>
    %53 = arith.divf %51, %52 : vector<16x1xf32>
    %54 = vector.broadcast %53 : vector<16x1xf32> to vector<16x32xf32>
    %55 = arith.subf %47, %54 : vector<16x32xf32>
    %56 = arith.mulf %55, %55 : vector<16x32xf32>
    %cst_30 = arith.constant dense<0.000000e+00> : vector<16xf32>
    %57 = vector.multi_reduction <add>, %56, %cst_30 [1] : vector<16x32xf32> to vector<16xf32>
    %58 = vector.shape_cast %57 : vector<16xf32> to vector<16x1xf32>
    %cst_31 = arith.constant 3.200000e+01 : f32
    %59 = vector.broadcast %cst_31 : f32 to vector<16x1xf32>
    %60 = arith.divf %58, %59 : vector<16x1xf32>
    %cst_32 = arith.constant 9.99999974E-6 : f32
    %61 = vector.broadcast %cst_32 : f32 to vector<16x1xf32>
    %62 = arith.addf %60, %61 : vector<16x1xf32>
    %63 = math.rsqrt %62 : vector<16x1xf32>
    %64 = vector.broadcast %63 : vector<16x1xf32> to vector<16x32xf32>
    %65 = arith.mulf %55, %64 : vector<16x32xf32>
    %66 = vector.broadcast %48 : vector<1x32xf32> to vector<16x32xf32>
    %67 = arith.mulf %65, %66 : vector<16x32xf32>
    %68 = vector.broadcast %49 : vector<1x32xf32> to vector<16x32xf32>
    %69 = arith.addf %67, %68 : vector<16x32xf32>
    %cst_33 = arith.constant 0.000000e+00 : f32
    %70 = vector.broadcast %cst_33 : f32 to vector<16x32xf32>
    %c0_34 = arith.constant 0 : index
    %c0_35 = arith.constant 0 : index
    %71 = vector.load %arg12[%c0_34, %c0_35] : memref<32x2048xf32, #tpu.memory_space<vmem>>, vector<32x512xf32>
    %cst_36 = arith.constant dense<0.000000e+00> : vector<16x512xf32>
    %72 = tpu.matmul %69, %71, %cst_36 {dimension_numbers = #tpu.dot_dimension_numbers<[1], [0], [0], [1], [0, 0, 1, 1], [], []>} : vector<16x32xf32>, vector<32x512xf32>, vector<16x512xf32> -> vector<16x512xf32>
    %c0_37 = arith.constant 0 : index
    %c0_38 = arith.constant 0 : index
    %73 = vector.load %arg13[%c0_37, %c0_38] : memref<1x2048xf32, #tpu.memory_space<vmem>>, vector<1x512xf32>
    %74 = vector.broadcast %73 : vector<1x512xf32> to vector<16x512xf32>
    %75 = arith.addf %72, %74 : vector<16x512xf32>
    %cst_39 = arith.constant 0.000000e+00 : f32
    %76 = vector.broadcast %cst_39 : f32 to vector<16x512xf32>
    %77 = arith.maximumf %75, %76 : vector<16x512xf32>
    %c0_40 = arith.constant 0 : index
    %c0_41 = arith.constant 0 : index
    %78 = vector.load %arg14[%c0_40, %c0_41] : memref<2048x32xf32, #tpu.memory_space<vmem>>, vector<512x32xf32>
    %cst_42 = arith.constant dense<0.000000e+00> : vector<16x32xf32>
    %79 = tpu.matmul %77, %78, %cst_42 {dimension_numbers = #tpu.dot_dimension_numbers<[1], [0], [0], [1], [0, 0, 1, 1], [], []>} : vector<16x512xf32>, vector<512x32xf32>, vector<16x32xf32> -> vector<16x32xf32>
    %80 = arith.addf %70, %79 : vector<16x32xf32>
    %c0_43 = arith.constant 0 : index
    %c512 = arith.constant 512 : index
    %81 = vector.load %arg12[%c0_43, %c512] : memref<32x2048xf32, #tpu.memory_space<vmem>>, vector<32x512xf32>
    %cst_44 = arith.constant dense<0.000000e+00> : vector<16x512xf32>
    %82 = tpu.matmul %69, %81, %cst_44 {dimension_numbers = #tpu.dot_dimension_numbers<[1], [0], [0], [1], [0, 0, 1, 1], [], []>} : vector<16x32xf32>, vector<32x512xf32>, vector<16x512xf32> -> vector<16x512xf32>
    %c0_45 = arith.constant 0 : index
    %c512_46 = arith.constant 512 : index
    %83 = vector.load %arg13[%c0_45, %c512_46] : memref<1x2048xf32, #tpu.memory_space<vmem>>, vector<1x512xf32>
    %84 = vector.broadcast %83 : vector<1x512xf32> to vector<16x512xf32>
    %85 = arith.addf %82, %84 : vector<16x512xf32>
    %cst_47 = arith.constant 0.000000e+00 : f32
    %86 = vector.broadcast %cst_47 : f32 to vector<16x512xf32>
    %87 = arith.maximumf %85, %86 : vector<16x512xf32>
    %c512_48 = arith.constant 512 : index
    %c0_49 = arith.constant 0 : index
    %88 = vector.load %arg14[%c512_48, %c0_49] : memref<2048x32xf32, #tpu.memory_space<vmem>>, vector<512x32xf32>
    %cst_50 = arith.constant dense<0.000000e+00> : vector<16x32xf32>
    %89 = tpu.matmul %87, %88, %cst_50 {dimension_numbers = #tpu.dot_dimension_numbers<[1], [0], [0], [1], [0, 0, 1, 1], [], []>} : vector<16x512xf32>, vector<512x32xf32>, vector<16x32xf32> -> vector<16x32xf32>
    %90 = arith.addf %80, %89 : vector<16x32xf32>
    %c0_51 = arith.constant 0 : index
    %c1024 = arith.constant 1024 : index
    %91 = vector.load %arg12[%c0_51, %c1024] : memref<32x2048xf32, #tpu.memory_space<vmem>>, vector<32x512xf32>
    %cst_52 = arith.constant dense<0.000000e+00> : vector<16x512xf32>
    %92 = tpu.matmul %69, %91, %cst_52 {dimension_numbers = #tpu.dot_dimension_numbers<[1], [0], [0], [1], [0, 0, 1, 1], [], []>} : vector<16x32xf32>, vector<32x512xf32>, vector<16x512xf32> -> vector<16x512xf32>
    %c0_53 = arith.constant 0 : index
    %c1024_54 = arith.constant 1024 : index
    %93 = vector.load %arg13[%c0_53, %c1024_54] : memref<1x2048xf32, #tpu.memory_space<vmem>>, vector<1x512xf32>
    %94 = vector.broadcast %93 : vector<1x512xf32> to vector<16x512xf32>
    %95 = arith.addf %92, %94 : vector<16x512xf32>
    %cst_55 = arith.constant 0.000000e+00 : f32
    %96 = vector.broadcast %cst_55 : f32 to vector<16x512xf32>
    %97 = arith.maximumf %95, %96 : vector<16x512xf32>
    %c1024_56 = arith.constant 1024 : index
    %c0_57 = arith.constant 0 : index
    %98 = vector.load %arg14[%c1024_56, %c0_57] : memref<2048x32xf32, #tpu.memory_space<vmem>>, vector<512x32xf32>
    %cst_58 = arith.constant dense<0.000000e+00> : vector<16x32xf32>
    %99 = tpu.matmul %97, %98, %cst_58 {dimension_numbers = #tpu.dot_dimension_numbers<[1], [0], [0], [1], [0, 0, 1, 1], [], []>} : vector<16x512xf32>, vector<512x32xf32>, vector<16x32xf32> -> vector<16x32xf32>
    %100 = arith.addf %90, %99 : vector<16x32xf32>
    %c0_59 = arith.constant 0 : index
    %c1536 = arith.constant 1536 : index
    %101 = vector.load %arg12[%c0_59, %c1536] : memref<32x2048xf32, #tpu.memory_space<vmem>>, vector<32x512xf32>
    %cst_60 = arith.constant dense<0.000000e+00> : vector<16x512xf32>
    %102 = tpu.matmul %69, %101, %cst_60 {dimension_numbers = #tpu.dot_dimension_numbers<[1], [0], [0], [1], [0, 0, 1, 1], [], []>} : vector<16x32xf32>, vector<32x512xf32>, vector<16x512xf32> -> vector<16x512xf32>
    %c0_61 = arith.constant 0 : index
    %c1536_62 = arith.constant 1536 : index
    %103 = vector.load %arg13[%c0_61, %c1536_62] : memref<1x2048xf32, #tpu.memory_space<vmem>>, vector<1x512xf32>
    %104 = vector.broadcast %103 : vector<1x512xf32> to vector<16x512xf32>
    %105 = arith.addf %102, %104 : vector<16x512xf32>
    %cst_63 = arith.constant 0.000000e+00 : f32
    %106 = vector.broadcast %cst_63 : f32 to vector<16x512xf32>
    %107 = arith.maximumf %105, %106 : vector<16x512xf32>
    %c1536_64 = arith.constant 1536 : index
    %c0_65 = arith.constant 0 : index
    %108 = vector.load %arg14[%c1536_64, %c0_65] : memref<2048x32xf32, #tpu.memory_space<vmem>>, vector<512x32xf32>
    %cst_66 = arith.constant dense<0.000000e+00> : vector<16x32xf32>
    %109 = tpu.matmul %107, %108, %cst_66 {dimension_numbers = #tpu.dot_dimension_numbers<[1], [0], [0], [1], [0, 0, 1, 1], [], []>} : vector<16x512xf32>, vector<512x32xf32>, vector<16x32xf32> -> vector<16x32xf32>
    %110 = arith.addf %100, %109 : vector<16x32xf32>
    %c0_67 = arith.constant 0 : index
    %c0_68 = arith.constant 0 : index
    %111 = vector.load %arg15[%c0_67, %c0_68] : memref<1x32xf32, #tpu.memory_space<vmem>>, vector<1x32xf32>
    %112 = vector.broadcast %111 : vector<1x32xf32> to vector<16x32xf32>
    %113 = arith.addf %110, %112 : vector<16x32xf32>
    %114 = arith.addf %69, %113 : vector<16x32xf32>
    %c0_69 = arith.constant 0 : index
    %c0_70 = arith.constant 0 : index
    %115 = vector.load %arg16[%c0_69, %c0_70] : memref<1x32xf32, #tpu.memory_space<vmem>>, vector<1x32xf32>
    %c0_71 = arith.constant 0 : index
    %c0_72 = arith.constant 0 : index
    %116 = vector.load %arg17[%c0_71, %c0_72] : memref<1x32xf32, #tpu.memory_space<vmem>>, vector<1x32xf32>
    %cst_73 = arith.constant dense<0.000000e+00> : vector<16xf32>
    %117 = vector.multi_reduction <add>, %114, %cst_73 [1] : vector<16x32xf32> to vector<16xf32>
    %118 = vector.shape_cast %117 : vector<16xf32> to vector<16x1xf32>
    %cst_74 = arith.constant 3.200000e+01 : f32
    %119 = vector.broadcast %cst_74 : f32 to vector<16x1xf32>
    %120 = arith.divf %118, %119 : vector<16x1xf32>
    %121 = vector.broadcast %120 : vector<16x1xf32> to vector<16x32xf32>
    %122 = arith.subf %114, %121 : vector<16x32xf32>
    %123 = arith.mulf %122, %122 : vector<16x32xf32>
    %cst_75 = arith.constant dense<0.000000e+00> : vector<16xf32>
    %124 = vector.multi_reduction <add>, %123, %cst_75 [1] : vector<16x32xf32> to vector<16xf32>
    %125 = vector.shape_cast %124 : vector<16xf32> to vector<16x1xf32>
    %cst_76 = arith.constant 3.200000e+01 : f32
    %126 = vector.broadcast %cst_76 : f32 to vector<16x1xf32>
    %127 = arith.divf %125, %126 : vector<16x1xf32>
    %cst_77 = arith.constant 9.99999974E-6 : f32
    %128 = vector.broadcast %cst_77 : f32 to vector<16x1xf32>
    %129 = arith.addf %127, %128 : vector<16x1xf32>
    %130 = math.rsqrt %129 : vector<16x1xf32>
    %131 = vector.broadcast %130 : vector<16x1xf32> to vector<16x32xf32>
    %132 = arith.mulf %122, %131 : vector<16x32xf32>
    %133 = vector.broadcast %115 : vector<1x32xf32> to vector<16x32xf32>
    %134 = arith.mulf %132, %133 : vector<16x32xf32>
    %135 = vector.broadcast %116 : vector<1x32xf32> to vector<16x32xf32>
    %136 = arith.addf %134, %135 : vector<16x32xf32>
    %c0_78 = arith.constant 0 : index
    %c0_79 = arith.constant 0 : index
    %137 = vector.load %arg18[%c0_78, %c0_79] : memref<32x96xf32, #tpu.memory_space<vmem>>, vector<32x96xf32>
    %cst_80 = arith.constant dense<0.000000e+00> : vector<16x96xf32>
    %138 = tpu.matmul %136, %137, %cst_80 {dimension_numbers = #tpu.dot_dimension_numbers<[1], [0], [0], [1], [0, 0, 1, 1], [], []>} : vector<16x32xf32>, vector<32x96xf32>, vector<16x96xf32> -> vector<16x96xf32>
    %c0_81 = arith.constant 0 : index
    %c0_82 = arith.constant 0 : index
    %139 = vector.load %arg19[%c0_81, %c0_82] : memref<1x96xf32, #tpu.memory_space<vmem>>, vector<1x96xf32>
    %140 = vector.broadcast %139 : vector<1x96xf32> to vector<16x96xf32>
    %141 = arith.addf %138, %140 : vector<16x96xf32>
    %142 = vector.extract_strided_slice %141 {offsets = [0, 0], sizes = [16, 32], strides = [1, 1]} : vector<16x96xf32> to vector<16x32xf32>
    %143 = vector.shape_cast %142 : vector<16x32xf32> to vector<2x8x32xf32>
    %144 = vector.extract_strided_slice %141 {offsets = [0, 32], sizes = [16, 32], strides = [1, 1]} : vector<16x96xf32> to vector<16x32xf32>
    %145 = vector.shape_cast %144 : vector<16x32xf32> to vector<2x8x32xf32>
    %146 = vector.extract_strided_slice %141 {offsets = [0, 64], sizes = [16, 32], strides = [1, 1]} : vector<16x96xf32> to vector<16x32xf32>
    %147 = vector.shape_cast %146 : vector<16x32xf32> to vector<2x8x32xf32>
    %148 = tpu.concatenate %145, %145, %145, %145, %145, %145, %145, %145 in 1 : vector<2x8x32xf32>, vector<2x8x32xf32>, vector<2x8x32xf32>, vector<2x8x32xf32>, vector<2x8x32xf32>, vector<2x8x32xf32>, vector<2x8x32xf32>, vector<2x8x32xf32> -> vector<2x64x32xf32>
    %149 = vector.shape_cast %0 : vector<64x32xf32> to vector<1x64x32xf32>
    %150 = vector.broadcast %149 : vector<1x64x32xf32> to vector<2x64x32xf32>
    %151 = arith.mulf %148, %150 : vector<2x64x32xf32>
    %152 = tpu.concatenate %147, %147, %147, %147, %147, %147, %147, %147 in 1 : vector<2x8x32xf32>, vector<2x8x32xf32>, vector<2x8x32xf32>, vector<2x8x32xf32>, vector<2x8x32xf32>, vector<2x8x32xf32>, vector<2x8x32xf32>, vector<2x8x32xf32> -> vector<2x64x32xf32>
    %153 = vector.shape_cast %0 : vector<64x32xf32> to vector<1x64x32xf32>
    %154 = vector.broadcast %153 : vector<1x64x32xf32> to vector<2x64x32xf32>
    %155 = arith.mulf %152, %154 : vector<2x64x32xf32>
    "tpu.trace_start"() <{level = 10 : i32, message = "bqc,bmc->bqm"}> : () -> ()
    %cst_83 = arith.constant dense<0.000000e+00> : vector<2x8x64xf32>
    %156 = tpu.matmul %143, %151, %cst_83 {dimension_numbers = #tpu.dot_dimension_numbers<[2], [2], [1], [1], [0, 0, 0, 1, 1, 1], [0], [0]>} : vector<2x8x32xf32>, vector<2x64x32xf32>, vector<2x8x64xf32> -> vector<2x8x64xf32>
    "tpu.trace_stop"() : () -> ()
    %cst_84 = arith.constant 5.000000e-01 : f32
    %157 = vector.broadcast %cst_84 : f32 to vector<2x8x64xf32>
    %158 = arith.mulf %156, %157 : vector<2x8x64xf32>
    %cst_85 = arith.constant dense<0xFF800000> : vector<2x8xf32>
    %159 = vector.multi_reduction <maximumf>, %158, %cst_85 [2] : vector<2x8x64xf32> to vector<2x8xf32>
    %160 = vector.shape_cast %159 : vector<2x8xf32> to vector<2x8x1xf32>
    %161 = vector.broadcast %160 : vector<2x8x1xf32> to vector<2x8x64xf32>
    %162 = arith.subf %158, %161 : vector<2x8x64xf32>
    %163 = math.exp %162 : vector<2x8x64xf32>
    "tpu.trace_start"() <{level = 10 : i32, message = "bqm,bmc->bqc"}> : () -> ()
    %cst_86 = arith.constant dense<0.000000e+00> : vector<2x8x32xf32>
    %164 = tpu.matmul %163, %155, %cst_86 {dimension_numbers = #tpu.dot_dimension_numbers<[2], [1], [1], [2], [0, 0, 0, 1, 1, 2], [0], [0]>} : vector<2x8x64xf32>, vector<2x64x32xf32>, vector<2x8x32xf32> -> vector<2x8x32xf32>
    "tpu.trace_stop"() : () -> ()
    %165 = vector.shape_cast %163 : vector<2x8x64xf32> to vector<16x64xf32>
    %cst_87 = arith.constant dense<0.000000e+00> : vector<16x32xf32>
    %166 = tpu.matmul %165, %0, %cst_87 {dimension_numbers = #tpu.dot_dimension_numbers<[1], [0], [0], [1], [0, 0, 1, 1], [], []>} : vector<16x64xf32>, vector<64x32xf32>, vector<16x32xf32> -> vector<16x32xf32>
    %167 = vector.shape_cast %164 : vector<2x8x32xf32> to vector<16x32xf32>
    %168 = arith.divf %167, %166 : vector<16x32xf32>
    %c0_88 = arith.constant 0 : index
    %c0_89 = arith.constant 0 : index
    %169 = vector.load %arg20[%c0_88, %c0_89] : memref<32x32xf32, #tpu.memory_space<vmem>>, vector<32x32xf32>
    %cst_90 = arith.constant dense<0.000000e+00> : vector<16x32xf32>
    %170 = tpu.matmul %168, %169, %cst_90 {dimension_numbers = #tpu.dot_dimension_numbers<[1], [0], [0], [1], [0, 0, 1, 1], [], []>} : vector<16x32xf32>, vector<32x32xf32>, vector<16x32xf32> -> vector<16x32xf32>
    %c0_91 = arith.constant 0 : index
    %c0_92 = arith.constant 0 : index
    %171 = vector.load %arg21[%c0_91, %c0_92] : memref<1x32xf32, #tpu.memory_space<vmem>>, vector<1x32xf32>
    %172 = vector.broadcast %171 : vector<1x32xf32> to vector<16x32xf32>
    %173 = arith.addf %170, %172 : vector<16x32xf32>
    %174 = arith.addf %136, %173 : vector<16x32xf32>
    %c0_93 = arith.constant 0 : index
    %c0_94 = arith.constant 0 : index
    %175 = vector.load %arg22[%c0_93, %c0_94] : memref<1x32xf32, #tpu.memory_space<vmem>>, vector<1x32xf32>
    %c0_95 = arith.constant 0 : index
    %c0_96 = arith.constant 0 : index
    %176 = vector.load %arg23[%c0_95, %c0_96] : memref<1x32xf32, #tpu.memory_space<vmem>>, vector<1x32xf32>
    %cst_97 = arith.constant dense<0.000000e+00> : vector<16xf32>
    %177 = vector.multi_reduction <add>, %174, %cst_97 [1] : vector<16x32xf32> to vector<16xf32>
    %178 = vector.shape_cast %177 : vector<16xf32> to vector<16x1xf32>
    %cst_98 = arith.constant 3.200000e+01 : f32
    %179 = vector.broadcast %cst_98 : f32 to vector<16x1xf32>
    %180 = arith.divf %178, %179 : vector<16x1xf32>
    %181 = vector.broadcast %180 : vector<16x1xf32> to vector<16x32xf32>
    %182 = arith.subf %174, %181 : vector<16x32xf32>
    %183 = arith.mulf %182, %182 : vector<16x32xf32>
    %cst_99 = arith.constant dense<0.000000e+00> : vector<16xf32>
    %184 = vector.multi_reduction <add>, %183, %cst_99 [1] : vector<16x32xf32> to vector<16xf32>
    %185 = vector.shape_cast %184 : vector<16xf32> to vector<16x1xf32>
    %cst_100 = arith.constant 3.200000e+01 : f32
    %186 = vector.broadcast %cst_100 : f32 to vector<16x1xf32>
    %187 = arith.divf %185, %186 : vector<16x1xf32>
    %cst_101 = arith.constant 9.99999974E-6 : f32
    %188 = vector.broadcast %cst_101 : f32 to vector<16x1xf32>
    %189 = arith.addf %187, %188 : vector<16x1xf32>
    %190 = math.rsqrt %189 : vector<16x1xf32>
    %191 = vector.broadcast %190 : vector<16x1xf32> to vector<16x32xf32>
    %192 = arith.mulf %182, %191 : vector<16x32xf32>
    %193 = vector.broadcast %175 : vector<1x32xf32> to vector<16x32xf32>
    %194 = arith.mulf %192, %193 : vector<16x32xf32>
    %195 = vector.broadcast %176 : vector<1x32xf32> to vector<16x32xf32>
    %196 = arith.addf %194, %195 : vector<16x32xf32>
    %cst_102 = arith.constant 0.000000e+00 : f32
    %197 = vector.broadcast %cst_102 : f32 to vector<16x32xf32>
    %c0_103 = arith.constant 0 : index
    %c0_104 = arith.constant 0 : index
    %198 = vector.load %arg24[%c0_103, %c0_104] : memref<32x2048xf32, #tpu.memory_space<vmem>>, vector<32x512xf32>
    %cst_105 = arith.constant dense<0.000000e+00> : vector<16x512xf32>
    %199 = tpu.matmul %196, %198, %cst_105 {dimension_numbers = #tpu.dot_dimension_numbers<[1], [0], [0], [1], [0, 0, 1, 1], [], []>} : vector<16x32xf32>, vector<32x512xf32>, vector<16x512xf32> -> vector<16x512xf32>
    %c0_106 = arith.constant 0 : index
    %c0_107 = arith.constant 0 : index
    %200 = vector.load %arg25[%c0_106, %c0_107] : memref<1x2048xf32, #tpu.memory_space<vmem>>, vector<1x512xf32>
    %201 = vector.broadcast %200 : vector<1x512xf32> to vector<16x512xf32>
    %202 = arith.addf %199, %201 : vector<16x512xf32>
    %cst_108 = arith.constant 0.000000e+00 : f32
    %203 = vector.broadcast %cst_108 : f32 to vector<16x512xf32>
    %204 = arith.maximumf %202, %203 : vector<16x512xf32>
    %c0_109 = arith.constant 0 : index
    %c0_110 = arith.constant 0 : index
    %205 = vector.load %arg26[%c0_109, %c0_110] : memref<2048x32xf32, #tpu.memory_space<vmem>>, vector<512x32xf32>
    %cst_111 = arith.constant dense<0.000000e+00> : vector<16x32xf32>
    %206 = tpu.matmul %204, %205, %cst_111 {dimension_numbers = #tpu.dot_dimension_numbers<[1], [0], [0], [1], [0, 0, 1, 1], [], []>} : vector<16x512xf32>, vector<512x32xf32>, vector<16x32xf32> -> vector<16x32xf32>
    %207 = arith.addf %197, %206 : vector<16x32xf32>
    %c0_112 = arith.constant 0 : index
    %c512_113 = arith.constant 512 : index
    %208 = vector.load %arg24[%c0_112, %c512_113] : memref<32x2048xf32, #tpu.memory_space<vmem>>, vector<32x512xf32>
    %cst_114 = arith.constant dense<0.000000e+00> : vector<16x512xf32>
    %209 = tpu.matmul %196, %208, %cst_114 {dimension_numbers = #tpu.dot_dimension_numbers<[1], [0], [0], [1], [0, 0, 1, 1], [], []>} : vector<16x32xf32>, vector<32x512xf32>, vector<16x512xf32> -> vector<16x512xf32>
    %c0_115 = arith.constant 0 : index
    %c512_116 = arith.constant 512 : index
    %210 = vector.load %arg25[%c0_115, %c512_116] : memref<1x2048xf32, #tpu.memory_space<vmem>>, vector<1x512xf32>
    %211 = vector.broadcast %210 : vector<1x512xf32> to vector<16x512xf32>
    %212 = arith.addf %209, %211 : vector<16x512xf32>
    %cst_117 = arith.constant 0.000000e+00 : f32
    %213 = vector.broadcast %cst_117 : f32 to vector<16x512xf32>
    %214 = arith.maximumf %212, %213 : vector<16x512xf32>
    %c512_118 = arith.constant 512 : index
    %c0_119 = arith.constant 0 : index
    %215 = vector.load %arg26[%c512_118, %c0_119] : memref<2048x32xf32, #tpu.memory_space<vmem>>, vector<512x32xf32>
    %cst_120 = arith.constant dense<0.000000e+00> : vector<16x32xf32>
    %216 = tpu.matmul %214, %215, %cst_120 {dimension_numbers = #tpu.dot_dimension_numbers<[1], [0], [0], [1], [0, 0, 1, 1], [], []>} : vector<16x512xf32>, vector<512x32xf32>, vector<16x32xf32> -> vector<16x32xf32>
    %217 = arith.addf %207, %216 : vector<16x32xf32>
    %c0_121 = arith.constant 0 : index
    %c1024_122 = arith.constant 1024 : index
    %218 = vector.load %arg24[%c0_121, %c1024_122] : memref<32x2048xf32, #tpu.memory_space<vmem>>, vector<32x512xf32>
    %cst_123 = arith.constant dense<0.000000e+00> : vector<16x512xf32>
    %219 = tpu.matmul %196, %218, %cst_123 {dimension_numbers = #tpu.dot_dimension_numbers<[1], [0], [0], [1], [0, 0, 1, 1], [], []>} : vector<16x32xf32>, vector<32x512xf32>, vector<16x512xf32> -> vector<16x512xf32>
    %c0_124 = arith.constant 0 : index
    %c1024_125 = arith.constant 1024 : index
    %220 = vector.load %arg25[%c0_124, %c1024_125] : memref<1x2048xf32, #tpu.memory_space<vmem>>, vector<1x512xf32>
    %221 = vector.broadcast %220 : vector<1x512xf32> to vector<16x512xf32>
    %222 = arith.addf %219, %221 : vector<16x512xf32>
    %cst_126 = arith.constant 0.000000e+00 : f32
    %223 = vector.broadcast %cst_126 : f32 to vector<16x512xf32>
    %224 = arith.maximumf %222, %223 : vector<16x512xf32>
    %c1024_127 = arith.constant 1024 : index
    %c0_128 = arith.constant 0 : index
    %225 = vector.load %arg26[%c1024_127, %c0_128] : memref<2048x32xf32, #tpu.memory_space<vmem>>, vector<512x32xf32>
    %cst_129 = arith.constant dense<0.000000e+00> : vector<16x32xf32>
    %226 = tpu.matmul %224, %225, %cst_129 {dimension_numbers = #tpu.dot_dimension_numbers<[1], [0], [0], [1], [0, 0, 1, 1], [], []>} : vector<16x512xf32>, vector<512x32xf32>, vector<16x32xf32> -> vector<16x32xf32>
    %227 = arith.addf %217, %226 : vector<16x32xf32>
    %c0_130 = arith.constant 0 : index
    %c1536_131 = arith.constant 1536 : index
    %228 = vector.load %arg24[%c0_130, %c1536_131] : memref<32x2048xf32, #tpu.memory_space<vmem>>, vector<32x512xf32>
    %cst_132 = arith.constant dense<0.000000e+00> : vector<16x512xf32>
    %229 = tpu.matmul %196, %228, %cst_132 {dimension_numbers = #tpu.dot_dimension_numbers<[1], [0], [0], [1], [0, 0, 1, 1], [], []>} : vector<16x32xf32>, vector<32x512xf32>, vector<16x512xf32> -> vector<16x512xf32>
    %c0_133 = arith.constant 0 : index
    %c1536_134 = arith.constant 1536 : index
    %230 = vector.load %arg25[%c0_133, %c1536_134] : memref<1x2048xf32, #tpu.memory_space<vmem>>, vector<1x512xf32>
    %231 = vector.broadcast %230 : vector<1x512xf32> to vector<16x512xf32>
    %232 = arith.addf %229, %231 : vector<16x512xf32>
    %cst_135 = arith.constant 0.000000e+00 : f32
    %233 = vector.broadcast %cst_135 : f32 to vector<16x512xf32>
    %234 = arith.maximumf %232, %233 : vector<16x512xf32>
    %c1536_136 = arith.constant 1536 : index
    %c0_137 = arith.constant 0 : index
    %235 = vector.load %arg26[%c1536_136, %c0_137] : memref<2048x32xf32, #tpu.memory_space<vmem>>, vector<512x32xf32>
    %cst_138 = arith.constant dense<0.000000e+00> : vector<16x32xf32>
    %236 = tpu.matmul %234, %235, %cst_138 {dimension_numbers = #tpu.dot_dimension_numbers<[1], [0], [0], [1], [0, 0, 1, 1], [], []>} : vector<16x512xf32>, vector<512x32xf32>, vector<16x32xf32> -> vector<16x32xf32>
    %237 = arith.addf %227, %236 : vector<16x32xf32>
    %c0_139 = arith.constant 0 : index
    %c0_140 = arith.constant 0 : index
    %238 = vector.load %arg27[%c0_139, %c0_140] : memref<1x32xf32, #tpu.memory_space<vmem>>, vector<1x32xf32>
    %239 = vector.broadcast %238 : vector<1x32xf32> to vector<16x32xf32>
    %240 = arith.addf %237, %239 : vector<16x32xf32>
    %241 = arith.addf %196, %240 : vector<16x32xf32>
    %c0_141 = arith.constant 0 : index
    %c0_142 = arith.constant 0 : index
    %242 = vector.load %arg28[%c0_141, %c0_142] : memref<1x32xf32, #tpu.memory_space<vmem>>, vector<1x32xf32>
    %c0_143 = arith.constant 0 : index
    %c0_144 = arith.constant 0 : index
    %243 = vector.load %arg29[%c0_143, %c0_144] : memref<1x32xf32, #tpu.memory_space<vmem>>, vector<1x32xf32>
    %cst_145 = arith.constant dense<0.000000e+00> : vector<16xf32>
    %244 = vector.multi_reduction <add>, %241, %cst_145 [1] : vector<16x32xf32> to vector<16xf32>
    %245 = vector.shape_cast %244 : vector<16xf32> to vector<16x1xf32>
    %cst_146 = arith.constant 3.200000e+01 : f32
    %246 = vector.broadcast %cst_146 : f32 to vector<16x1xf32>
    %247 = arith.divf %245, %246 : vector<16x1xf32>
    %248 = vector.broadcast %247 : vector<16x1xf32> to vector<16x32xf32>
    %249 = arith.subf %241, %248 : vector<16x32xf32>
    %250 = arith.mulf %249, %249 : vector<16x32xf32>
    %cst_147 = arith.constant dense<0.000000e+00> : vector<16xf32>
    %251 = vector.multi_reduction <add>, %250, %cst_147 [1] : vector<16x32xf32> to vector<16xf32>
    %252 = vector.shape_cast %251 : vector<16xf32> to vector<16x1xf32>
    %cst_148 = arith.constant 3.200000e+01 : f32
    %253 = vector.broadcast %cst_148 : f32 to vector<16x1xf32>
    %254 = arith.divf %252, %253 : vector<16x1xf32>
    %cst_149 = arith.constant 9.99999974E-6 : f32
    %255 = vector.broadcast %cst_149 : f32 to vector<16x1xf32>
    %256 = arith.addf %254, %255 : vector<16x1xf32>
    %257 = math.rsqrt %256 : vector<16x1xf32>
    %258 = vector.broadcast %257 : vector<16x1xf32> to vector<16x32xf32>
    %259 = arith.mulf %249, %258 : vector<16x32xf32>
    %260 = vector.broadcast %242 : vector<1x32xf32> to vector<16x32xf32>
    %261 = arith.mulf %259, %260 : vector<16x32xf32>
    %262 = vector.broadcast %243 : vector<1x32xf32> to vector<16x32xf32>
    %263 = arith.addf %261, %262 : vector<16x32xf32>
    %c0_150 = arith.constant 0 : index
    %c0_151 = arith.constant 0 : index
    %264 = vector.load %arg30[%c0_150, %c0_151] : memref<32x1xf32, #tpu.memory_space<vmem>>, vector<32x1xf32>
    %cst_152 = arith.constant dense<0.000000e+00> : vector<16x1xf32>
    %265 = tpu.matmul %263, %264, %cst_152 {dimension_numbers = #tpu.dot_dimension_numbers<[1], [0], [0], [1], [0, 0, 1, 1], [], []>} : vector<16x32xf32>, vector<32x1xf32>, vector<16x1xf32> -> vector<16x1xf32>
    %c0_153 = arith.constant 0 : index
    %c0_154 = arith.constant 0 : index
    %266 = vector.load %arg31[%c0_153, %c0_154] : memref<1x1xf32, #tpu.memory_space<vmem>>, vector<1x1xf32>
    %267 = vector.broadcast %266 : vector<1x1xf32> to vector<16x1xf32>
    %268 = arith.addf %265, %267 : vector<16x1xf32>
    %c0_155 = arith.constant 0 : index
    %c0_156 = arith.constant 0 : index
    %269 = vector.load %arg32[%c0_155, %c0_156] : memref<16x1xf32, #tpu.memory_space<vmem>>, vector<16x1xf32>
    tpu.vector_store %arg32[%c0_155, %c0_156], %268 {strides = array<i32>} : memref<16x1xf32, #tpu.memory_space<vmem>>, vector<16x1xf32>,
    return
  }
  func.func @transform_0(%arg0: i32) -> (i32, i32) {
    %c0_i32 = arith.constant 0 : i32
    %c0_i32_0 = arith.constant 0 : i32
    return %arg0, %c0_i32 : i32, i32
  }
  func.func @transform_1(%arg0: i32) -> (i32, i32) {
    %c0_i32 = arith.constant 0 : i32
    %c0_i32_0 = arith.constant 0 : i32
    %c0_i32_1 = arith.constant 0 : i32
    return %c0_i32, %c0_i32_0 : i32, i32
  }
  func.func @transform_2(%arg0: i32) -> (i32, i32) {
    %c0_i32 = arith.constant 0 : i32
    %c0_i32_0 = arith.constant 0 : i32
    %c0_i32_1 = arith.constant 0 : i32
    return %c0_i32, %c0_i32_0 : i32, i32
  }
  func.func @transform_3(%arg0: i32) -> (i32, i32) {
    %c0_i32 = arith.constant 0 : i32
    %c0_i32_0 = arith.constant 0 : i32
    %c0_i32_1 = arith.constant 0 : i32
    return %c0_i32, %c0_i32_0 : i32, i32
  }
  func.func @transform_4(%arg0: i32) -> (i32, i32) {
    %c0_i32 = arith.constant 0 : i32
    %c0_i32_0 = arith.constant 0 : i32
    %c0_i32_1 = arith.constant 0 : i32
    return %c0_i32, %c0_i32_0 : i32, i32
  }
  func.func @transform_5(%arg0: i32) -> (i32, i32) {
    %c0_i32 = arith.constant 0 : i32
    %c0_i32_0 = arith.constant 0 : i32
    %c0_i32_1 = arith.constant 0 : i32
    return %c0_i32, %c0_i32_0 : i32, i32
  }
  func.func @transform_6(%arg0: i32) -> (i32, i32) {
    %c0_i32 = arith.constant 0 : i32
    %c0_i32_0 = arith.constant 0 : i32
    %c0_i32_1 = arith.constant 0 : i32
    return %c0_i32, %c0_i32_0 : i32, i32
  }
  func.func @transform_7(%arg0: i32) -> (i32, i32) {
    %c0_i32 = arith.constant 0 : i32
    %c0_i32_0 = arith.constant 0 : i32
    %c0_i32_1 = arith.constant 0 : i32
    return %c0_i32, %c0_i32_0 : i32, i32
  }
  func.func @transform_8(%arg0: i32) -> (i32, i32) {
    %c0_i32 = arith.constant 0 : i32
    %c0_i32_0 = arith.constant 0 : i32
    %c0_i32_1 = arith.constant 0 : i32
    return %c0_i32, %c0_i32_0 : i32, i32
  }
  func.func @transform_9(%arg0: i32) -> (i32, i32) {
    %c0_i32 = arith.constant 0 : i32
    %c0_i32_0 = arith.constant 0 : i32
    %c0_i32_1 = arith.constant 0 : i32
    return %c0_i32, %c0_i32_0 : i32, i32
  }
  func.func @transform_10(%arg0: i32) -> (i32, i32) {
    %c0_i32 = arith.constant 0 : i32
    %c0_i32_0 = arith.constant 0 : i32
    %c0_i32_1 = arith.constant 0 : i32
    return %c0_i32, %c0_i32_0 : i32, i32
  }
  func.func @transform_11(%arg0: i32) -> (i32, i32) {
    %c0_i32 = arith.constant 0 : i32
    %c0_i32_0 = arith.constant 0 : i32
    %c0_i32_1 = arith.constant 0 : i32
    return %c0_i32, %c0_i32_0 : i32, i32
  }
  func.func @transform_12(%arg0: i32) -> (i32, i32) {
    %c0_i32 = arith.constant 0 : i32
    %c0_i32_0 = arith.constant 0 : i32
    %c0_i32_1 = arith.constant 0 : i32
    return %c0_i32, %c0_i32_0 : i32, i32
  }
  func.func @transform_13(%arg0: i32) -> (i32, i32) {
    %c0_i32 = arith.constant 0 : i32
    %c0_i32_0 = arith.constant 0 : i32
    %c0_i32_1 = arith.constant 0 : i32
    return %c0_i32, %c0_i32_0 : i32, i32
  }
  func.func @transform_14(%arg0: i32) -> (i32, i32) {
    %c0_i32 = arith.constant 0 : i32
    %c0_i32_0 = arith.constant 0 : i32
    %c0_i32_1 = arith.constant 0 : i32
    return %c0_i32, %c0_i32_0 : i32, i32
  }
  func.func @transform_15(%arg0: i32) -> (i32, i32) {
    %c0_i32 = arith.constant 0 : i32
    %c0_i32_0 = arith.constant 0 : i32
    %c0_i32_1 = arith.constant 0 : i32
    return %c0_i32, %c0_i32_0 : i32, i32
  }
  func.func @transform_16(%arg0: i32) -> (i32, i32) {
    %c0_i32 = arith.constant 0 : i32
    %c0_i32_0 = arith.constant 0 : i32
    %c0_i32_1 = arith.constant 0 : i32
    return %c0_i32, %c0_i32_0 : i32, i32
  }
  func.func @transform_17(%arg0: i32) -> (i32, i32) {
    %c0_i32 = arith.constant 0 : i32
    %c0_i32_0 = arith.constant 0 : i32
    %c0_i32_1 = arith.constant 0 : i32
    return %c0_i32, %c0_i32_0 : i32, i32
  }
  func.func @transform_18(%arg0: i32) -> (i32, i32) {
    %c0_i32 = arith.constant 0 : i32
    %c0_i32_0 = arith.constant 0 : i32
    %c0_i32_1 = arith.constant 0 : i32
    return %c0_i32, %c0_i32_0 : i32, i32
  }
  func.func @transform_19(%arg0: i32) -> (i32, i32) {
    %c0_i32 = arith.constant 0 : i32
    %c0_i32_0 = arith.constant 0 : i32
    %c0_i32_1 = arith.constant 0 : i32
    return %c0_i32, %c0_i32_0 : i32, i32
  }
  func.func @transform_20(%arg0: i32) -> (i32, i32) {
    %c0_i32 = arith.constant 0 : i32
    %c0_i32_0 = arith.constant 0 : i32
    %c0_i32_1 = arith.constant 0 : i32
    return %c0_i32, %c0_i32_0 : i32, i32
  }
  func.func @transform_21(%arg0: i32) -> (i32, i32) {
    %c0_i32 = arith.constant 0 : i32
    %c0_i32_0 = arith.constant 0 : i32
    %c0_i32_1 = arith.constant 0 : i32
    return %c0_i32, %c0_i32_0 : i32, i32
  }
  func.func @transform_22(%arg0: i32) -> (i32, i32) {
    %c0_i32 = arith.constant 0 : i32
    %c0_i32_0 = arith.constant 0 : i32
    %c0_i32_1 = arith.constant 0 : i32
    return %c0_i32, %c0_i32_0 : i32, i32
  }
  func.func @transform_23(%arg0: i32) -> (i32, i32) {
    %c0_i32 = arith.constant 0 : i32
    %c0_i32_0 = arith.constant 0 : i32
    %c0_i32_1 = arith.constant 0 : i32
    return %c0_i32, %c0_i32_0 : i32, i32
  }
  func.func @transform_24(%arg0: i32) -> (i32, i32) {
    %c0_i32 = arith.constant 0 : i32
    %c0_i32_0 = arith.constant 0 : i32
    %c0_i32_1 = arith.constant 0 : i32
    return %c0_i32, %c0_i32_0 : i32, i32
  }
  func.func @transform_25(%arg0: i32) -> (i32, i32) {
    %c0_i32 = arith.constant 0 : i32
    %c0_i32_0 = arith.constant 0 : i32
    %c0_i32_1 = arith.constant 0 : i32
    return %c0_i32, %c0_i32_0 : i32, i32
  }
  func.func @transform_26(%arg0: i32) -> (i32, i32) {
    %c0_i32 = arith.constant 0 : i32
    %c0_i32_0 = arith.constant 0 : i32
    %c0_i32_1 = arith.constant 0 : i32
    return %c0_i32, %c0_i32_0 : i32, i32
  }
  func.func @transform_27(%arg0: i32) -> (i32, i32) {
    %c0_i32 = arith.constant 0 : i32
    %c0_i32_0 = arith.constant 0 : i32
    %c0_i32_1 = arith.constant 0 : i32
    return %c0_i32, %c0_i32_0 : i32, i32
  }
  func.func @transform_28(%arg0: i32) -> (i32, i32) {
    %c0_i32 = arith.constant 0 : i32
    %c0_i32_0 = arith.constant 0 : i32
    %c0_i32_1 = arith.constant 0 : i32
    return %c0_i32, %c0_i32_0 : i32, i32
  }
  func.func @transform_29(%arg0: i32) -> (i32, i32) {
    %c0_i32 = arith.constant 0 : i32
    %c0_i32_0 = arith.constant 0 : i32
    %c0_i32_1 = arith.constant 0 : i32
    return %c0_i32, %c0_i32_0 : i32, i32
  }
  func.func @transform_30(%arg0: i32) -> (i32, i32) {
    %c0_i32 = arith.constant 0 : i32
    %c0_i32_0 = arith.constant 0 : i32
    %c0_i32_1 = arith.constant 0 : i32
    return %c0_i32, %c0_i32_0 : i32, i32
  }
  func.func @transform_31(%arg0: i32) -> (i32, i32) {
    %c0_i32 = arith.constant 0 : i32
    %c0_i32_0 = arith.constant 0 : i32
    return %arg0, %c0_i32 : i32, i32
  }
}

</mosaic_0001>

<llo_original>
// kernel: transformer_encoder_forward.1
$region0: #{transformer_encoder_forward.1}
  #allocation0 [shape = 'u32[]', space=smem, size = 0x4, offset = 0x4, fixed_abs, tag = 'smem constant byte address 0x4 - core index']
  #allocation1 [shape = 'u32[144,128]{1,0:T(1,128)}', space=vmem, size = 0x12000, scoped, tag = 'internal scratch']
  #allocation2 [shape = 'f32[1,1]{1,0:T(1,128)S(1)}', space=vmem, size = 0x200, scoped, tag = 'scoped memory for transformer_encoder_forward.1']
  %s0 = inlined_call_operand.smem [shape: u32[32], index: -1, kind: input, shape index: {}]
  %s1 = sld [smem:[%s0]]
  %s2 = scalar_lea.smem %s0, 1
  %s3 = sld [smem:[%s2]]
  %s4 = scalar_lea.smem %s0, 2
  %s5 = sld [smem:[%s4]]
  %s6 = scalar_lea.smem %s0, 3
  %s7 = sld [smem:[%s6]]
  %s8 = scalar_lea.smem %s0, 4
  %s9 = sld [smem:[%s8]]
  %s10 = scalar_lea.smem %s0, 5
  %s11 = sld [smem:[%s10]]
  %s12 = scalar_lea.smem %s0, 6
  %s13 = sld [smem:[%s12]]
  %s14 = scalar_lea.smem %s0, 7
  %s15 = sld [smem:[%s14]]
  %s16 = scalar_lea.smem %s0, 8
  %s17 = sld [smem:[%s16]]
  %s18 = scalar_lea.smem %s0, 9
  %s19 = sld [smem:[%s18]]
  %s20 = scalar_lea.smem %s0, 10
  %s21 = sld [smem:[%s20]]
  %s22 = scalar_lea.smem %s0, 11
  %s23 = sld [smem:[%s22]]
  %s24 = scalar_lea.smem %s0, 12
  %s25 = sld [smem:[%s24]]
  %s26 = scalar_lea.smem %s0, 13
  %s27 = sld [smem:[%s26]]
  %s28 = scalar_lea.smem %s0, 14
  %s29 = sld [smem:[%s28]]
  %s30 = scalar_lea.smem %s0, 15
  %s31 = sld [smem:[%s30]]
  %s32 = scalar_lea.smem %s0, 16
  %s33 = sld [smem:[%s32]]
  %s34 = scalar_lea.smem %s0, 17
  %s35 = sld [smem:[%s34]]
  %s36 = scalar_lea.smem %s0, 18
  %s37 = sld [smem:[%s36]]
  %s38 = scalar_lea.smem %s0, 19
  %s39 = sld [smem:[%s38]]
  %s40 = scalar_lea.smem %s0, 20
  %s41 = sld [smem:[%s40]]
  %s42 = scalar_lea.smem %s0, 21
  %s43 = sld [smem:[%s42]]
  %s44 = scalar_lea.smem %s0, 22
  %s45 = sld [smem:[%s44]]
  %s46 = scalar_lea.smem %s0, 23
  %s47 = sld [smem:[%s46]]
  %s48 = scalar_lea.smem %s0, 24
  %s49 = sld [smem:[%s48]]
  %s50 = scalar_lea.smem %s0, 25
  %s51 = sld [smem:[%s50]]
  %s52 = scalar_lea.smem %s0, 26
  %s53 = sld [smem:[%s52]]
  %s54 = scalar_lea.smem %s0, 27
  %s55 = sld [smem:[%s54]]
  %s56 = scalar_lea.smem %s0, 28
  %s57 = sld [smem:[%s56]]
  %s58 = scalar_lea.smem %s0, 29
  %s59 = sld [smem:[%s58]]
  %s60 = scalar_lea.smem %s0, 30
  %s61 = sld [smem:[%s60]]
  %s62 = scalar_lea.smem %s0, 31
  %s63 = sld [smem:[%s62]]
  %s64 = sld [smem:[#allocation0]]
  $region134: #{transformer_encoder_forward.1} parent=0
    _
  %s66 = ssub.s32 1, %s64
  %s67 = scalar_select 0, %s66, %s64
  %v68 = vstv %s61
  %69 = vst [vmem:[#allocation2] sm:$0x1] %v68
  // Predicated region
  $region2: #{transformer_encoder_forward.1} parent=0 // pred_check
    _
  $region3: #{transformer_encoder_forward.1} parent=0 // pred_check_branch
    %71 = sbr.rel (0) target = $region5
  $region4: #{transformer_encoder_forward.1} parent=0 // pred_region
    _
  $region5: #{transformer_encoder_forward.1} parent=0 // pred_fallthru
    _
  // Predicated region
  $region6: #{transformer_encoder_forward.1} parent=0 // pred_check
    _
  $region7: #{transformer_encoder_forward.1} parent=0 // pred_check_branch
    %73 = sbr.rel (0) target = $region9
  $region8: #{transformer_encoder_forward.1} parent=0 // pred_region
    _
  $region9: #{transformer_encoder_forward.1} parent=0 // pred_fallthru
    _
  // Predicated region
  $region10: #{transformer_encoder_forward.1} parent=0 // pred_check
    _
  $region11: #{transformer_encoder_forward.1} parent=0 // pred_check_branch
    %75 = sbr.rel (0) target = $region13
  $region12: #{transformer_encoder_forward.1} parent=0 // pred_region
    _
  $region13: #{transformer_encoder_forward.1} parent=0 // pred_fallthru
    _
  // Predicated region
  $region14: #{transformer_encoder_forward.1} parent=0 // pred_check
    _
  $region15: #{transformer_encoder_forward.1} parent=0 // pred_check_branch
    %77 = sbr.rel (0) target = $region17
  $region16: #{transformer_encoder_forward.1} parent=0 // pred_region
    _
  $region17: #{transformer_encoder_forward.1} parent=0 // pred_fallthru
    _
  // Predicated region
  $region18: #{transformer_encoder_forward.1} parent=0 // pred_check
    _
  $region19: #{transformer_encoder_forward.1} parent=0 // pred_check_branch
    %79 = sbr.rel (0) target = $region21
  $region20: #{transformer_encoder_forward.1} parent=0 // pred_region
    _
  $region21: #{transformer_encoder_forward.1} parent=0 // pred_fallthru
    _
  // Predicated region
  $region22: #{transformer_encoder_forward.1} parent=0 // pred_check
    _
  $region23: #{transformer_encoder_forward.1} parent=0 // pred_check_branch
    %81 = sbr.rel (0) target = $region25
  $region24: #{transformer_encoder_forward.1} parent=0 // pred_region
    _
  $region25: #{transformer_encoder_forward.1} parent=0 // pred_fallthru
    _
  // Predicated region
  $region26: #{transformer_encoder_forward.1} parent=0 // pred_check
    _
  $region27: #{transformer_encoder_forward.1} parent=0 // pred_check_branch
    %83 = sbr.rel (0) target = $region29
  $region28: #{transformer_encoder_forward.1} parent=0 // pred_region
    _
  $region29: #{transformer_encoder_forward.1} parent=0 // pred_fallthru
    _
  // Predicated region
  $region30: #{transformer_encoder_forward.1} parent=0 // pred_check
    _
  $region31: #{transformer_encoder_forward.1} parent=0 // pred_check_branch
    %85 = sbr.rel (0) target = $region33
  $region32: #{transformer_encoder_forward.1} parent=0 // pred_region
    _
  $region33: #{transformer_encoder_forward.1} parent=0 // pred_fallthru
    _
  // Predicated region
  $region34: #{transformer_encoder_forward.1} parent=0 // pred_check
    _
  $region35: #{transformer_encoder_forward.1} parent=0 // pred_check_branch
    %87 = sbr.rel (0) target = $region37
  $region36: #{transformer_encoder_forward.1} parent=0 // pred_region
    _
  $region37: #{transformer_encoder_forward.1} parent=0 // pred_fallthru
    _
  // Predicated region
  $region38: #{transformer_encoder_forward.1} parent=0 // pred_check
    _
  $region39: #{transformer_encoder_forward.1} parent=0 // pred_check_branch
    %89 = sbr.rel (0) target = $region41
  $region40: #{transformer_encoder_forward.1} parent=0 // pred_region
    _
  $region41: #{transformer_encoder_forward.1} parent=0 // pred_fallthru
    _
  // Predicated region
  $region42: #{transformer_encoder_forward.1} parent=0 // pred_check
    _
  $region43: #{transformer_encoder_forward.1} parent=0 // pred_check_branch
    %91 = sbr.rel (0) target = $region45
  $region44: #{transformer_encoder_forward.1} parent=0 // pred_region
    _
  $region45: #{transformer_encoder_forward.1} parent=0 // pred_fallthru
    _
  // Predicated region
  $region46: #{transformer_encoder_forward.1} parent=0 // pred_check
    _
  $region47: #{transformer_encoder_forward.1} parent=0 // pred_check_branch
    %93 = sbr.rel (0) target = $region49
  $region48: #{transformer_encoder_forward.1} parent=0 // pred_region
    _
  $region49: #{transformer_encoder_forward.1} parent=0 // pred_fallthru
    _
  // Predicated region
  $region50: #{transformer_encoder_forward.1} parent=0 // pred_check
    _
  $region51: #{transformer_encoder_forward.1} parent=0 // pred_check_branch
    %95 = sbr.rel (0) target = $region53
  $region52: #{transformer_encoder_forward.1} parent=0 // pred_region
    _
  $region53: #{transformer_encoder_forward.1} parent=0 // pred_fallthru
    _
  // Predicated region
  $region54: #{transformer_encoder_forward.1} parent=0 // pred_check
    _
  $region55: #{transformer_encoder_forward.1} parent=0 // pred_check_branch
    %97 = sbr.rel (0) target = $region57
  $region56: #{transformer_encoder_forward.1} parent=0 // pred_region
    _
  $region57: #{transformer_encoder_forward.1} parent=0 // pred_fallthru
    _
  // Predicated region
  $region58: #{transformer_encoder_forward.1} parent=0 // pred_check
    _
  $region59: #{transformer_encoder_forward.1} parent=0 // pred_check_branch
    %99 = sbr.rel (0) target = $region61
  $region60: #{transformer_encoder_forward.1} parent=0 // pred_region
    _
  $region61: #{transformer_encoder_forward.1} parent=0 // pred_fallthru
    _
  // Predicated region
  $region62: #{transformer_encoder_forward.1} parent=0 // pred_check
    _
  $region63: #{transformer_encoder_forward.1} parent=0 // pred_check_branch
    %101 = sbr.rel (0) target = $region65
  $region64: #{transformer_encoder_forward.1} parent=0 // pred_region
    _
  $region65: #{transformer_encoder_forward.1} parent=0 // pred_fallthru
    _
  // Predicated region
  $region66: #{transformer_encoder_forward.1} parent=0 // pred_check
    _
  $region67: #{transformer_encoder_forward.1} parent=0 // pred_check_branch
    %103 = sbr.rel (0) target = $region69
  $region68: #{transformer_encoder_forward.1} parent=0 // pred_region
    _
  $region69: #{transformer_encoder_forward.1} parent=0 // pred_fallthru
    _
  // Predicated region
  $region70: #{transformer_encoder_forward.1} parent=0 // pred_check
    _
  $region71: #{transformer_encoder_forward.1} parent=0 // pred_check_branch
    %105 = sbr.rel (0) target = $region73
  $region72: #{transformer_encoder_forward.1} parent=0 // pred_region
    _
  $region73: #{transformer_encoder_forward.1} parent=0 // pred_fallthru
    _
  // Predicated region
  $region74: #{transformer_encoder_forward.1} parent=0 // pred_check
    _
  $region75: #{transformer_encoder_forward.1} parent=0 // pred_check_branch
    %107 = sbr.rel (0) target = $region77
  $region76: #{transformer_encoder_forward.1} parent=0 // pred_region
    _
  $region77: #{transformer_encoder_forward.1} parent=0 // pred_fallthru
    _
  // Predicated region
  $region78: #{transformer_encoder_forward.1} parent=0 // pred_check
    _
  $region79: #{transformer_encoder_forward.1} parent=0 // pred_check_branch
    %109 = sbr.rel (0) target = $region81
  $region80: #{transformer_encoder_forward.1} parent=0 // pred_region
    _
  $region81: #{transformer_encoder_forward.1} parent=0 // pred_fallthru
    _
  // Predicated region
  $region82: #{transformer_encoder_forward.1} parent=0 // pred_check
    _
  $region83: #{transformer_encoder_forward.1} parent=0 // pred_check_branch
    %111 = sbr.rel (0) target = $region85
  $region84: #{transformer_encoder_forward.1} parent=0 // pred_region
    _
  $region85: #{transformer_encoder_forward.1} parent=0 // pred_fallthru
    _
  // Predicated region
  $region86: #{transformer_encoder_forward.1} parent=0 // pred_check
    _
  $region87: #{transformer_encoder_forward.1} parent=0 // pred_check_branch
    %113 = sbr.rel (0) target = $region89
  $region88: #{transformer_encoder_forward.1} parent=0 // pred_region
    _
  $region89: #{transformer_encoder_forward.1} parent=0 // pred_fallthru
    _
  // Predicated region
  $region90: #{transformer_encoder_forward.1} parent=0 // pred_check
    _
  $region91: #{transformer_encoder_forward.1} parent=0 // pred_check_branch
    %115 = sbr.rel (0) target = $region93
  $region92: #{transformer_encoder_forward.1} parent=0 // pred_region
    _
  $region93: #{transformer_encoder_forward.1} parent=0 // pred_fallthru
    _
  // Predicated region
  $region94: #{transformer_encoder_forward.1} parent=0 // pred_check
    _
  $region95: #{transformer_encoder_forward.1} parent=0 // pred_check_branch
    %117 = sbr.rel (0) target = $region97
  $region96: #{transformer_encoder_forward.1} parent=0 // pred_region
    _
  $region97: #{transformer_encoder_forward.1} parent=0 // pred_fallthru
    _
  // Predicated region
  $region98: #{transformer_encoder_forward.1} parent=0 // pred_check
    _
  $region99: #{transformer_encoder_forward.1} parent=0 // pred_check_branch
    %119 = sbr.rel (0) target = $region101
  $region100: #{transformer_encoder_forward.1} parent=0 // pred_region
    _
  $region101: #{transformer_encoder_forward.1} parent=0 // pred_fallthru
    _
  // Predicated region
  $region102: #{transformer_encoder_forward.1} parent=0 // pred_check
    _
  $region103: #{transformer_encoder_forward.1} parent=0 // pred_check_branch
    %121 = sbr.rel (0) target = $region105
  $region104: #{transformer_encoder_forward.1} parent=0 // pred_region
    _
  $region105: #{transformer_encoder_forward.1} parent=0 // pred_fallthru
    _
  // Predicated region
  $region106: #{transformer_encoder_forward.1} parent=0 // pred_check
    _
  $region107: #{transformer_encoder_forward.1} parent=0 // pred_check_branch
    %123 = sbr.rel (0) target = $region109
  $region108: #{transformer_encoder_forward.1} parent=0 // pred_region
    _
  $region109: #{transformer_encoder_forward.1} parent=0 // pred_fallthru
    _
  // Predicated region
  $region110: #{transformer_encoder_forward.1} parent=0 // pred_check
    _
  $region111: #{transformer_encoder_forward.1} parent=0 // pred_check_branch
    %125 = sbr.rel (0) target = $region113
  $region112: #{transformer_encoder_forward.1} parent=0 // pred_region
    _
  $region113: #{transformer_encoder_forward.1} parent=0 // pred_fallthru
    _
  // Predicated region
  $region114: #{transformer_encoder_forward.1} parent=0 // pred_check
    _
  $region115: #{transformer_encoder_forward.1} parent=0 // pred_check_branch
    %127 = sbr.rel (0) target = $region117
  $region116: #{transformer_encoder_forward.1} parent=0 // pred_region
    _
  $region117: #{transformer_encoder_forward.1} parent=0 // pred_fallthru
    _
  // Predicated region
  $region118: #{transformer_encoder_forward.1} parent=0 // pred_check
    _
  $region119: #{transformer_encoder_forward.1} parent=0 // pred_check_branch
    %129 = sbr.rel (0) target = $region121
  $region120: #{transformer_encoder_forward.1} parent=0 // pred_region
    _
  $region121: #{transformer_encoder_forward.1} parent=0 // pred_fallthru
    _
  // Predicated region
  $region122: #{transformer_encoder_forward.1} parent=0 // pred_check
    _
  $region123: #{transformer_encoder_forward.1} parent=0 // pred_check_branch
    %131 = sbr.rel (0) target = $region125
  $region124: #{transformer_encoder_forward.1} parent=0 // pred_region
    _
  $region125: #{transformer_encoder_forward.1} parent=0 // pred_fallthru
    _
  %v132 = vld [vmem:[%s5] sm:$0xff]
  %v133 = vld [vmem:[%s5 + $0x8] sm:$0xff]
  %v134 = vld [vmem:[%s5 + $0x10] sm:$0xff]
  %v135 = vld [vmem:[%s5 + $0x18] sm:$0xff]
  %v136 = vld [vmem:[%s5 + $0x20] sm:$0xff]
  %v137 = vld [vmem:[%s5 + $0x28] sm:$0xff]
  %v138 = vld [vmem:[%s5 + $0x30] sm:$0xff]
  %v139 = vld [vmem:[%s5 + $0x38] sm:$0xff]
  %v140 = vld [vmem:[%s3] sm:$0xff]
  %v141 = vld [vmem:[%s1] sm:$0xff]
  %v142 = vld [vmem:[%s1 + $0x8] sm:$0xff]
  %v143 = vld [vmem:[%s7] sm:$0xf]
  %v144 = vld [vmem:[%s9] sm:$0x1]
  %v146 = vlaneseq
  %v147 = vshrl.u32 %v146, 7
  %v148 = vsub.s32 0, %v147
  %v149 = vrot.slane %v144, %v148
  %vm151 = vcmask 31744
  %v153 = vsel %vm151, %v141, 0
  %v156 = vsel %vm151, %v142, 0
  %vm158 = vcmask 1043456
  %v160 = vsel %vm158, %v143, 0
  %162 = vmatprep.subr.mxu0 0.0
  %163 = vmatpush1.msra.mxu0 %v160
  %164 = vmatprep.subr.mxu0 0.0
  %165 = vmatpush1.msra.mxu0 0.0
  %166 = vmatprep.subr.mxu0 0.0
  %167 = vmatpush1.msra.mxu0 0.0
  %168 = vmatprep.subr.mxu0 0.0
  %169 = vmatpush1.msra.mxu0 0.0
  %170 = vmatprep.subr.mxu0 0.0
  %171 = vmatpush1.msra.mxu0 0.0
  %172 = vmatprep.subr.mxu0 0.0
  %173 = vmatpush1.msra.mxu0 0.0
  %174 = vmatprep.subr.mxu0 0.0
  %175 = vmatpush1.msra.mxu0 0.0
  %176 = vmatprep.subr.mxu0 0.0
  %177 = vmatpush1.msra.mxu0 0.0
  %178 = vmatprep.subr.mxu0 0.0
  %179 = vmatpush1.msra.mxu0 0.0
  %180 = vmatprep.subr.mxu0 0.0
  %181 = vmatpush1.msra.mxu0 0.0
  %182 = vmatprep.subr.mxu0 0.0
  %183 = vmatpush1.msra.mxu0 0.0
  %184 = vmatprep.subr.mxu0 0.0
  %185 = vmatpush1.msra.mxu0 0.0
  %186 = vmatprep.subr.mxu0 0.0
  %187 = vmatpush1.msra.mxu0 0.0
  %188 = vmatprep.subr.mxu0 0.0
  %189 = vmatpush1.msra.mxu0 0.0
  %190 = vmatprep.subr.mxu0 0.0
  %191 = vmatpush1.msra.mxu0 0.0
  %192 = vmatprep.subr.mxu0 0.0
  %193 = vmatpush1.msra.mxu0 0.0
  %194 = vmatprep.subr.mxu0 0.0
  %195 = vmatpush1.msra.mxu0 0.0
  %196 = vmatprep.subr.mxu0 0.0
  %197 = vmatpush1.msra.mxu0 0.0
  %198 = vmatprep.subr.mxu0 0.0
  %199 = vmatpush1.msra.mxu0 0.0
  %200 = vmatprep.subr.mxu0 0.0
  %201 = vmatpush1.msra.mxu0 0.0
  %202 = vmatprep.subr.mxu0 0.0
  %203 = vmatpush1.msra.mxu0 0.0
  %204 = vmatprep.subr.mxu0 0.0
  %205 = vmatpush1.msra.mxu0 0.0
  %206 = vmatprep.subr.mxu0 0.0
  %207 = vmatpush1.msra.mxu0 0.0
  %208 = vmatprep.subr.mxu0 0.0
  %209 = vmatpush1.msra.mxu0 0.0
  %210 = vmatprep.subr.mxu0 0.0
  %211 = vmatpush1.msra.mxu0 0.0
  %212 = vmatprep.subr.mxu0 0.0
  %213 = vmatpush1.msra.mxu0 0.0
  %214 = vmatprep.subr.mxu0 0.0
  %215 = vmatpush1.msra.mxu0 0.0
  %216 = vmatprep.subr.mxu0 0.0
  %217 = vmatpush1.msra.mxu0 0.0
  %218 = vmatprep.subr.mxu0 0.0
  %219 = vmatpush1.msra.mxu0 0.0
  %220 = vmatprep.subr.mxu0 0.0
  %221 = vmatpush1.msra.mxu0 0.0
  %222 = vmatprep.subr.mxu0 0.0
  %223 = vmatpush1.msra.mxu0 0.0
  %224 = vmatprep.subr.mxu0 0.0
  %225 = vmatpush1.msra.mxu0 0.0
  %226 = vmatprep.mubr.f32.mxu0 0.0
  %227 = vmatmul.mubr.f32.gmra.mrb[0].mxu0 %v153
  %v228 = vpop.f32.mrb[0].mxu0
  %v229 = vadd.f32 %v149, %v228
  %v230 = vpop.f32.mrb[0].mxu0
  %231 = vmatprep.mubr.f32.mxu0 0.0
  %232 = vmatmul.mubr.f32.gmra.mrb[0].mxu0 %v156
  %v233 = vpop.f32.mrb[0].mxu0
  %v234 = vadd.f32 %v149, %v233
  %v235 = vpop.f32.mrb[0].mxu0
  %236 = vdwg.mxu0
  %v237 = vadd.f32 %v229, %v140
  %v238 = vadd.f32 %v234, %v140
  %v239 = vld [vmem:[%s11] sm:$0xff]
  %v240 = vld [vmem:[%s11 + $0x8] sm:$0xff]
  %v241 = vld [vmem:[%s11 + $0x10] sm:$0xff]
  %v242 = vld [vmem:[%s11 + $0x18] sm:$0xff]
  %v243 = vld [vmem:[%s13] sm:$0x1]
  %v245 = vlaneseq
  %v246 = vshrl.u32 %v245, 7
  %v247 = vsub.s32 0, %v246
  %v248 = vrot.slane %v243, %v247
  %vm250 = vcmask 261120
  %v252 = vsel %vm250, %v237, 0
  %v255 = vsel %vm250, %v238, 0
  %257 = vmatprep.subr.mxu0 0.0
  %258 = vmatpush1.msra.mxu0 %v239
  %259 = vmatprep.subr.mxu0 0.0
  %260 = vmatpush1.msra.mxu0 %v240
  %261 = vmatprep.subr.mxu0 0.0
  %262 = vmatpush1.msra.mxu0 %v241
  %263 = vmatprep.subr.mxu0 0.0
  %264 = vmatpush1.msra.mxu0 %v242
  %265 = vmatprep.subr.mxu0 0.0
  %266 = vmatpush1.msra.mxu0 0.0
  %267 = vmatprep.subr.mxu0 0.0
  %268 = vmatpush1.msra.mxu0 0.0
  %269 = vmatprep.subr.mxu0 0.0
  %270 = vmatpush1.msra.mxu0 0.0
  %271 = vmatprep.subr.mxu0 0.0
  %272 = vmatpush1.msra.mxu0 0.0
  %273 = vmatprep.subr.mxu0 0.0
  %274 = vmatpush1.msra.mxu0 0.0
  %275 = vmatprep.subr.mxu0 0.0
  %276 = vmatpush1.msra.mxu0 0.0
  %277 = vmatprep.subr.mxu0 0.0
  %278 = vmatpush1.msra.mxu0 0.0
  %279 = vmatprep.subr.mxu0 0.0
  %280 = vmatpush1.msra.mxu0 0.0
  %281 = vmatprep.subr.mxu0 0.0
  %282 = vmatpush1.msra.mxu0 0.0
  %283 = vmatprep.subr.mxu0 0.0
  %284 = vmatpush1.msra.mxu0 0.0
  %285 = vmatprep.subr.mxu0 0.0
  %286 = vmatpush1.msra.mxu0 0.0
  %287 = vmatprep.subr.mxu0 0.0
  %288 = vmatpush1.msra.mxu0 0.0
  %289 = vmatprep.subr.mxu0 0.0
  %290 = vmatpush1.msra.mxu0 0.0
  %291 = vmatprep.subr.mxu0 0.0
  %292 = vmatpush1.msra.mxu0 0.0
  %293 = vmatprep.subr.mxu0 0.0
  %294 = vmatpush1.msra.mxu0 0.0
  %295 = vmatprep.subr.mxu0 0.0
  %296 = vmatpush1.msra.mxu0 0.0
  %297 = vmatprep.subr.mxu0 0.0
  %298 = vmatpush1.msra.mxu0 0.0
  %299 = vmatprep.subr.mxu0 0.0
  %300 = vmatpush1.msra.mxu0 0.0
  %301 = vmatprep.subr.mxu0 0.0
  %302 = vmatpush1.msra.mxu0 0.0
  %303 = vmatprep.subr.mxu0 0.0
  %304 = vmatpush1.msra.mxu0 0.0
  %305 = vmatprep.subr.mxu0 0.0
  %306 = vmatpush1.msra.mxu0 0.0
  %307 = vmatprep.subr.mxu0 0.0
  %308 = vmatpush1.msra.mxu0 0.0
  %309 = vmatprep.subr.mxu0 0.0
  %310 = vmatpush1.msra.mxu0 0.0
  %311 = vmatprep.subr.mxu0 0.0
  %312 = vmatpush1.msra.mxu0 0.0
  %313 = vmatprep.subr.mxu0 0.0
  %314 = vmatpush1.msra.mxu0 0.0
  %315 = vmatprep.subr.mxu0 0.0
  %316 = vmatpush1.msra.mxu0 0.0
  %317 = vmatprep.subr.mxu0 0.0
  %318 = vmatpush1.msra.mxu0 0.0
  %319 = vmatprep.subr.mxu0 0.0
  %320 = vmatpush1.msra.mxu0 0.0
  %321 = vmatprep.mubr.f32.mxu0 0.0
  %322 = vmatmul.mubr.f32.gmra.mrb[0].mxu0 %v252
  %v323 = vpop.f32.mrb[0].mxu0
  %v324 = vadd.f32 %v248, %v323
  %v325 = vpop.f32.mrb[0].mxu0
  %326 = vmatprep.mubr.f32.mxu0 0.0
  %327 = vmatmul.mubr.f32.gmra.mrb[0].mxu0 %v255
  %v328 = vpop.f32.mrb[0].mxu0
  %v329 = vadd.f32 %v248, %v328
  %v330 = vpop.f32.mrb[0].mxu0
  %331 = vdwg.mxu0
  %340 = vrot.lane.b32.xlu0 %v132, 32
  %v341 = vpop.permute.xlu0 %340
  %342 = vrot.lane.b32.xlu0 %v133, 32
  %v343 = vpop.permute.xlu0 %342
  %344 = vrot.lane.b32.xlu0 %v134, 32
  %v345 = vpop.permute.xlu0 %344
  %346 = vrot.lane.b32.xlu0 %v135, 32
  %v347 = vpop.permute.xlu0 %346
  %348 = vrot.lane.b32.xlu0 %v136, 32
  %v349 = vpop.permute.xlu0 %348
  %350 = vrot.lane.b32.xlu0 %v137, 32
  %v351 = vpop.permute.xlu0 %350
  %352 = vrot.lane.b32.xlu0 %v138, 32
  %v353 = vpop.permute.xlu0 %352
  %354 = vrot.lane.b32.xlu0 %v139, 32
  %v355 = vpop.permute.xlu0 %354
  %v364 = vmul.f32 %v324, %v341
  %v365 = vmul.f32 %v324, %v343
  %v366 = vmul.f32 %v324, %v345
  %v367 = vmul.f32 %v324, %v347
  %v368 = vmul.f32 %v324, %v349
  %v369 = vmul.f32 %v324, %v351
  %v370 = vmul.f32 %v324, %v353
  %v371 = vmul.f32 %v324, %v355
  %v372 = vmul.f32 %v329, %v341
  %v373 = vmul.f32 %v329, %v343
  %v374 = vmul.f32 %v329, %v345
  %v375 = vmul.f32 %v329, %v347
  %v376 = vmul.f32 %v329, %v349
  %v377 = vmul.f32 %v329, %v351
  %v378 = vmul.f32 %v329, %v353
  %v379 = vmul.f32 %v329, %v355
  %380 = vrot.lane.b32.xlu0 %v132, 64
  %v381 = vpop.permute.xlu0 %380
  %382 = vrot.lane.b32.xlu0 %v133, 64
  %v383 = vpop.permute.xlu0 %382
  %384 = vrot.lane.b32.xlu0 %v134, 64
  %v385 = vpop.permute.xlu0 %384
  %386 = vrot.lane.b32.xlu0 %v135, 64
  %v387 = vpop.permute.xlu0 %386
  %388 = vrot.lane.b32.xlu0 %v136, 64
  %v389 = vpop.permute.xlu0 %388
  %390 = vrot.lane.b32.xlu0 %v137, 64
  %v391 = vpop.permute.xlu0 %390
  %392 = vrot.lane.b32.xlu0 %v138, 64
  %v393 = vpop.permute.xlu0 %392
  %394 = vrot.lane.b32.xlu0 %v139, 64
  %v395 = vpop.permute.xlu0 %394
  %v404 = vmul.f32 %v324, %v381
  %v405 = vmul.f32 %v324, %v383
  %v406 = vmul.f32 %v324, %v385
  %v407 = vmul.f32 %v324, %v387
  %v408 = vmul.f32 %v324, %v389
  %v409 = vmul.f32 %v324, %v391
  %v410 = vmul.f32 %v324, %v393
  %v411 = vmul.f32 %v324, %v395
  %v412 = vmul.f32 %v329, %v381
  %v413 = vmul.f32 %v329, %v383
  %v414 = vmul.f32 %v329, %v385
  %v415 = vmul.f32 %v329, %v387
  %v416 = vmul.f32 %v329, %v389
  %v417 = vmul.f32 %v329, %v391
  %v418 = vmul.f32 %v329, %v393
  %v419 = vmul.f32 %v329, %v395
  %428 = vrot.lane.b32.xlu0 %v364, 96
  %v429 = vpop.permute.xlu0 %428
  %430 = vrot.lane.b32.xlu0 %v365, 96
  %v431 = vpop.permute.xlu0 %430
  %432 = vrot.lane.b32.xlu0 %v366, 96
  %v433 = vpop.permute.xlu0 %432
  %434 = vrot.lane.b32.xlu0 %v367, 96
  %v435 = vpop.permute.xlu0 %434
  %436 = vrot.lane.b32.xlu0 %v368, 96
  %v437 = vpop.permute.xlu0 %436
  %438 = vrot.lane.b32.xlu0 %v369, 96
  %v439 = vpop.permute.xlu0 %438
  %440 = vrot.lane.b32.xlu0 %v370, 96
  %v441 = vpop.permute.xlu0 %440
  %442 = vrot.lane.b32.xlu0 %v371, 96
  %v443 = vpop.permute.xlu0 %442
  %v445 = vsel %vm250, %v324, 0
  %v447 = vsel %vm250, %v429, 0
  %v449 = vsel %vm250, %v431, 0
  %v451 = vsel %vm250, %v433, 0
  %v453 = vsel %vm250, %v435, 0
  %v455 = vsel %vm250, %v437, 0
  %v457 = vsel %vm250, %v439, 0
  %v459 = vsel %vm250, %v441, 0
  %v461 = vsel %vm250, %v443, 0
  %463 = vmatprep.subr.mxu0 0.0
  %464 = vmatpush1.xpose.msra.mxu0 %v447
  %465 = vmatprep.subr.mxu0 0.0
  %466 = vmatpush1.xpose.msra.mxu0 %v449
  %467 = vmatprep.subr.mxu0 0.0
  %468 = vmatpush1.xpose.msra.mxu0 %v451
  %469 = vmatprep.subr.mxu0 0.0
  %470 = vmatpush1.xpose.msra.mxu0 %v453
  %471 = vmatprep.subr.mxu0 0.0
  %472 = vmatpush1.xpose.msra.mxu0 %v455
  %473 = vmatprep.subr.mxu0 0.0
  %474 = vmatpush1.xpose.msra.mxu0 %v457
  %475 = vmatprep.subr.mxu0 0.0
  %476 = vmatpush1.xpose.msra.mxu0 %v459
  %477 = vmatprep.subr.mxu0 0.0
  %478 = vmatpush1.xpose.msra.mxu0 %v461
  %479 = vmatprep.subr.mxu0 0.0
  %480 = vmatpush1.xpose.msra.mxu0 0.0
  %481 = vmatprep.subr.mxu0 0.0
  %482 = vmatpush1.xpose.msra.mxu0 0.0
  %483 = vmatprep.subr.mxu0 0.0
  %484 = vmatpush1.xpose.msra.mxu0 0.0
  %485 = vmatprep.subr.mxu0 0.0
  %486 = vmatpush1.xpose.msra.mxu0 0.0
  %487 = vmatprep.subr.mxu0 0.0
  %488 = vmatpush1.xpose.msra.mxu0 0.0
  %489 = vmatprep.subr.mxu0 0.0
  %490 = vmatpush1.xpose.msra.mxu0 0.0
  %491 = vmatprep.subr.mxu0 0.0
  %492 = vmatpush1.xpose.msra.mxu0 0.0
  %493 = vmatprep.subr.mxu0 0.0
  %494 = vmatpush1.xpose.msra.mxu0 0.0
  %495 = vmatprep.subr.mxu0 0.0
  %496 = vmatpush1.xpose.msra.mxu0 0.0
  %497 = vmatprep.subr.mxu0 0.0
  %498 = vmatpush1.xpose.msra.mxu0 0.0
  %499 = vmatprep.subr.mxu0 0.0
  %500 = vmatpush1.xpose.msra.mxu0 0.0
  %501 = vmatprep.subr.mxu0 0.0
  %502 = vmatpush1.xpose.msra.mxu0 0.0
  %503 = vmatprep.subr.mxu0 0.0
  %504 = vmatpush1.xpose.msra.mxu0 0.0
  %505 = vmatprep.subr.mxu0 0.0
  %506 = vmatpush1.xpose.msra.mxu0 0.0
  %507 = vmatprep.subr.mxu0 0.0
  %508 = vmatpush1.xpose.msra.mxu0 0.0
  %509 = vmatprep.subr.mxu0 0.0
  %510 = vmatpush1.xpose.msra.mxu0 0.0
  %511 = vmatprep.subr.mxu0 0.0
  %512 = vmatpush1.xpose.msra.mxu0 0.0
  %513 = vmatprep.subr.mxu0 0.0
  %514 = vmatpush1.xpose.msra.mxu0 0.0
  %515 = vmatprep.subr.mxu0 0.0
  %516 = vmatpush1.xpose.msra.mxu0 0.0
  %517 = vmatprep.subr.mxu0 0.0
  %518 = vmatpush1.xpose.msra.mxu0 0.0
  %519 = vmatprep.subr.mxu0 0.0
  %520 = vmatpush1.xpose.msra.mxu0 0.0
  %521 = vmatprep.subr.mxu0 0.0
  %522 = vmatpush1.xpose.msra.mxu0 0.0
  %523 = vmatprep.subr.mxu0 0.0
  %524 = vmatpush1.xpose.msra.mxu0 0.0
  %525 = vmatprep.subr.mxu0 0.0
  %526 = vmatpush1.xpose.msra.mxu0 0.0
  %527 = vmatprep.mubr.f32.mxu0 0.0
  %528 = vmatmul.mubr.f32.gmra.mrb[0].mxu0 %v445
  %v529 = vpop.f32.mrb[0].mxu0
  %v530 = vadd.f32 0.0, %v529
  %v531 = vpop.f32.mrb[0].mxu0
  %532 = vdwg.mxu0
  %541 = vrot.lane.b32.xlu0 %v372, 96
  %v542 = vpop.permute.xlu0 %541
  %543 = vrot.lane.b32.xlu0 %v373, 96
  %v544 = vpop.permute.xlu0 %543
  %545 = vrot.lane.b32.xlu0 %v374, 96
  %v546 = vpop.permute.xlu0 %545
  %547 = vrot.lane.b32.xlu0 %v375, 96
  %v548 = vpop.permute.xlu0 %547
  %549 = vrot.lane.b32.xlu0 %v376, 96
  %v550 = vpop.permute.xlu0 %549
  %551 = vrot.lane.b32.xlu0 %v377, 96
  %v552 = vpop.permute.xlu0 %551
  %553 = vrot.lane.b32.xlu0 %v378, 96
  %v554 = vpop.permute.xlu0 %553
  %555 = vrot.lane.b32.xlu0 %v379, 96
  %v556 = vpop.permute.xlu0 %555
  %v558 = vsel %vm250, %v329, 0
  %v560 = vsel %vm250, %v542, 0
  %v562 = vsel %vm250, %v544, 0
  %v564 = vsel %vm250, %v546, 0
  %v566 = vsel %vm250, %v548, 0
  %v568 = vsel %vm250, %v550, 0
  %v570 = vsel %vm250, %v552, 0
  %v572 = vsel %vm250, %v554, 0
  %v574 = vsel %vm250, %v556, 0
  %576 = vmatprep.subr.mxu0 0.0
  %577 = vmatpush1.xpose.msra.mxu0 %v560
  %578 = vmatprep.subr.mxu0 0.0
  %579 = vmatpush1.xpose.msra.mxu0 %v562
  %580 = vmatprep.subr.mxu0 0.0
  %581 = vmatpush1.xpose.msra.mxu0 %v564
  %582 = vmatprep.subr.mxu0 0.0
  %583 = vmatpush1.xpose.msra.mxu0 %v566
  %584 = vmatprep.subr.mxu0 0.0
  %585 = vmatpush1.xpose.msra.mxu0 %v568
  %586 = vmatprep.subr.mxu0 0.0
  %587 = vmatpush1.xpose.msra.mxu0 %v570
  %588 = vmatprep.subr.mxu0 0.0
  %589 = vmatpush1.xpose.msra.mxu0 %v572
  %590 = vmatprep.subr.mxu0 0.0
  %591 = vmatpush1.xpose.msra.mxu0 %v574
  %592 = vmatprep.subr.mxu0 0.0
  %593 = vmatpush1.xpose.msra.mxu0 0.0
  %594 = vmatprep.subr.mxu0 0.0
  %595 = vmatpush1.xpose.msra.mxu0 0.0
  %596 = vmatprep.subr.mxu0 0.0
  %597 = vmatpush1.xpose.msra.mxu0 0.0
  %598 = vmatprep.subr.mxu0 0.0
  %599 = vmatpush1.xpose.msra.mxu0 0.0
  %600 = vmatprep.subr.mxu0 0.0
  %601 = vmatpush1.xpose.msra.mxu0 0.0
  %602 = vmatprep.subr.mxu0 0.0
  %603 = vmatpush1.xpose.msra.mxu0 0.0
  %604 = vmatprep.subr.mxu0 0.0
  %605 = vmatpush1.xpose.msra.mxu0 0.0
  %606 = vmatprep.subr.mxu0 0.0
  %607 = vmatpush1.xpose.msra.mxu0 0.0
  %608 = vmatprep.subr.mxu0 0.0
  %609 = vmatpush1.xpose.msra.mxu0 0.0
  %610 = vmatprep.subr.mxu0 0.0
  %611 = vmatpush1.xpose.msra.mxu0 0.0
  %612 = vmatprep.subr.mxu0 0.0
  %613 = vmatpush1.xpose.msra.mxu0 0.0
  %614 = vmatprep.subr.mxu0 0.0
  %615 = vmatpush1.xpose.msra.mxu0 0.0
  %616 = vmatprep.subr.mxu0 0.0
  %617 = vmatpush1.xpose.msra.mxu0 0.0
  %618 = vmatprep.subr.mxu0 0.0
  %619 = vmatpush1.xpose.msra.mxu0 0.0
  %620 = vmatprep.subr.mxu0 0.0
  %621 = vmatpush1.xpose.msra.mxu0 0.0
  %622 = vmatprep.subr.mxu0 0.0
  %623 = vmatpush1.xpose.msra.mxu0 0.0
  %624 = vmatprep.subr.mxu0 0.0
  %625 = vmatpush1.xpose.msra.mxu0 0.0
  %626 = vmatprep.subr.mxu0 0.0
  %627 = vmatpush1.xpose.msra.mxu0 0.0
  %628 = vmatprep.subr.mxu0 0.0
  %629 = vmatpush1.xpose.msra.mxu0 0.0
  %630 = vmatprep.subr.mxu0 0.0
  %631 = vmatpush1.xpose.msra.mxu0 0.0
  %632 = vmatprep.subr.mxu0 0.0
  %633 = vmatpush1.xpose.msra.mxu0 0.0
  %634 = vmatprep.subr.mxu0 0.0
  %635 = vmatpush1.xpose.msra.mxu0 0.0
  %636 = vmatprep.subr.mxu0 0.0
  %637 = vmatpush1.xpose.msra.mxu0 0.0
  %638 = vmatprep.subr.mxu0 0.0
  %639 = vmatpush1.xpose.msra.mxu0 0.0
  %640 = vmatprep.mubr.f32.mxu0 0.0
  %641 = vmatmul.mubr.f32.gmra.mrb[0].mxu0 %v558
  %v642 = vpop.f32.mrb[0].mxu0
  %v643 = vadd.f32 0.0, %v642
  %v644 = vpop.f32.mrb[0].mxu0
  %645 = vdwg.mxu0
  %v646 = vmul.f32 %v530, 0.5
  %v647 = vmul.f32 %v643, 0.5
  %vm648 = vcmask 523264
  %v649 = vsel %vm648, %v646, -inf
  %650 = vmax.xlane.f32.xlu0 %v649
  %v651 = vpop.xlane.xlu0 %650
  %v652 = vsel %vm648, %v647, -inf
  %653 = vmax.xlane.f32.xlu0 %v652
  %v654 = vpop.xlane.xlu0 %653
  %v655 = vsub.f32 %v646, %v651
  %v656 = vsub.f32 %v647, %v654
  %v657 = vmul.f32 %v655, 1.442695
  %v658 = vpow.pop %v657
  %v659 = vmul.f32 %v656, 1.442695
  %v660 = vpow.pop %v659
  %669 = vrot.lane.b32.xlu0 %v404, 64
  %v670 = vpop.permute.xlu0 %669
  %671 = vrot.lane.b32.xlu0 %v405, 64
  %v672 = vpop.permute.xlu0 %671
  %673 = vrot.lane.b32.xlu0 %v406, 64
  %v674 = vpop.permute.xlu0 %673
  %675 = vrot.lane.b32.xlu0 %v407, 64
  %v676 = vpop.permute.xlu0 %675
  %677 = vrot.lane.b32.xlu0 %v408, 64
  %v678 = vpop.permute.xlu0 %677
  %679 = vrot.lane.b32.xlu0 %v409, 64
  %v680 = vpop.permute.xlu0 %679
  %681 = vrot.lane.b32.xlu0 %v410, 64
  %v682 = vpop.permute.xlu0 %681
  %683 = vrot.lane.b32.xlu0 %v411, 64
  %v684 = vpop.permute.xlu0 %683
  %v694 = vsel %vm648, %v658, 0
  %696 = vmatprep.subr.mxu0 0.0
  %697 = vmatpush1.msra.mxu0 %v670
  %698 = vmatprep.subr.mxu0 0.0
  %699 = vmatpush1.msra.mxu0 %v672
  %700 = vmatprep.subr.mxu0 0.0
  %701 = vmatpush1.msra.mxu0 %v674
  %702 = vmatprep.subr.mxu0 0.0
  %703 = vmatpush1.msra.mxu0 %v676
  %704 = vmatprep.subr.mxu0 0.0
  %705 = vmatpush1.msra.mxu0 %v678
  %706 = vmatprep.subr.mxu0 0.0
  %707 = vmatpush1.msra.mxu0 %v680
  %708 = vmatprep.subr.mxu0 0.0
  %709 = vmatpush1.msra.mxu0 %v682
  %710 = vmatprep.subr.mxu0 0.0
  %711 = vmatpush1.msra.mxu0 %v684
  %712 = vmatprep.subr.mxu0 0.0
  %713 = vmatpush1.msra.mxu0 0.0
  %714 = vmatprep.subr.mxu0 0.0
  %715 = vmatpush1.msra.mxu0 0.0
  %716 = vmatprep.subr.mxu0 0.0
  %717 = vmatpush1.msra.mxu0 0.0
  %718 = vmatprep.subr.mxu0 0.0
  %719 = vmatpush1.msra.mxu0 0.0
  %720 = vmatprep.subr.mxu0 0.0
  %721 = vmatpush1.msra.mxu0 0.0
  %722 = vmatprep.subr.mxu0 0.0
  %723 = vmatpush1.msra.mxu0 0.0
  %724 = vmatprep.subr.mxu0 0.0
  %725 = vmatpush1.msra.mxu0 0.0
  %726 = vmatprep.subr.mxu0 0.0
  %727 = vmatpush1.msra.mxu0 0.0
  %728 = vmatprep.subr.mxu0 0.0
  %729 = vmatpush1.msra.mxu0 0.0
  %730 = vmatprep.subr.mxu0 0.0
  %731 = vmatpush1.msra.mxu0 0.0
  %732 = vmatprep.subr.mxu0 0.0
  %733 = vmatpush1.msra.mxu0 0.0
  %734 = vmatprep.subr.mxu0 0.0
  %735 = vmatpush1.msra.mxu0 0.0
  %736 = vmatprep.subr.mxu0 0.0
  %737 = vmatpush1.msra.mxu0 0.0
  %738 = vmatprep.subr.mxu0 0.0
  %739 = vmatpush1.msra.mxu0 0.0
  %740 = vmatprep.subr.mxu0 0.0
  %741 = vmatpush1.msra.mxu0 0.0
  %742 = vmatprep.subr.mxu0 0.0
  %743 = vmatpush1.msra.mxu0 0.0
  %744 = vmatprep.subr.mxu0 0.0
  %745 = vmatpush1.msra.mxu0 0.0
  %746 = vmatprep.subr.mxu0 0.0
  %747 = vmatpush1.msra.mxu0 0.0
  %748 = vmatprep.subr.mxu0 0.0
  %749 = vmatpush1.msra.mxu0 0.0
  %750 = vmatprep.subr.mxu0 0.0
  %751 = vmatpush1.msra.mxu0 0.0
  %752 = vmatprep.subr.mxu0 0.0
  %753 = vmatpush1.msra.mxu0 0.0
  %754 = vmatprep.subr.mxu0 0.0
  %755 = vmatpush1.msra.mxu0 0.0
  %756 = vmatprep.subr.mxu0 0.0
  %757 = vmatpush1.msra.mxu0 0.0
  %758 = vmatprep.subr.mxu0 0.0
  %759 = vmatpush1.msra.mxu0 0.0
  %760 = vmatprep.mubr.f32.mxu0 0.0
  %761 = vmatmul.mubr.f32.gmra.mrb[0].mxu0 %v694
  %v762 = vpop.f32.mrb[0].mxu0
  %v763 = vadd.f32 0.0, %v762
  %v764 = vpop.f32.mrb[0].mxu0
  %765 = vdwg.mxu0
  %774 = vrot.lane.b32.xlu0 %v412, 64
  %v775 = vpop.permute.xlu0 %774
  %776 = vrot.lane.b32.xlu0 %v413, 64
  %v777 = vpop.permute.xlu0 %776
  %778 = vrot.lane.b32.xlu0 %v414, 64
  %v779 = vpop.permute.xlu0 %778
  %780 = vrot.lane.b32.xlu0 %v415, 64
  %v781 = vpop.permute.xlu0 %780
  %782 = vrot.lane.b32.xlu0 %v416, 64
  %v783 = vpop.permute.xlu0 %782
  %784 = vrot.lane.b32.xlu0 %v417, 64
  %v785 = vpop.permute.xlu0 %784
  %786 = vrot.lane.b32.xlu0 %v418, 64
  %v787 = vpop.permute.xlu0 %786
  %788 = vrot.lane.b32.xlu0 %v419, 64
  %v789 = vpop.permute.xlu0 %788
  %v799 = vsel %vm648, %v660, 0
  %801 = vmatprep.subr.mxu0 0.0
  %802 = vmatpush1.msra.mxu0 %v775
  %803 = vmatprep.subr.mxu0 0.0
  %804 = vmatpush1.msra.mxu0 %v777
  %805 = vmatprep.subr.mxu0 0.0
  %806 = vmatpush1.msra.mxu0 %v779
  %807 = vmatprep.subr.mxu0 0.0
  %808 = vmatpush1.msra.mxu0 %v781
  %809 = vmatprep.subr.mxu0 0.0
  %810 = vmatpush1.msra.mxu0 %v783
  %811 = vmatprep.subr.mxu0 0.0
  %812 = vmatpush1.msra.mxu0 %v785
  %813 = vmatprep.subr.mxu0 0.0
  %814 = vmatpush1.msra.mxu0 %v787
  %815 = vmatprep.subr.mxu0 0.0
  %816 = vmatpush1.msra.mxu0 %v789
  %817 = vmatprep.subr.mxu0 0.0
  %818 = vmatpush1.msra.mxu0 0.0
  %819 = vmatprep.subr.mxu0 0.0
  %820 = vmatpush1.msra.mxu0 0.0
  %821 = vmatprep.subr.mxu0 0.0
  %822 = vmatpush1.msra.mxu0 0.0
  %823 = vmatprep.subr.mxu0 0.0
  %824 = vmatpush1.msra.mxu0 0.0
  %825 = vmatprep.subr.mxu0 0.0
  %826 = vmatpush1.msra.mxu0 0.0
  %827 = vmatprep.subr.mxu0 0.0
  %828 = vmatpush1.msra.mxu0 0.0
  %829 = vmatprep.subr.mxu0 0.0
  %830 = vmatpush1.msra.mxu0 0.0
  %831 = vmatprep.subr.mxu0 0.0
  %832 = vmatpush1.msra.mxu0 0.0
  %833 = vmatprep.subr.mxu0 0.0
  %834 = vmatpush1.msra.mxu0 0.0
  %835 = vmatprep.subr.mxu0 0.0
  %836 = vmatpush1.msra.mxu0 0.0
  %837 = vmatprep.subr.mxu0 0.0
  %838 = vmatpush1.msra.mxu0 0.0
  %839 = vmatprep.subr.mxu0 0.0
  %840 = vmatpush1.msra.mxu0 0.0
  %841 = vmatprep.subr.mxu0 0.0
  %842 = vmatpush1.msra.mxu0 0.0
  %843 = vmatprep.subr.mxu0 0.0
  %844 = vmatpush1.msra.mxu0 0.0
  %845 = vmatprep.subr.mxu0 0.0
  %846 = vmatpush1.msra.mxu0 0.0
  %847 = vmatprep.subr.mxu0 0.0
  %848 = vmatpush1.msra.mxu0 0.0
  %849 = vmatprep.subr.mxu0 0.0
  %850 = vmatpush1.msra.mxu0 0.0
  %851 = vmatprep.subr.mxu0 0.0
  %852 = vmatpush1.msra.mxu0 0.0
  %853 = vmatprep.subr.mxu0 0.0
  %854 = vmatpush1.msra.mxu0 0.0
  %855 = vmatprep.subr.mxu0 0.0
  %856 = vmatpush1.msra.mxu0 0.0
  %857 = vmatprep.subr.mxu0 0.0
  %858 = vmatpush1.msra.mxu0 0.0
  %859 = vmatprep.subr.mxu0 0.0
  %860 = vmatpush1.msra.mxu0 0.0
  %861 = vmatprep.subr.mxu0 0.0
  %862 = vmatpush1.msra.mxu0 0.0
  %863 = vmatprep.subr.mxu0 0.0
  %864 = vmatpush1.msra.mxu0 0.0
  %865 = vmatprep.mubr.f32.mxu0 0.0
  %866 = vmatmul.mubr.f32.gmra.mrb[0].mxu0 %v799
  %v867 = vpop.f32.mrb[0].mxu0
  %v868 = vadd.f32 0.0, %v867
  %v869 = vpop.f32.mrb[0].mxu0
  %870 = vdwg.mxu0
  %871 = vmatprep.subr.mxu0 0.0
  %872 = vmatpush1.msra.mxu0 %v132
  %873 = vmatprep.subr.mxu0 0.0
  %874 = vmatpush1.msra.mxu0 %v133
  %875 = vmatprep.subr.mxu0 0.0
  %876 = vmatpush1.msra.mxu0 %v134
  %877 = vmatprep.subr.mxu0 0.0
  %878 = vmatpush1.msra.mxu0 %v135
  %879 = vmatprep.subr.mxu0 0.0
  %880 = vmatpush1.msra.mxu0 %v136
  %881 = vmatprep.subr.mxu0 0.0
  %882 = vmatpush1.msra.mxu0 %v137
  %883 = vmatprep.subr.mxu0 0.0
  %884 = vmatpush1.msra.mxu0 %v138
  %885 = vmatprep.subr.mxu0 0.0
  %886 = vmatpush1.msra.mxu0 %v139
  %887 = vmatprep.subr.mxu0 0.0
  %888 = vmatpush1.msra.mxu0 0.0
  %889 = vmatprep.subr.mxu0 0.0
  %890 = vmatpush1.msra.mxu0 0.0
  %891 = vmatprep.subr.mxu0 0.0
  %892 = vmatpush1.msra.mxu0 0.0
  %893 = vmatprep.subr.mxu0 0.0
  %894 = vmatpush1.msra.mxu0 0.0
  %895 = vmatprep.subr.mxu0 0.0
  %896 = vmatpush1.msra.mxu0 0.0
  %897 = vmatprep.subr.mxu0 0.0
  %898 = vmatpush1.msra.mxu0 0.0
  %899 = vmatprep.subr.mxu0 0.0
  %900 = vmatpush1.msra.mxu0 0.0
  %901 = vmatprep.subr.mxu0 0.0
  %902 = vmatpush1.msra.mxu0 0.0
  %903 = vmatprep.subr.mxu0 0.0
  %904 = vmatpush1.msra.mxu0 0.0
  %905 = vmatprep.subr.mxu0 0.0
  %906 = vmatpush1.msra.mxu0 0.0
  %907 = vmatprep.subr.mxu0 0.0
  %908 = vmatpush1.msra.mxu0 0.0
  %909 = vmatprep.subr.mxu0 0.0
  %910 = vmatpush1.msra.mxu0 0.0
  %911 = vmatprep.subr.mxu0 0.0
  %912 = vmatpush1.msra.mxu0 0.0
  %913 = vmatprep.subr.mxu0 0.0
  %914 = vmatpush1.msra.mxu0 0.0
  %915 = vmatprep.subr.mxu0 0.0
  %916 = vmatpush1.msra.mxu0 0.0
  %917 = vmatprep.subr.mxu0 0.0
  %918 = vmatpush1.msra.mxu0 0.0
  %919 = vmatprep.subr.mxu0 0.0
  %920 = vmatpush1.msra.mxu0 0.0
  %921 = vmatprep.subr.mxu0 0.0
  %922 = vmatpush1.msra.mxu0 0.0
  %923 = vmatprep.subr.mxu0 0.0
  %924 = vmatpush1.msra.mxu0 0.0
  %925 = vmatprep.subr.mxu0 0.0
  %926 = vmatpush1.msra.mxu0 0.0
  %927 = vmatprep.subr.mxu0 0.0
  %928 = vmatpush1.msra.mxu0 0.0
  %929 = vmatprep.subr.mxu0 0.0
  %930 = vmatpush1.msra.mxu0 0.0
  %931 = vmatprep.subr.mxu0 0.0
  %932 = vmatpush1.msra.mxu0 0.0
  %933 = vmatprep.subr.mxu0 0.0
  %934 = vmatpush1.msra.mxu0 0.0
  %935 = vmatprep.mubr.f32.mxu0 0.0
  %936 = vmatmul.mubr.f32.gmra.mrb[0].mxu0 %v694
  %v937 = vpop.f32.mrb[0].mxu0
  %v938 = vadd.f32 0.0, %v937
  %v939 = vpop.f32.mrb[0].mxu0
  %940 = vmatprep.mubr.f32.mxu0 0.0
  %941 = vmatmul.mubr.f32.gmra.mrb[0].mxu0 %v799
  %v942 = vpop.f32.mrb[0].mxu0
  %v943 = vadd.f32 0.0, %v942
  %v944 = vpop.f32.mrb[0].mxu0
  %945 = vdwg.mxu0
  %v946 = vrcp.pop %v938
  %v947 = vmul.f32 %v763, %v946
  %v948 = vrcp.pop %v943
  %v949 = vmul.f32 %v868, %v948
  %v950 = vld [vmem:[%s15] sm:$0xff]
  %v951 = vld [vmem:[%s15 + $0x8] sm:$0xff]
  %v952 = vld [vmem:[%s15 + $0x10] sm:$0xff]
  %v953 = vld [vmem:[%s15 + $0x18] sm:$0xff]
  %v954 = vld [vmem:[%s17] sm:$0x1]
  %v956 = vlaneseq
  %v957 = vshrl.u32 %v956, 7
  %v958 = vsub.s32 0, %v957
  %v959 = vrot.slane %v954, %v958
  %v962 = vsel %vm250, %v947, 0
  %v965 = vsel %vm250, %v949, 0
  %967 = vmatprep.subr.mxu0 0.0
  %968 = vmatpush1.msra.mxu0 %v950
  %969 = vmatprep.subr.mxu0 0.0
  %970 = vmatpush1.msra.mxu0 %v951
  %971 = vmatprep.subr.mxu0 0.0
  %972 = vmatpush1.msra.mxu0 %v952
  %973 = vmatprep.subr.mxu0 0.0
  %974 = vmatpush1.msra.mxu0 %v953
  %975 = vmatprep.subr.mxu0 0.0
  %976 = vmatpush1.msra.mxu0 0.0
  %977 = vmatprep.subr.mxu0 0.0
  %978 = vmatpush1.msra.mxu0 0.0
  %979 = vmatprep.subr.mxu0 0.0
  %980 = vmatpush1.msra.mxu0 0.0
  %981 = vmatprep.subr.mxu0 0.0
  %982 = vmatpush1.msra.mxu0 0.0
  %983 = vmatprep.subr.mxu0 0.0
  %984 = vmatpush1.msra.mxu0 0.0
  %985 = vmatprep.subr.mxu0 0.0
  %986 = vmatpush1.msra.mxu0 0.0
  %987 = vmatprep.subr.mxu0 0.0
  %988 = vmatpush1.msra.mxu0 0.0
  %989 = vmatprep.subr.mxu0 0.0
  %990 = vmatpush1.msra.mxu0 0.0
  %991 = vmatprep.subr.mxu0 0.0
  %992 = vmatpush1.msra.mxu0 0.0
  %993 = vmatprep.subr.mxu0 0.0
  %994 = vmatpush1.msra.mxu0 0.0
  %995 = vmatprep.subr.mxu0 0.0
  %996 = vmatpush1.msra.mxu0 0.0
  %997 = vmatprep.subr.mxu0 0.0
  %998 = vmatpush1.msra.mxu0 0.0
  %999 = vmatprep.subr.mxu0 0.0
  %1000 = vmatpush1.msra.mxu0 0.0
  %1001 = vmatprep.subr.mxu0 0.0
  %1002 = vmatpush1.msra.mxu0 0.0
  %1003 = vmatprep.subr.mxu0 0.0
  %1004 = vmatpush1.msra.mxu0 0.0
  %1005 = vmatprep.subr.mxu0 0.0
  %1006 = vmatpush1.msra.mxu0 0.0
  %1007 = vmatprep.subr.mxu0 0.0
  %1008 = vmatpush1.msra.mxu0 0.0
  %1009 = vmatprep.subr.mxu0 0.0
  %1010 = vmatpush1.msra.mxu0 0.0
  %1011 = vmatprep.subr.mxu0 0.0
  %1012 = vmatpush1.msra.mxu0 0.0
  %1013 = vmatprep.subr.mxu0 0.0
  %1014 = vmatpush1.msra.mxu0 0.0
  %1015 = vmatprep.subr.mxu0 0.0
  %1016 = vmatpush1.msra.mxu0 0.0
  %1017 = vmatprep.subr.mxu0 0.0
  %1018 = vmatpush1.msra.mxu0 0.0
  %1019 = vmatprep.subr.mxu0 0.0
  %1020 = vmatpush1.msra.mxu0 0.0
  %1021 = vmatprep.subr.mxu0 0.0
  %1022 = vmatpush1.msra.mxu0 0.0
  %1023 = vmatprep.subr.mxu0 0.0
  %1024 = vmatpush1.msra.mxu0 0.0
  %1025 = vmatprep.subr.mxu0 0.0
  %1026 = vmatpush1.msra.mxu0 0.0
  %1027 = vmatprep.subr.mxu0 0.0
  %1028 = vmatpush1.msra.mxu0 0.0
  %1029 = vmatprep.subr.mxu0 0.0
  %1030 = vmatpush1.msra.mxu0 0.0
  %1031 = vmatprep.mubr.f32.mxu0 0.0
  %1032 = vmatmul.mubr.f32.gmra.mrb[0].mxu0 %v962
  %v1033 = vpop.f32.mrb[0].mxu0
  %v1034 = vadd.f32 %v959, %v1033
  %v1035 = vpop.f32.mrb[0].mxu0
  %1036 = vmatprep.mubr.f32.mxu0 0.0
  %1037 = vmatmul.mubr.f32.gmra.mrb[0].mxu0 %v965
  %v1038 = vpop.f32.mrb[0].mxu0
  %v1039 = vadd.f32 %v959, %v1038
  %v1040 = vpop.f32.mrb[0].mxu0
  %1041 = vdwg.mxu0
  %v1042 = vadd.f32 %v237, %v1034
  %v1043 = vadd.f32 %v238, %v1039
  %v1044 = vld [vmem:[%s19] sm:$0x1]
  %v1045 = vld [vmem:[%s21] sm:$0x1]
  %v1046 = vsel %vm250, %v1042, 0.0
  %1047 = vadd.xlane.f32.xlu0 %v1046
  %v1048 = vpop.xlane.xlu0 %1047
  %v1049 = vsel %vm250, %v1043, 0.0
  %1050 = vadd.xlane.f32.xlu0 %v1049
  %v1051 = vpop.xlane.xlu0 %1050
  %v1052 = vrcp.pop 32.0
  %v1053 = vmul.f32 %v1048, %v1052
  %v1054 = vmul.f32 %v1051, %v1052
  %v1055 = vsub.f32 %v1042, %v1053
  %v1056 = vsub.f32 %v1043, %v1054
  %v1057 = vmul.f32 %v1055, %v1055
  %v1058 = vmul.f32 %v1056, %v1056
  %v1059 = vsel %vm250, %v1057, 0.0
  %1060 = vadd.xlane.f32.xlu0 %v1059
  %v1061 = vpop.xlane.xlu0 %1060
  %v1062 = vsel %vm250, %v1058, 0.0
  %1063 = vadd.xlane.f32.xlu0 %v1062
  %v1064 = vpop.xlane.xlu0 %1063
  %v1065 = vmul.f32 %v1061, %v1052
  %v1066 = vmul.f32 %v1064, %v1052
  %v1067 = vadd.f32 %v1065, 1e-05
  %v1068 = vadd.f32 %v1066, 1e-05
  %v1069 = vrsqrt.pop %v1067
  %v1070 = vrsqrt.pop %v1068
  %v1071 = vmul.f32 %v1055, %v1069
  %v1072 = vmul.f32 %v1056, %v1070
  %v1074 = vlaneseq
  %v1075 = vshrl.u32 %v1074, 7
  %v1076 = vsub.s32 0, %v1075
  %v1077 = vrot.slane %v1044, %v1076
  %v1079 = vmul.f32 %v1071, %v1077
  %v1080 = vmul.f32 %v1072, %v1077
  %v1082 = vlaneseq
  %v1083 = vshrl.u32 %v1082, 7
  %v1084 = vsub.s32 0, %v1083
  %v1085 = vrot.slane %v1045, %v1084
  %v1087 = vadd.f32 %v1079, %v1085
  %v1088 = vadd.f32 %v1080, %v1085
  %v1089 = vld [vmem:[%s23] sm:$0xff]
  %v1090 = vld [vmem:[%s23 + $0x8] sm:$0xff]
  %v1091 = vld [vmem:[%s23 + $0x10] sm:$0xff]
  %v1092 = vld [vmem:[%s23 + $0x18] sm:$0xff]
  %v1093 = vld [vmem:[%s23 + $0x80] sm:$0xff]
  %v1094 = vld [vmem:[%s23 + $0x88] sm:$0xff]
  %v1095 = vld [vmem:[%s23 + $0x90] sm:$0xff]
  %v1096 = vld [vmem:[%s23 + $0x98] sm:$0xff]
  %v1097 = vld [vmem:[%s23 + $0x100] sm:$0xff]
  %v1098 = vld [vmem:[%s23 + $0x108] sm:$0xff]
  %v1099 = vld [vmem:[%s23 + $0x110] sm:$0xff]
  %v1100 = vld [vmem:[%s23 + $0x118] sm:$0xff]
  %v1101 = vld [vmem:[%s23 + $0x180] sm:$0xff]
  %v1102 = vld [vmem:[%s23 + $0x188] sm:$0xff]
  %v1103 = vld [vmem:[%s23 + $0x190] sm:$0xff]
  %v1104 = vld [vmem:[%s23 + $0x198] sm:$0xff]
  %v1105 = vld [vmem:[%s25] sm:$0xf]
  %v1107 = vlaneseq
  %v1108 = vshrl.u32 %v1107, 7
  %v1109 = vsub.s32 0, %v1108
  %v1110 = vrot.slane %v1105, %v1109
  %v1111 = vlaneseq
  %v1112 = vshrl.u32 %v1111, 7
  %v1113 = vsub.s32 1, %v1112
  %v1114 = vrot.slane %v1105, %v1113
  %v1115 = vlaneseq
  %v1116 = vshrl.u32 %v1115, 7
  %v1117 = vsub.s32 2, %v1116
  %v1118 = vrot.slane %v1105, %v1117
  %v1119 = vlaneseq
  %v1120 = vshrl.u32 %v1119, 7
  %v1121 = vsub.s32 3, %v1120
  %v1122 = vrot.slane %v1105, %v1121
  %v1128 = vsel %vm250, %v1087, 0
  %v1131 = vsel %vm250, %v1088, 0
  %1133 = vmatprep.subr.mxu0 %v1090
  %1134 = vmatpush1.msra.mxu0 %v1089
  %1135 = vmatprep.subr.mxu0 %v1094
  %1136 = vmatpush1.msra.mxu0 %v1093
  %1137 = vmatprep.subr.mxu0 %v1098
  %1138 = vmatpush1.msra.mxu0 %v1097
  %1139 = vmatprep.subr.mxu0 %v1102
  %1140 = vmatpush1.msra.mxu0 %v1101
  %1141 = vmatprep.subr.mxu0 0.0
  %1142 = vmatpush1.msra.mxu0 0.0
  %1143 = vmatprep.subr.mxu0 0.0
  %1144 = vmatpush1.msra.mxu0 0.0
  %1145 = vmatprep.subr.mxu0 0.0
  %1146 = vmatpush1.msra.mxu0 0.0
  %1147 = vmatprep.subr.mxu0 0.0
  %1148 = vmatpush1.msra.mxu0 0.0
  %1149 = vmatprep.subr.mxu0 0.0
  %1150 = vmatpush1.msra.mxu0 0.0
  %1151 = vmatprep.subr.mxu0 0.0
  %1152 = vmatpush1.msra.mxu0 0.0
  %1153 = vmatprep.subr.mxu0 0.0
  %1154 = vmatpush1.msra.mxu0 0.0
  %1155 = vmatprep.subr.mxu0 0.0
  %1156 = vmatpush1.msra.mxu0 0.0
  %1157 = vmatprep.subr.mxu0 0.0
  %1158 = vmatpush1.msra.mxu0 0.0
  %1159 = vmatprep.subr.mxu0 0.0
  %1160 = vmatpush1.msra.mxu0 0.0
  %1161 = vmatprep.subr.mxu0 0.0
  %1162 = vmatpush1.msra.mxu0 0.0
  %1163 = vmatprep.subr.mxu0 0.0
  %1164 = vmatpush1.msra.mxu0 0.0
  %1165 = vmatprep.subr.mxu0 0.0
  %1166 = vmatpush1.msra.mxu0 0.0
  %1167 = vmatprep.subr.mxu0 0.0
  %1168 = vmatpush1.msra.mxu0 0.0
  %1169 = vmatprep.subr.mxu0 0.0
  %1170 = vmatpush1.msra.mxu0 0.0
  %1171 = vmatprep.subr.mxu0 0.0
  %1172 = vmatpush1.msra.mxu0 0.0
  %1173 = vmatprep.subr.mxu0 0.0
  %1174 = vmatpush1.msra.mxu0 0.0
  %1175 = vmatprep.subr.mxu0 0.0
  %1176 = vmatpush1.msra.mxu0 0.0
  %1177 = vmatprep.subr.mxu0 0.0
  %1178 = vmatpush1.msra.mxu0 0.0
  %1179 = vmatprep.subr.mxu0 0.0
  %1180 = vmatpush1.msra.mxu0 0.0
  %1181 = vmatprep.subr.mxu0 0.0
  %1182 = vmatpush1.msra.mxu0 0.0
  %1183 = vmatprep.subr.mxu0 0.0
  %1184 = vmatpush1.msra.mxu0 0.0
  %1185 = vmatprep.subr.mxu0 0.0
  %1186 = vmatpush1.msra.mxu0 0.0
  %1187 = vmatprep.subr.mxu0 0.0
  %1188 = vmatpush1.msra.mxu0 0.0
  %1189 = vmatprep.subr.mxu0 0.0
  %1190 = vmatpush1.msra.mxu0 0.0
  %1191 = vmatprep.subr.mxu0 0.0
  %1192 = vmatpush1.msra.mxu0 0.0
  %1193 = vmatprep.subr.mxu0 0.0
  %1194 = vmatpush1.msra.mxu0 0.0
  %1195 = vmatprep.subr.mxu0 0.0
  %1196 = vmatpush1.msra.mxu0 0.0
  %1197 = vmatprep.mubr.f32.mxu0 0.0
  %1198 = vmatmul.mubr.f32.gmra.mrb[0].mxu0 %v1128
  %v1199 = vpop.f32.mrb[0].mxu0
  %v1200 = vadd.f32 %v1110, %v1199
  %v1201 = vpop.f32.mrb[0].mxu0
  %v1202 = vadd.f32 %v1114, %v1201
  %1203 = vmatprep.mubr.f32.mxu0 0.0
  %1204 = vmatmul.mubr.f32.gmra.mrb[0].mxu0 %v1131
  %v1205 = vpop.f32.mrb[0].mxu0
  %v1206 = vadd.f32 %v1110, %v1205
  %v1207 = vpop.f32.mrb[0].mxu0
  %v1208 = vadd.f32 %v1114, %v1207
  %1209 = vdwg.mxu0
  %1210 = vmatprep.subr.mxu0 %v1092
  %1211 = vmatpush1.msra.mxu0 %v1091
  %1212 = vmatprep.subr.mxu0 %v1096
  %1213 = vmatpush1.msra.mxu0 %v1095
  %1214 = vmatprep.subr.mxu0 %v1100
  %1215 = vmatpush1.msra.mxu0 %v1099
  %1216 = vmatprep.subr.mxu0 %v1104
  %1217 = vmatpush1.msra.mxu0 %v1103
  %1218 = vmatprep.subr.mxu0 0.0
  %1219 = vmatpush1.msra.mxu0 0.0
  %1220 = vmatprep.subr.mxu0 0.0
  %1221 = vmatpush1.msra.mxu0 0.0
  %1222 = vmatprep.subr.mxu0 0.0
  %1223 = vmatpush1.msra.mxu0 0.0
  %1224 = vmatprep.subr.mxu0 0.0
  %1225 = vmatpush1.msra.mxu0 0.0
  %1226 = vmatprep.subr.mxu0 0.0
  %1227 = vmatpush1.msra.mxu0 0.0
  %1228 = vmatprep.subr.mxu0 0.0
  %1229 = vmatpush1.msra.mxu0 0.0
  %1230 = vmatprep.subr.mxu0 0.0
  %1231 = vmatpush1.msra.mxu0 0.0
  %1232 = vmatprep.subr.mxu0 0.0
  %1233 = vmatpush1.msra.mxu0 0.0
  %1234 = vmatprep.subr.mxu0 0.0
  %1235 = vmatpush1.msra.mxu0 0.0
  %1236 = vmatprep.subr.mxu0 0.0
  %1237 = vmatpush1.msra.mxu0 0.0
  %1238 = vmatprep.subr.mxu0 0.0
  %1239 = vmatpush1.msra.mxu0 0.0
  %1240 = vmatprep.subr.mxu0 0.0
  %1241 = vmatpush1.msra.mxu0 0.0
  %1242 = vmatprep.subr.mxu0 0.0
  %1243 = vmatpush1.msra.mxu0 0.0
  %1244 = vmatprep.subr.mxu0 0.0
  %1245 = vmatpush1.msra.mxu0 0.0
  %1246 = vmatprep.subr.mxu0 0.0
  %1247 = vmatpush1.msra.mxu0 0.0
  %1248 = vmatprep.subr.mxu0 0.0
  %1249 = vmatpush1.msra.mxu0 0.0
  %1250 = vmatprep.subr.mxu0 0.0
  %1251 = vmatpush1.msra.mxu0 0.0
  %1252 = vmatprep.subr.mxu0 0.0
  %1253 = vmatpush1.msra.mxu0 0.0
  %1254 = vmatprep.subr.mxu0 0.0
  %1255 = vmatpush1.msra.mxu0 0.0
  %1256 = vmatprep.subr.mxu0 0.0
  %1257 = vmatpush1.msra.mxu0 0.0
  %1258 = vmatprep.subr.mxu0 0.0
  %1259 = vmatpush1.msra.mxu0 0.0
  %1260 = vmatprep.subr.mxu0 0.0
  %1261 = vmatpush1.msra.mxu0 0.0
  %1262 = vmatprep.subr.mxu0 0.0
  %1263 = vmatpush1.msra.mxu0 0.0
  %1264 = vmatprep.subr.mxu0 0.0
  %1265 = vmatpush1.msra.mxu0 0.0
  %1266 = vmatprep.subr.mxu0 0.0
  %1267 = vmatpush1.msra.mxu0 0.0
  %1268 = vmatprep.subr.mxu0 0.0
  %1269 = vmatpush1.msra.mxu0 0.0
  %1270 = vmatprep.subr.mxu0 0.0
  %1271 = vmatpush1.msra.mxu0 0.0
  %1272 = vmatprep.subr.mxu0 0.0
  %1273 = vmatpush1.msra.mxu0 0.0
  %1274 = vmatprep.mubr.f32.mxu0 0.0
  %1275 = vmatmul.mubr.f32.gmra.mrb[0].mxu0 %v1128
  %v1276 = vpop.f32.mrb[0].mxu0
  %v1277 = vadd.f32 %v1118, %v1276
  %v1278 = vpop.f32.mrb[0].mxu0
  %v1279 = vadd.f32 %v1122, %v1278
  %1280 = vmatprep.mubr.f32.mxu0 0.0
  %1281 = vmatmul.mubr.f32.gmra.mrb[0].mxu0 %v1131
  %v1282 = vpop.f32.mrb[0].mxu0
  %v1283 = vadd.f32 %v1118, %v1282
  %v1284 = vpop.f32.mrb[0].mxu0
  %v1285 = vadd.f32 %v1122, %v1284
  %1286 = vdwg.mxu0
  %v1287 = vmax.f32 %v1200, 0.0
  %v1288 = vmax.f32 %v1202, 0.0
  %v1289 = vmax.f32 %v1277, 0.0
  %v1290 = vmax.f32 %v1279, 0.0
  %v1291 = vmax.f32 %v1206, 0.0
  %v1292 = vmax.f32 %v1208, 0.0
  %v1293 = vmax.f32 %v1283, 0.0
  %v1294 = vmax.f32 %v1285, 0.0
  %v1295 = vld [vmem:[%s27] sm:$0xff]
  %v1296 = vld [vmem:[%s27 + $0x8] sm:$0xff]
  %v1297 = vld [vmem:[%s27 + $0x10] sm:$0xff]
  %v1298 = vld [vmem:[%s27 + $0x18] sm:$0xff]
  %v1299 = vld [vmem:[%s27 + $0x20] sm:$0xff]
  %v1300 = vld [vmem:[%s27 + $0x28] sm:$0xff]
  %v1301 = vld [vmem:[%s27 + $0x30] sm:$0xff]
  %v1302 = vld [vmem:[%s27 + $0x38] sm:$0xff]
  %v1303 = vld [vmem:[%s27 + $0x40] sm:$0xff]
  %v1304 = vld [vmem:[%s27 + $0x48] sm:$0xff]
  %v1305 = vld [vmem:[%s27 + $0x50] sm:$0xff]
  %v1306 = vld [vmem:[%s27 + $0x58] sm:$0xff]
  %v1307 = vld [vmem:[%s27 + $0x60] sm:$0xff]
  %v1308 = vld [vmem:[%s27 + $0x68] sm:$0xff]
  %v1309 = vld [vmem:[%s27 + $0x70] sm:$0xff]
  %v1310 = vld [vmem:[%s27 + $0x78] sm:$0xff]
  %v1311 = vld [vmem:[%s27 + $0x80] sm:$0xff]
  %v1312 = vld [vmem:[%s27 + $0x88] sm:$0xff]
  %v1313 = vld [vmem:[%s27 + $0x90] sm:$0xff]
  %v1314 = vld [vmem:[%s27 + $0x98] sm:$0xff]
  %v1315 = vld [vmem:[%s27 + $0xa0] sm:$0xff]
  %v1316 = vld [vmem:[%s27 + $0xa8] sm:$0xff]
  %v1317 = vld [vmem:[%s27 + $0xb0] sm:$0xff]
  %v1318 = vld [vmem:[%s27 + $0xb8] sm:$0xff]
  %v1319 = vld [vmem:[%s27 + $0xc0] sm:$0xff]
  %v1320 = vld [vmem:[%s27 + $0xc8] sm:$0xff]
  %v1321 = vld [vmem:[%s27 + $0xd0] sm:$0xff]
  %v1322 = vld [vmem:[%s27 + $0xd8] sm:$0xff]
  %v1323 = vld [vmem:[%s27 + $0xe0] sm:$0xff]
  %v1324 = vld [vmem:[%s27 + $0xe8] sm:$0xff]
  %v1325 = vld [vmem:[%s27 + $0xf0] sm:$0xff]
  %v1326 = vld [vmem:[%s27 + $0xf8] sm:$0xff]
  %v1327 = vld [vmem:[%s27 + $0x100] sm:$0xff]
  %v1328 = vld [vmem:[%s27 + $0x108] sm:$0xff]
  %v1329 = vld [vmem:[%s27 + $0x110] sm:$0xff]
  %v1330 = vld [vmem:[%s27 + $0x118] sm:$0xff]
  %v1331 = vld [vmem:[%s27 + $0x120] sm:$0xff]
  %v1332 = vld [vmem:[%s27 + $0x128] sm:$0xff]
  %v1333 = vld [vmem:[%s27 + $0x130] sm:$0xff]
  %v1334 = vld [vmem:[%s27 + $0x138] sm:$0xff]
  %v1335 = vld [vmem:[%s27 + $0x140] sm:$0xff]
  %v1336 = vld [vmem:[%s27 + $0x148] sm:$0xff]
  %v1337 = vld [vmem:[%s27 + $0x150] sm:$0xff]
  %v1338 = vld [vmem:[%s27 + $0x158] sm:$0xff]
  %v1339 = vld [vmem:[%s27 + $0x160] sm:$0xff]
  %v1340 = vld [vmem:[%s27 + $0x168] sm:$0xff]
  %v1341 = vld [vmem:[%s27 + $0x170] sm:$0xff]
  %v1342 = vld [vmem:[%s27 + $0x178] sm:$0xff]
  %v1343 = vld [vmem:[%s27 + $0x180] sm:$0xff]
  %v1344 = vld [vmem:[%s27 + $0x188] sm:$0xff]
  %v1345 = vld [vmem:[%s27 + $0x190] sm:$0xff]
  %v1346 = vld [vmem:[%s27 + $0x198] sm:$0xff]
  %v1347 = vld [vmem:[%s27 + $0x1a0] sm:$0xff]
  %v1348 = vld [vmem:[%s27 + $0x1a8] sm:$0xff]
  %v1349 = vld [vmem:[%s27 + $0x1b0] sm:$0xff]
  %v1350 = vld [vmem:[%s27 + $0x1b8] sm:$0xff]
  %v1351 = vld [vmem:[%s27 + $0x1c0] sm:$0xff]
  %v1352 = vld [vmem:[%s27 + $0x1c8] sm:$0xff]
  %v1353 = vld [vmem:[%s27 + $0x1d0] sm:$0xff]
  %v1354 = vld [vmem:[%s27 + $0x1d8] sm:$0xff]
  %v1355 = vld [vmem:[%s27 + $0x1e0] sm:$0xff]
  %v1356 = vld [vmem:[%s27 + $0x1e8] sm:$0xff]
  %v1357 = vld [vmem:[%s27 + $0x1f0] sm:$0xff]
  %v1358 = vld [vmem:[%s27 + $0x1f8] sm:$0xff]
  %v1359 = vld [vmem:[%s23 + $0x20] sm:$0xff]
  %v1360 = vld [vmem:[%s23 + $0x28] sm:$0xff]
  %v1361 = vld [vmem:[%s23 + $0x30] sm:$0xff]
  %v1362 = vld [vmem:[%s23 + $0x38] sm:$0xff]
  %v1363 = vld [vmem:[%s23 + $0xa0] sm:$0xff]
  %v1364 = vld [vmem:[%s23 + $0xa8] sm:$0xff]
  %v1365 = vld [vmem:[%s23 + $0xb0] sm:$0xff]
  %v1366 = vld [vmem:[%s23 + $0xb8] sm:$0xff]
  %v1367 = vld [vmem:[%s23 + $0x120] sm:$0xff]
  %v1368 = vld [vmem:[%s23 + $0x128] sm:$0xff]
  %v1369 = vld [vmem:[%s23 + $0x130] sm:$0xff]
  %v1370 = vld [vmem:[%s23 + $0x138] sm:$0xff]
  %v1371 = vld [vmem:[%s23 + $0x1a0] sm:$0xff]
  %v1372 = vld [vmem:[%s23 + $0x1a8] sm:$0xff]
  %v1373 = vld [vmem:[%s23 + $0x1b0] sm:$0xff]
  %v1374 = vld [vmem:[%s23 + $0x1b8] sm:$0xff]
  %v1375 = vld [vmem:[%s25 + $0x4] sm:$0xf]
  %v1377 = vlaneseq
  %v1378 = vshrl.u32 %v1377, 7
  %v1379 = vsub.s32 0, %v1378
  %v1380 = vrot.slane %v1375, %v1379
  %v1381 = vlaneseq
  %v1382 = vshrl.u32 %v1381, 7
  %v1383 = vsub.s32 1, %v1382
  %v1384 = vrot.slane %v1375, %v1383
  %v1385 = vlaneseq
  %v1386 = vshrl.u32 %v1385, 7
  %v1387 = vsub.s32 2, %v1386
  %v1388 = vrot.slane %v1375, %v1387
  %v1389 = vlaneseq
  %v1390 = vshrl.u32 %v1389, 7
  %v1391 = vsub.s32 3, %v1390
  %v1392 = vrot.slane %v1375, %v1391
  %1397 = vmatprep.subr.mxu0 %v1360
  %1398 = vmatpush1.msra.mxu0 %v1359
  %1399 = vmatprep.subr.mxu0 %v1364
  %1400 = vmatpush1.msra.mxu0 %v1363
  %1401 = vmatprep.subr.mxu0 %v1368
  %1402 = vmatpush1.msra.mxu0 %v1367
  %1403 = vmatprep.subr.mxu0 %v1372
  %1404 = vmatpush1.msra.mxu0 %v1371
  %1405 = vmatprep.subr.mxu0 0.0
  %1406 = vmatpush1.msra.mxu0 0.0
  %1407 = vmatprep.subr.mxu0 0.0
  %1408 = vmatpush1.msra.mxu0 0.0
  %1409 = vmatprep.subr.mxu0 0.0
  %1410 = vmatpush1.msra.mxu0 0.0
  %1411 = vmatprep.subr.mxu0 0.0
  %1412 = vmatpush1.msra.mxu0 0.0
  %1413 = vmatprep.subr.mxu0 0.0
  %1414 = vmatpush1.msra.mxu0 0.0
  %1415 = vmatprep.subr.mxu0 0.0
  %1416 = vmatpush1.msra.mxu0 0.0
  %1417 = vmatprep.subr.mxu0 0.0
  %1418 = vmatpush1.msra.mxu0 0.0
  %1419 = vmatprep.subr.mxu0 0.0
  %1420 = vmatpush1.msra.mxu0 0.0
  %1421 = vmatprep.subr.mxu0 0.0
  %1422 = vmatpush1.msra.mxu0 0.0
  %1423 = vmatprep.subr.mxu0 0.0
  %1424 = vmatpush1.msra.mxu0 0.0
  %1425 = vmatprep.subr.mxu0 0.0
  %1426 = vmatpush1.msra.mxu0 0.0
  %1427 = vmatprep.subr.mxu0 0.0
  %1428 = vmatpush1.msra.mxu0 0.0
  %1429 = vmatprep.subr.mxu0 0.0
  %1430 = vmatpush1.msra.mxu0 0.0
  %1431 = vmatprep.subr.mxu0 0.0
  %1432 = vmatpush1.msra.mxu0 0.0
  %1433 = vmatprep.subr.mxu0 0.0
  %1434 = vmatpush1.msra.mxu0 0.0
  %1435 = vmatprep.subr.mxu0 0.0
  %1436 = vmatpush1.msra.mxu0 0.0
  %1437 = vmatprep.subr.mxu0 0.0
  %1438 = vmatpush1.msra.mxu0 0.0
  %1439 = vmatprep.subr.mxu0 0.0
  %1440 = vmatpush1.msra.mxu0 0.0
  %1441 = vmatprep.subr.mxu0 0.0
  %1442 = vmatpush1.msra.mxu0 0.0
  %1443 = vmatprep.subr.mxu0 0.0
  %1444 = vmatpush1.msra.mxu0 0.0
  %1445 = vmatprep.subr.mxu0 0.0
  %1446 = vmatpush1.msra.mxu0 0.0
  %1447 = vmatprep.subr.mxu0 0.0
  %1448 = vmatpush1.msra.mxu0 0.0
  %1449 = vmatprep.subr.mxu0 0.0
  %1450 = vmatpush1.msra.mxu0 0.0
  %1451 = vmatprep.subr.mxu0 0.0
  %1452 = vmatpush1.msra.mxu0 0.0
  %1453 = vmatprep.subr.mxu0 0.0
  %1454 = vmatpush1.msra.mxu0 0.0
  %1455 = vmatprep.subr.mxu0 0.0
  %1456 = vmatpush1.msra.mxu0 0.0
  %1457 = vmatprep.subr.mxu0 0.0
  %1458 = vmatpush1.msra.mxu0 0.0
  %1459 = vmatprep.subr.mxu0 0.0
  %1460 = vmatpush1.msra.mxu0 0.0
  %1461 = vmatprep.mubr.f32.mxu0 0.0
  %1462 = vmatmul.mubr.f32.gmra.mrb[0].mxu0 %v1128
  %v1463 = vpop.f32.mrb[0].mxu0
  %v1464 = vadd.f32 %v1380, %v1463
  %v1465 = vpop.f32.mrb[0].mxu0
  %v1466 = vadd.f32 %v1384, %v1465
  %1467 = vmatprep.mubr.f32.mxu0 0.0
  %1468 = vmatmul.mubr.f32.gmra.mrb[0].mxu0 %v1131
  %v1469 = vpop.f32.mrb[0].mxu0
  %v1470 = vadd.f32 %v1380, %v1469
  %v1471 = vpop.f32.mrb[0].mxu0
  %v1472 = vadd.f32 %v1384, %v1471
  %1473 = vdwg.mxu0
  %1474 = vmatprep.subr.mxu0 %v1362
  %1475 = vmatpush1.msra.mxu0 %v1361
  %1476 = vmatprep.subr.mxu0 %v1366
  %1477 = vmatpush1.msra.mxu0 %v1365
  %1478 = vmatprep.subr.mxu0 %v1370
  %1479 = vmatpush1.msra.mxu0 %v1369
  %1480 = vmatprep.subr.mxu0 %v1374
  %1481 = vmatpush1.msra.mxu0 %v1373
  %1482 = vmatprep.subr.mxu0 0.0
  %1483 = vmatpush1.msra.mxu0 0.0
  %1484 = vmatprep.subr.mxu0 0.0
  %1485 = vmatpush1.msra.mxu0 0.0
  %1486 = vmatprep.subr.mxu0 0.0
  %1487 = vmatpush1.msra.mxu0 0.0
  %1488 = vmatprep.subr.mxu0 0.0
  %1489 = vmatpush1.msra.mxu0 0.0
  %1490 = vmatprep.subr.mxu0 0.0
  %1491 = vmatpush1.msra.mxu0 0.0
  %1492 = vmatprep.subr.mxu0 0.0
  %1493 = vmatpush1.msra.mxu0 0.0
  %1494 = vmatprep.subr.mxu0 0.0
  %1495 = vmatpush1.msra.mxu0 0.0
  %1496 = vmatprep.subr.mxu0 0.0
  %1497 = vmatpush1.msra.mxu0 0.0
  %1498 = vmatprep.subr.mxu0 0.0
  %1499 = vmatpush1.msra.mxu0 0.0
  %1500 = vmatprep.subr.mxu0 0.0
  %1501 = vmatpush1.msra.mxu0 0.0
  %1502 = vmatprep.subr.mxu0 0.0
  %1503 = vmatpush1.msra.mxu0 0.0
  %1504 = vmatprep.subr.mxu0 0.0
  %1505 = vmatpush1.msra.mxu0 0.0
  %1506 = vmatprep.subr.mxu0 0.0
  %1507 = vmatpush1.msra.mxu0 0.0
  %1508 = vmatprep.subr.mxu0 0.0
  %1509 = vmatpush1.msra.mxu0 0.0
  %1510 = vmatprep.subr.mxu0 0.0
  %1511 = vmatpush1.msra.mxu0 0.0
  %1512 = vmatprep.subr.mxu0 0.0
  %1513 = vmatpush1.msra.mxu0 0.0
  %1514 = vmatprep.subr.mxu0 0.0
  %1515 = vmatpush1.msra.mxu0 0.0
  %1516 = vmatprep.subr.mxu0 0.0
  %1517 = vmatpush1.msra.mxu0 0.0
  %1518 = vmatprep.subr.mxu0 0.0
  %1519 = vmatpush1.msra.mxu0 0.0
  %1520 = vmatprep.subr.mxu0 0.0
  %1521 = vmatpush1.msra.mxu0 0.0
  %1522 = vmatprep.subr.mxu0 0.0
  %1523 = vmatpush1.msra.mxu0 0.0
  %1524 = vmatprep.subr.mxu0 0.0
  %1525 = vmatpush1.msra.mxu0 0.0
  %1526 = vmatprep.subr.mxu0 0.0
  %1527 = vmatpush1.msra.mxu0 0.0
  %1528 = vmatprep.subr.mxu0 0.0
  %1529 = vmatpush1.msra.mxu0 0.0
  %1530 = vmatprep.subr.mxu0 0.0
  %1531 = vmatpush1.msra.mxu0 0.0
  %1532 = vmatprep.subr.mxu0 0.0
  %1533 = vmatpush1.msra.mxu0 0.0
  %1534 = vmatprep.subr.mxu0 0.0
  %1535 = vmatpush1.msra.mxu0 0.0
  %1536 = vmatprep.subr.mxu0 0.0
  %1537 = vmatpush1.msra.mxu0 0.0
  %1538 = vmatprep.mubr.f32.mxu0 0.0
  %1539 = vmatmul.mubr.f32.gmra.mrb[0].mxu0 %v1128
  %v1540 = vpop.f32.mrb[0].mxu0
  %v1541 = vadd.f32 %v1388, %v1540
  %v1542 = vpop.f32.mrb[0].mxu0
  %v1543 = vadd.f32 %v1392, %v1542
  %1544 = vmatprep.mubr.f32.mxu0 0.0
  %1545 = vmatmul.mubr.f32.gmra.mrb[0].mxu0 %v1131
  %v1546 = vpop.f32.mrb[0].mxu0
  %v1547 = vadd.f32 %v1388, %v1546
  %v1548 = vpop.f32.mrb[0].mxu0
  %v1549 = vadd.f32 %v1392, %v1548
  %1550 = vdwg.mxu0
  %v1551 = vmax.f32 %v1464, 0.0
  %v1552 = vmax.f32 %v1466, 0.0
  %v1553 = vmax.f32 %v1541, 0.0
  %v1554 = vmax.f32 %v1543, 0.0
  %v1555 = vmax.f32 %v1470, 0.0
  %v1556 = vmax.f32 %v1472, 0.0
  %v1557 = vmax.f32 %v1547, 0.0
  %v1558 = vmax.f32 %v1549, 0.0
  %v1559 = vld [vmem:[%s27 + $0x200] sm:$0xff]
  %v1560 = vld [vmem:[%s27 + $0x208] sm:$0xff]
  %v1561 = vld [vmem:[%s27 + $0x210] sm:$0xff]
  %v1562 = vld [vmem:[%s27 + $0x218] sm:$0xff]
  %v1563 = vld [vmem:[%s27 + $0x220] sm:$0xff]
  %v1564 = vld [vmem:[%s27 + $0x228] sm:$0xff]
  %v1565 = vld [vmem:[%s27 + $0x230] sm:$0xff]
  %v1566 = vld [vmem:[%s27 + $0x238] sm:$0xff]
  %v1567 = vld [vmem:[%s27 + $0x240] sm:$0xff]
  %v1568 = vld [vmem:[%s27 + $0x248] sm:$0xff]
  %v1569 = vld [vmem:[%s27 + $0x250] sm:$0xff]
  %v1570 = vld [vmem:[%s27 + $0x258] sm:$0xff]
  %v1571 = vld [vmem:[%s27 + $0x260] sm:$0xff]
  %v1572 = vld [vmem:[%s27 + $0x268] sm:$0xff]
  %v1573 = vld [vmem:[%s27 + $0x270] sm:$0xff]
  %v1574 = vld [vmem:[%s27 + $0x278] sm:$0xff]
  %v1575 = vld [vmem:[%s27 + $0x280] sm:$0xff]
  %v1576 = vld [vmem:[%s27 + $0x288] sm:$0xff]
  %v1577 = vld [vmem:[%s27 + $0x290] sm:$0xff]
  %v1578 = vld [vmem:[%s27 + $0x298] sm:$0xff]
  %v1579 = vld [vmem:[%s27 + $0x2a0] sm:$0xff]
  %v1580 = vld [vmem:[%s27 + $0x2a8] sm:$0xff]
  %v1581 = vld [vmem:[%s27 + $0x2b0] sm:$0xff]
  %v1582 = vld [vmem:[%s27 + $0x2b8] sm:$0xff]
  %v1583 = vld [vmem:[%s27 + $0x2c0] sm:$0xff]
  %v1584 = vld [vmem:[%s27 + $0x2c8] sm:$0xff]
  %v1585 = vld [vmem:[%s27 + $0x2d0] sm:$0xff]
  %v1586 = vld [vmem:[%s27 + $0x2d8] sm:$0xff]
  %v1587 = vld [vmem:[%s27 + $0x2e0] sm:$0xff]
  %v1588 = vld [vmem:[%s27 + $0x2e8] sm:$0xff]
  %v1589 = vld [vmem:[%s27 + $0x2f0] sm:$0xff]
  %v1590 = vld [vmem:[%s27 + $0x2f8] sm:$0xff]
  %v1591 = vld [vmem:[%s27 + $0x300] sm:$0xff]
  %v1592 = vld [vmem:[%s27 + $0x308] sm:$0xff]
  %v1593 = vld [vmem:[%s27 + $0x310] sm:$0xff]
  %v1594 = vld [vmem:[%s27 + $0x318] sm:$0xff]
  %v1595 = vld [vmem:[%s27 + $0x320] sm:$0xff]
  %v1596 = vld [vmem:[%s27 + $0x328] sm:$0xff]
  %v1597 = vld [vmem:[%s27 + $0x330] sm:$0xff]
  %v1598 = vld [vmem:[%s27 + $0x338] sm:$0xff]
  %v1599 = vld [vmem:[%s27 + $0x340] sm:$0xff]
  %v1600 = vld [vmem:[%s27 + $0x348] sm:$0xff]
  %v1601 = vld [vmem:[%s27 + $0x350] sm:$0xff]
  %v1602 = vld [vmem:[%s27 + $0x358] sm:$0xff]
  %v1603 = vld [vmem:[%s27 + $0x360] sm:$0xff]
  %v1604 = vld [vmem:[%s27 + $0x368] sm:$0xff]
  %v1605 = vld [vmem:[%s27 + $0x370] sm:$0xff]
  %v1606 = vld [vmem:[%s27 + $0x378] sm:$0xff]
  %v1607 = vld [vmem:[%s27 + $0x380] sm:$0xff]
  %v1608 = vld [vmem:[%s27 + $0x388] sm:$0xff]
  %v1609 = vld [vmem:[%s27 + $0x390] sm:$0xff]
  %v1610 = vld [vmem:[%s27 + $0x398] sm:$0xff]
  %v1611 = vld [vmem:[%s27 + $0x3a0] sm:$0xff]
  %v1612 = vld [vmem:[%s27 + $0x3a8] sm:$0xff]
  %v1613 = vld [vmem:[%s27 + $0x3b0] sm:$0xff]
  %v1614 = vld [vmem:[%s27 + $0x3b8] sm:$0xff]
  %v1615 = vld [vmem:[%s27 + $0x3c0] sm:$0xff]
  %v1616 = vld [vmem:[%s27 + $0x3c8] sm:$0xff]
  %v1617 = vld [vmem:[%s27 + $0x3d0] sm:$0xff]
  %v1618 = vld [vmem:[%s27 + $0x3d8] sm:$0xff]
  %v1619 = vld [vmem:[%s27 + $0x3e0] sm:$0xff]
  %v1620 = vld [vmem:[%s27 + $0x3e8] sm:$0xff]
  %v1621 = vld [vmem:[%s27 + $0x3f0] sm:$0xff]
  %v1622 = vld [vmem:[%s27 + $0x3f8] sm:$0xff]
  %1623 = vmatprep.subr.mxu0 0.0
  %1624 = vmatpush1.msra.mxu0 %v1559
  %1625 = vmatprep.subr.mxu0 0.0
  %1626 = vmatpush1.msra.mxu0 %v1560
  %1627 = vmatprep.subr.mxu0 0.0
  %1628 = vmatpush1.msra.mxu0 %v1561
  %1629 = vmatprep.subr.mxu0 0.0
  %1630 = vmatpush1.msra.mxu0 %v1562
  %1631 = vmatprep.subr.mxu0 0.0
  %1632 = vmatpush1.msra.mxu0 %v1563
  %1633 = vmatprep.subr.mxu0 0.0
  %1634 = vmatpush1.msra.mxu0 %v1564
  %1635 = vmatprep.subr.mxu0 0.0
  %1636 = vmatpush1.msra.mxu0 %v1565
  %1637 = vmatprep.subr.mxu0 0.0
  %1638 = vmatpush1.msra.mxu0 %v1566
  %1639 = vmatprep.subr.mxu0 0.0
  %1640 = vmatpush1.msra.mxu0 %v1567
  %1641 = vmatprep.subr.mxu0 0.0
  %1642 = vmatpush1.msra.mxu0 %v1568
  %1643 = vmatprep.subr.mxu0 0.0
  %1644 = vmatpush1.msra.mxu0 %v1569
  %1645 = vmatprep.subr.mxu0 0.0
  %1646 = vmatpush1.msra.mxu0 %v1570
  %1647 = vmatprep.subr.mxu0 0.0
  %1648 = vmatpush1.msra.mxu0 %v1571
  %1649 = vmatprep.subr.mxu0 0.0
  %1650 = vmatpush1.msra.mxu0 %v1572
  %1651 = vmatprep.subr.mxu0 0.0
  %1652 = vmatpush1.msra.mxu0 %v1573
  %1653 = vmatprep.subr.mxu0 0.0
  %1654 = vmatpush1.msra.mxu0 %v1574
  %1655 = vmatprep.subr.mxu0 0.0
  %1656 = vmatpush1.msra.mxu0 %v1575
  %1657 = vmatprep.subr.mxu0 0.0
  %1658 = vmatpush1.msra.mxu0 %v1576
  %1659 = vmatprep.subr.mxu0 0.0
  %1660 = vmatpush1.msra.mxu0 %v1577
  %1661 = vmatprep.subr.mxu0 0.0
  %1662 = vmatpush1.msra.mxu0 %v1578
  %1663 = vmatprep.subr.mxu0 0.0
  %1664 = vmatpush1.msra.mxu0 %v1579
  %1665 = vmatprep.subr.mxu0 0.0
  %1666 = vmatpush1.msra.mxu0 %v1580
  %1667 = vmatprep.subr.mxu0 0.0
  %1668 = vmatpush1.msra.mxu0 %v1581
  %1669 = vmatprep.subr.mxu0 0.0
  %1670 = vmatpush1.msra.mxu0 %v1582
  %1671 = vmatprep.subr.mxu0 0.0
  %1672 = vmatpush1.msra.mxu0 %v1583
  %1673 = vmatprep.subr.mxu0 0.0
  %1674 = vmatpush1.msra.mxu0 %v1584
  %1675 = vmatprep.subr.mxu0 0.0
  %1676 = vmatpush1.msra.mxu0 %v1585
  %1677 = vmatprep.subr.mxu0 0.0
  %1678 = vmatpush1.msra.mxu0 %v1586
  %1679 = vmatprep.subr.mxu0 0.0
  %1680 = vmatpush1.msra.mxu0 %v1587
  %1681 = vmatprep.subr.mxu0 0.0
  %1682 = vmatpush1.msra.mxu0 %v1588
  %1683 = vmatprep.subr.mxu0 0.0
  %1684 = vmatpush1.msra.mxu0 %v1589
  %1685 = vmatprep.subr.mxu0 0.0
  %1686 = vmatpush1.msra.mxu0 %v1590
  %1687 = vmatprep.mubr.f32.mxu0 %v1552
  %1688 = vmatmul.mubr.f32.gmra.mrb[0].mxu0 %v1551
  %v1689 = vpop.f32.mrb[0].mxu0
  %v1690 = vadd.f32 0.0, %v1689
  %v1691 = vpop.f32.mrb[0].mxu0
  %1692 = vmatprep.mubr.f32.mxu0 %v1556
  %1693 = vmatmul.mubr.f32.gmra.mrb[0].mxu0 %v1555
  %v1694 = vpop.f32.mrb[0].mxu0
  %v1695 = vadd.f32 0.0, %v1694
  %v1696 = vpop.f32.mrb[0].mxu0
  %1697 = vdwg.mxu0
  %1698 = vmatprep.subr.mxu0 0.0
  %1699 = vmatpush1.msra.mxu0 %v1591
  %1700 = vmatprep.subr.mxu0 0.0
  %1701 = vmatpush1.msra.mxu0 %v1592
  %1702 = vmatprep.subr.mxu0 0.0
  %1703 = vmatpush1.msra.mxu0 %v1593
  %1704 = vmatprep.subr.mxu0 0.0
  %1705 = vmatpush1.msra.mxu0 %v1594
  %1706 = vmatprep.subr.mxu0 0.0
  %1707 = vmatpush1.msra.mxu0 %v1595
  %1708 = vmatprep.subr.mxu0 0.0
  %1709 = vmatpush1.msra.mxu0 %v1596
  %1710 = vmatprep.subr.mxu0 0.0
  %1711 = vmatpush1.msra.mxu0 %v1597
  %1712 = vmatprep.subr.mxu0 0.0
  %1713 = vmatpush1.msra.mxu0 %v1598
  %1714 = vmatprep.subr.mxu0 0.0
  %1715 = vmatpush1.msra.mxu0 %v1599
  %1716 = vmatprep.subr.mxu0 0.0
  %1717 = vmatpush1.msra.mxu0 %v1600
  %1718 = vmatprep.subr.mxu0 0.0
  %1719 = vmatpush1.msra.mxu0 %v1601
  %1720 = vmatprep.subr.mxu0 0.0
  %1721 = vmatpush1.msra.mxu0 %v1602
  %1722 = vmatprep.subr.mxu0 0.0
  %1723 = vmatpush1.msra.mxu0 %v1603
  %1724 = vmatprep.subr.mxu0 0.0
  %1725 = vmatpush1.msra.mxu0 %v1604
  %1726 = vmatprep.subr.mxu0 0.0
  %1727 = vmatpush1.msra.mxu0 %v1605
  %1728 = vmatprep.subr.mxu0 0.0
  %1729 = vmatpush1.msra.mxu0 %v1606
  %1730 = vmatprep.subr.mxu0 0.0
  %1731 = vmatpush1.msra.mxu0 %v1607
  %1732 = vmatprep.subr.mxu0 0.0
  %1733 = vmatpush1.msra.mxu0 %v1608
  %1734 = vmatprep.subr.mxu0 0.0
  %1735 = vmatpush1.msra.mxu0 %v1609
  %1736 = vmatprep.subr.mxu0 0.0
  %1737 = vmatpush1.msra.mxu0 %v1610
  %1738 = vmatprep.subr.mxu0 0.0
  %1739 = vmatpush1.msra.mxu0 %v1611
  %1740 = vmatprep.subr.mxu0 0.0
  %1741 = vmatpush1.msra.mxu0 %v1612
  %1742 = vmatprep.subr.mxu0 0.0
  %1743 = vmatpush1.msra.mxu0 %v1613
  %1744 = vmatprep.subr.mxu0 0.0
  %1745 = vmatpush1.msra.mxu0 %v1614
  %1746 = vmatprep.subr.mxu0 0.0
  %1747 = vmatpush1.msra.mxu0 %v1615
  %1748 = vmatprep.subr.mxu0 0.0
  %1749 = vmatpush1.msra.mxu0 %v1616
  %1750 = vmatprep.subr.mxu0 0.0
  %1751 = vmatpush1.msra.mxu0 %v1617
  %1752 = vmatprep.subr.mxu0 0.0
  %1753 = vmatpush1.msra.mxu0 %v1618
  %1754 = vmatprep.subr.mxu0 0.0
  %1755 = vmatpush1.msra.mxu0 %v1619
  %1756 = vmatprep.subr.mxu0 0.0
  %1757 = vmatpush1.msra.mxu0 %v1620
  %1758 = vmatprep.subr.mxu0 0.0
  %1759 = vmatpush1.msra.mxu0 %v1621
  %1760 = vmatprep.subr.mxu0 0.0
  %1761 = vmatpush1.msra.mxu0 %v1622
  %1762 = vmatprep.mubr.f32.mxu0 %v1554
  %1763 = vmatmul.mubr.f32.gmra.mrb[0].mxu0 %v1553
  %v1764 = vpop.f32.mrb[0].mxu0
  %v1765 = vadd.f32 %v1690, %v1764
  %v1766 = vpop.f32.mrb[0].mxu0
  %1767 = vmatprep.mubr.f32.mxu0 %v1558
  %1768 = vmatmul.mubr.f32.gmra.mrb[0].mxu0 %v1557
  %v1769 = vpop.f32.mrb[0].mxu0
  %v1770 = vadd.f32 %v1695, %v1769
  %v1771 = vpop.f32.mrb[0].mxu0
  %1772 = vdwg.mxu0
  %1773 = vmatprep.subr.mxu0 0.0
  %1774 = vmatpush1.msra.mxu0 %v1295
  %1775 = vmatprep.subr.mxu0 0.0
  %1776 = vmatpush1.msra.mxu0 %v1296
  %1777 = vmatprep.subr.mxu0 0.0
  %1778 = vmatpush1.msra.mxu0 %v1297
  %1779 = vmatprep.subr.mxu0 0.0
  %1780 = vmatpush1.msra.mxu0 %v1298
  %1781 = vmatprep.subr.mxu0 0.0
  %1782 = vmatpush1.msra.mxu0 %v1299
  %1783 = vmatprep.subr.mxu0 0.0
  %1784 = vmatpush1.msra.mxu0 %v1300
  %1785 = vmatprep.subr.mxu0 0.0
  %1786 = vmatpush1.msra.mxu0 %v1301
  %1787 = vmatprep.subr.mxu0 0.0
  %1788 = vmatpush1.msra.mxu0 %v1302
  %1789 = vmatprep.subr.mxu0 0.0
  %1790 = vmatpush1.msra.mxu0 %v1303
  %1791 = vmatprep.subr.mxu0 0.0
  %1792 = vmatpush1.msra.mxu0 %v1304
  %1793 = vmatprep.subr.mxu0 0.0
  %1794 = vmatpush1.msra.mxu0 %v1305
  %1795 = vmatprep.subr.mxu0 0.0
  %1796 = vmatpush1.msra.mxu0 %v1306
  %1797 = vmatprep.subr.mxu0 0.0
  %1798 = vmatpush1.msra.mxu0 %v1307
  %1799 = vmatprep.subr.mxu0 0.0
  %1800 = vmatpush1.msra.mxu0 %v1308
  %1801 = vmatprep.subr.mxu0 0.0
  %1802 = vmatpush1.msra.mxu0 %v1309
  %1803 = vmatprep.subr.mxu0 0.0
  %1804 = vmatpush1.msra.mxu0 %v1310
  %1805 = vmatprep.subr.mxu0 0.0
  %1806 = vmatpush1.msra.mxu0 %v1311
  %1807 = vmatprep.subr.mxu0 0.0
  %1808 = vmatpush1.msra.mxu0 %v1312
  %1809 = vmatprep.subr.mxu0 0.0
  %1810 = vmatpush1.msra.mxu0 %v1313
  %1811 = vmatprep.subr.mxu0 0.0
  %1812 = vmatpush1.msra.mxu0 %v1314
  %1813 = vmatprep.subr.mxu0 0.0
  %1814 = vmatpush1.msra.mxu0 %v1315
  %1815 = vmatprep.subr.mxu0 0.0
  %1816 = vmatpush1.msra.mxu0 %v1316
  %1817 = vmatprep.subr.mxu0 0.0
  %1818 = vmatpush1.msra.mxu0 %v1317
  %1819 = vmatprep.subr.mxu0 0.0
  %1820 = vmatpush1.msra.mxu0 %v1318
  %1821 = vmatprep.subr.mxu0 0.0
  %1822 = vmatpush1.msra.mxu0 %v1319
  %1823 = vmatprep.subr.mxu0 0.0
  %1824 = vmatpush1.msra.mxu0 %v1320
  %1825 = vmatprep.subr.mxu0 0.0
  %1826 = vmatpush1.msra.mxu0 %v1321
  %1827 = vmatprep.subr.mxu0 0.0
  %1828 = vmatpush1.msra.mxu0 %v1322
  %1829 = vmatprep.subr.mxu0 0.0
  %1830 = vmatpush1.msra.mxu0 %v1323
  %1831 = vmatprep.subr.mxu0 0.0
  %1832 = vmatpush1.msra.mxu0 %v1324
  %1833 = vmatprep.subr.mxu0 0.0
  %1834 = vmatpush1.msra.mxu0 %v1325
  %1835 = vmatprep.subr.mxu0 0.0
  %1836 = vmatpush1.msra.mxu0 %v1326
  %1837 = vmatprep.mubr.f32.mxu0 %v1288
  %1838 = vmatmul.mubr.f32.gmra.mrb[0].mxu0 %v1287
  %v1839 = vpop.f32.mrb[0].mxu0
  %v1840 = vadd.f32 %v1765, %v1839
  %v1841 = vpop.f32.mrb[0].mxu0
  %1842 = vmatprep.mubr.f32.mxu0 %v1292
  %1843 = vmatmul.mubr.f32.gmra.mrb[0].mxu0 %v1291
  %v1844 = vpop.f32.mrb[0].mxu0
  %v1845 = vadd.f32 %v1770, %v1844
  %v1846 = vpop.f32.mrb[0].mxu0
  %1847 = vdwg.mxu0
  %1848 = vmatprep.subr.mxu0 0.0
  %1849 = vmatpush1.msra.mxu0 %v1327
  %1850 = vmatprep.subr.mxu0 0.0
  %1851 = vmatpush1.msra.mxu0 %v1328
  %1852 = vmatprep.subr.mxu0 0.0
  %1853 = vmatpush1.msra.mxu0 %v1329
  %1854 = vmatprep.subr.mxu0 0.0
  %1855 = vmatpush1.msra.mxu0 %v1330
  %1856 = vmatprep.subr.mxu0 0.0
  %1857 = vmatpush1.msra.mxu0 %v1331
  %1858 = vmatprep.subr.mxu0 0.0
  %1859 = vmatpush1.msra.mxu0 %v1332
  %1860 = vmatprep.subr.mxu0 0.0
  %1861 = vmatpush1.msra.mxu0 %v1333
  %1862 = vmatprep.subr.mxu0 0.0
  %1863 = vmatpush1.msra.mxu0 %v1334
  %1864 = vmatprep.subr.mxu0 0.0
  %1865 = vmatpush1.msra.mxu0 %v1335
  %1866 = vmatprep.subr.mxu0 0.0
  %1867 = vmatpush1.msra.mxu0 %v1336
  %1868 = vmatprep.subr.mxu0 0.0
  %1869 = vmatpush1.msra.mxu0 %v1337
  %1870 = vmatprep.subr.mxu0 0.0
  %1871 = vmatpush1.msra.mxu0 %v1338
  %1872 = vmatprep.subr.mxu0 0.0
  %1873 = vmatpush1.msra.mxu0 %v1339
  %1874 = vmatprep.subr.mxu0 0.0
  %1875 = vmatpush1.msra.mxu0 %v1340
  %1876 = vmatprep.subr.mxu0 0.0
  %1877 = vmatpush1.msra.mxu0 %v1341
  %1878 = vmatprep.subr.mxu0 0.0
  %1879 = vmatpush1.msra.mxu0 %v1342
  %1880 = vmatprep.subr.mxu0 0.0
  %1881 = vmatpush1.msra.mxu0 %v1343
  %1882 = vmatprep.subr.mxu0 0.0
  %1883 = vmatpush1.msra.mxu0 %v1344
  %1884 = vmatprep.subr.mxu0 0.0
  %1885 = vmatpush1.msra.mxu0 %v1345
  %1886 = vmatprep.subr.mxu0 0.0
  %1887 = vmatpush1.msra.mxu0 %v1346
  %1888 = vmatprep.subr.mxu0 0.0
  %1889 = vmatpush1.msra.mxu0 %v1347
  %1890 = vmatprep.subr.mxu0 0.0
  %1891 = vmatpush1.msra.mxu0 %v1348
  %1892 = vmatprep.subr.mxu0 0.0
  %1893 = vmatpush1.msra.mxu0 %v1349
  %1894 = vmatprep.subr.mxu0 0.0
  %1895 = vmatpush1.msra.mxu0 %v1350
  %1896 = vmatprep.subr.mxu0 0.0
  %1897 = vmatpush1.msra.mxu0 %v1351
  %1898 = vmatprep.subr.mxu0 0.0
  %1899 = vmatpush1.msra.mxu0 %v1352
  %1900 = vmatprep.subr.mxu0 0.0
  %1901 = vmatpush1.msra.mxu0 %v1353
  %1902 = vmatprep.subr.mxu0 0.0
  %1903 = vmatpush1.msra.mxu0 %v1354
  %1904 = vmatprep.subr.mxu0 0.0
  %1905 = vmatpush1.msra.mxu0 %v1355
  %1906 = vmatprep.subr.mxu0 0.0
  %1907 = vmatpush1.msra.mxu0 %v1356
  %1908 = vmatprep.subr.mxu0 0.0
  %1909 = vmatpush1.msra.mxu0 %v1357
  %1910 = vmatprep.subr.mxu0 0.0
  %1911 = vmatpush1.msra.mxu0 %v1358
  %1912 = vmatprep.mubr.f32.mxu0 %v1290
  %1913 = vmatmul.mubr.f32.gmra.mrb[0].mxu0 %v1289
  %v1914 = vpop.f32.mrb[0].mxu0
  %v1915 = vadd.f32 %v1840, %v1914
  %v1916 = vpop.f32.mrb[0].mxu0
  %1917 = vmatprep.mubr.f32.mxu0 %v1294
  %1918 = vmatmul.mubr.f32.gmra.mrb[0].mxu0 %v1293
  %v1919 = vpop.f32.mrb[0].mxu0
  %v1920 = vadd.f32 %v1845, %v1919
  %v1921 = vpop.f32.mrb[0].mxu0
  %1922 = vdwg.mxu0
  %v1923 = vld [vmem:[%s23 + $0x40] sm:$0xff]
  %v1924 = vld [vmem:[%s23 + $0x48] sm:$0xff]
  %v1925 = vld [vmem:[%s23 + $0x50] sm:$0xff]
  %v1926 = vld [vmem:[%s23 + $0x58] sm:$0xff]
  %v1927 = vld [vmem:[%s23 + $0xc0] sm:$0xff]
  %v1928 = vld [vmem:[%s23 + $0xc8] sm:$0xff]
  %v1929 = vld [vmem:[%s23 + $0xd0] sm:$0xff]
  %v1930 = vld [vmem:[%s23 + $0xd8] sm:$0xff]
  %v1931 = vld [vmem:[%s23 + $0x140] sm:$0xff]
  %v1932 = vld [vmem:[%s23 + $0x148] sm:$0xff]
  %v1933 = vld [vmem:[%s23 + $0x150] sm:$0xff]
  %v1934 = vld [vmem:[%s23 + $0x158] sm:$0xff]
  %v1935 = vld [vmem:[%s23 + $0x1c0] sm:$0xff]
  %v1936 = vld [vmem:[%s23 + $0x1c8] sm:$0xff]
  %v1937 = vld [vmem:[%s23 + $0x1d0] sm:$0xff]
  %v1938 = vld [vmem:[%s23 + $0x1d8] sm:$0xff]
  %v1939 = vld [vmem:[%s25 + $0x8] sm:$0xf]
  %v1941 = vlaneseq
  %v1942 = vshrl.u32 %v1941, 7
  %v1943 = vsub.s32 0, %v1942
  %v1944 = vrot.slane %v1939, %v1943
  %v1945 = vlaneseq
  %v1946 = vshrl.u32 %v1945, 7
  %v1947 = vsub.s32 1, %v1946
  %v1948 = vrot.slane %v1939, %v1947
  %v1949 = vlaneseq
  %v1950 = vshrl.u32 %v1949, 7
  %v1951 = vsub.s32 2, %v1950
  %v1952 = vrot.slane %v1939, %v1951
  %v1953 = vlaneseq
  %v1954 = vshrl.u32 %v1953, 7
  %v1955 = vsub.s32 3, %v1954
  %v1956 = vrot.slane %v1939, %v1955
  %1961 = vmatprep.subr.mxu0 %v1924
  %1962 = vmatpush1.msra.mxu0 %v1923
  %1963 = vmatprep.subr.mxu0 %v1928
  %1964 = vmatpush1.msra.mxu0 %v1927
  %1965 = vmatprep.subr.mxu0 %v1932
  %1966 = vmatpush1.msra.mxu0 %v1931
  %1967 = vmatprep.subr.mxu0 %v1936
  %1968 = vmatpush1.msra.mxu0 %v1935
  %1969 = vmatprep.subr.mxu0 0.0
  %1970 = vmatpush1.msra.mxu0 0.0
  %1971 = vmatprep.subr.mxu0 0.0
  %1972 = vmatpush1.msra.mxu0 0.0
  %1973 = vmatprep.subr.mxu0 0.0
  %1974 = vmatpush1.msra.mxu0 0.0
  %1975 = vmatprep.subr.mxu0 0.0
  %1976 = vmatpush1.msra.mxu0 0.0
  %1977 = vmatprep.subr.mxu0 0.0
  %1978 = vmatpush1.msra.mxu0 0.0
  %1979 = vmatprep.subr.mxu0 0.0
  %1980 = vmatpush1.msra.mxu0 0.0
  %1981 = vmatprep.subr.mxu0 0.0
  %1982 = vmatpush1.msra.mxu0 0.0
  %1983 = vmatprep.subr.mxu0 0.0
  %1984 = vmatpush1.msra.mxu0 0.0
  %1985 = vmatprep.subr.mxu0 0.0
  %1986 = vmatpush1.msra.mxu0 0.0
  %1987 = vmatprep.subr.mxu0 0.0
  %1988 = vmatpush1.msra.mxu0 0.0
  %1989 = vmatprep.subr.mxu0 0.0
  %1990 = vmatpush1.msra.mxu0 0.0
  %1991 = vmatprep.subr.mxu0 0.0
  %1992 = vmatpush1.msra.mxu0 0.0
  %1993 = vmatprep.subr.mxu0 0.0
  %1994 = vmatpush1.msra.mxu0 0.0
  %1995 = vmatprep.subr.mxu0 0.0
  %1996 = vmatpush1.msra.mxu0 0.0
  %1997 = vmatprep.subr.mxu0 0.0
  %1998 = vmatpush1.msra.mxu0 0.0
  %1999 = vmatprep.subr.mxu0 0.0
  %2000 = vmatpush1.msra.mxu0 0.0
  %2001 = vmatprep.subr.mxu0 0.0
  %2002 = vmatpush1.msra.mxu0 0.0
  %2003 = vmatprep.subr.mxu0 0.0
  %2004 = vmatpush1.msra.mxu0 0.0
  %2005 = vmatprep.subr.mxu0 0.0
  %2006 = vmatpush1.msra.mxu0 0.0
  %2007 = vmatprep.subr.mxu0 0.0
  %2008 = vmatpush1.msra.mxu0 0.0
  %2009 = vmatprep.subr.mxu0 0.0
  %2010 = vmatpush1.msra.mxu0 0.0
  %2011 = vmatprep.subr.mxu0 0.0
  %2012 = vmatpush1.msra.mxu0 0.0
  %2013 = vmatprep.subr.mxu0 0.0
  %2014 = vmatpush1.msra.mxu0 0.0
  %2015 = vmatprep.subr.mxu0 0.0
  %2016 = vmatpush1.msra.mxu0 0.0
  %2017 = vmatprep.subr.mxu0 0.0
  %2018 = vmatpush1.msra.mxu0 0.0
  %2019 = vmatprep.subr.mxu0 0.0
  %2020 = vmatpush1.msra.mxu0 0.0
  %2021 = vmatprep.subr.mxu0 0.0
  %2022 = vmatpush1.msra.mxu0 0.0
  %2023 = vmatprep.subr.mxu0 0.0
  %2024 = vmatpush1.msra.mxu0 0.0
  %2025 = vmatprep.mubr.f32.mxu0 0.0
  %2026 = vmatmul.mubr.f32.gmra.mrb[0].mxu0 %v1128
  %v2027 = vpop.f32.mrb[0].mxu0
  %v2028 = vadd.f32 %v1944, %v2027
  %v2029 = vpop.f32.mrb[0].mxu0
  %v2030 = vadd.f32 %v1948, %v2029
  %2031 = vmatprep.mubr.f32.mxu0 0.0
  %2032 = vmatmul.mubr.f32.gmra.mrb[0].mxu0 %v1131
  %v2033 = vpop.f32.mrb[0].mxu0
  %v2034 = vadd.f32 %v1944, %v2033
  %v2035 = vpop.f32.mrb[0].mxu0
  %v2036 = vadd.f32 %v1948, %v2035
  %2037 = vdwg.mxu0
  %2038 = vmatprep.subr.mxu0 %v1926
  %2039 = vmatpush1.msra.mxu0 %v1925
  %2040 = vmatprep.subr.mxu0 %v1930
  %2041 = vmatpush1.msra.mxu0 %v1929
  %2042 = vmatprep.subr.mxu0 %v1934
  %2043 = vmatpush1.msra.mxu0 %v1933
  %2044 = vmatprep.subr.mxu0 %v1938
  %2045 = vmatpush1.msra.mxu0 %v1937
  %2046 = vmatprep.subr.mxu0 0.0
  %2047 = vmatpush1.msra.mxu0 0.0
  %2048 = vmatprep.subr.mxu0 0.0
  %2049 = vmatpush1.msra.mxu0 0.0
  %2050 = vmatprep.subr.mxu0 0.0
  %2051 = vmatpush1.msra.mxu0 0.0
  %2052 = vmatprep.subr.mxu0 0.0
  %2053 = vmatpush1.msra.mxu0 0.0
  %2054 = vmatprep.subr.mxu0 0.0
  %2055 = vmatpush1.msra.mxu0 0.0
  %2056 = vmatprep.subr.mxu0 0.0
  %2057 = vmatpush1.msra.mxu0 0.0
  %2058 = vmatprep.subr.mxu0 0.0
  %2059 = vmatpush1.msra.mxu0 0.0
  %2060 = vmatprep.subr.mxu0 0.0
  %2061 = vmatpush1.msra.mxu0 0.0
  %2062 = vmatprep.subr.mxu0 0.0
  %2063 = vmatpush1.msra.mxu0 0.0
  %2064 = vmatprep.subr.mxu0 0.0
  %2065 = vmatpush1.msra.mxu0 0.0
  %2066 = vmatprep.subr.mxu0 0.0
  %2067 = vmatpush1.msra.mxu0 0.0
  %2068 = vmatprep.subr.mxu0 0.0
  %2069 = vmatpush1.msra.mxu0 0.0
  %2070 = vmatprep.subr.mxu0 0.0
  %2071 = vmatpush1.msra.mxu0 0.0
  %2072 = vmatprep.subr.mxu0 0.0
  %2073 = vmatpush1.msra.mxu0 0.0
  %2074 = vmatprep.subr.mxu0 0.0
  %2075 = vmatpush1.msra.mxu0 0.0
  %2076 = vmatprep.subr.mxu0 0.0
  %2077 = vmatpush1.msra.mxu0 0.0
  %2078 = vmatprep.subr.mxu0 0.0
  %2079 = vmatpush1.msra.mxu0 0.0
  %2080 = vmatprep.subr.mxu0 0.0
  %2081 = vmatpush1.msra.mxu0 0.0
  %2082 = vmatprep.subr.mxu0 0.0
  %2083 = vmatpush1.msra.mxu0 0.0
  %2084 = vmatprep.subr.mxu0 0.0
  %2085 = vmatpush1.msra.mxu0 0.0
  %2086 = vmatprep.subr.mxu0 0.0
  %2087 = vmatpush1.msra.mxu0 0.0
  %2088 = vmatprep.subr.mxu0 0.0
  %2089 = vmatpush1.msra.mxu0 0.0
  %2090 = vmatprep.subr.mxu0 0.0
  %2091 = vmatpush1.msra.mxu0 0.0
  %2092 = vmatprep.subr.mxu0 0.0
  %2093 = vmatpush1.msra.mxu0 0.0
  %2094 = vmatprep.subr.mxu0 0.0
  %2095 = vmatpush1.msra.mxu0 0.0
  %2096 = vmatprep.subr.mxu0 0.0
  %2097 = vmatpush1.msra.mxu0 0.0
  %2098 = vmatprep.subr.mxu0 0.0
  %2099 = vmatpush1.msra.mxu0 0.0
  %2100 = vmatprep.subr.mxu0 0.0
  %2101 = vmatpush1.msra.mxu0 0.0
  %2102 = vmatprep.mubr.f32.mxu0 0.0
  %2103 = vmatmul.mubr.f32.gmra.mrb[0].mxu0 %v1128
  %v2104 = vpop.f32.mrb[0].mxu0
  %v2105 = vadd.f32 %v1952, %v2104
  %v2106 = vpop.f32.mrb[0].mxu0
  %v2107 = vadd.f32 %v1956, %v2106
  %2108 = vmatprep.mubr.f32.mxu0 0.0
  %2109 = vmatmul.mubr.f32.gmra.mrb[0].mxu0 %v1131
  %v2110 = vpop.f32.mrb[0].mxu0
  %v2111 = vadd.f32 %v1952, %v2110
  %v2112 = vpop.f32.mrb[0].mxu0
  %v2113 = vadd.f32 %v1956, %v2112
  %2114 = vdwg.mxu0
  %v2115 = vmax.f32 %v2028, 0.0
  %v2116 = vmax.f32 %v2030, 0.0
  %v2117 = vmax.f32 %v2105, 0.0
  %v2118 = vmax.f32 %v2107, 0.0
  %v2119 = vmax.f32 %v2034, 0.0
  %v2120 = vmax.f32 %v2036, 0.0
  %v2121 = vmax.f32 %v2111, 0.0
  %v2122 = vmax.f32 %v2113, 0.0
  %v2123 = vld [vmem:[%s27 + $0x400] sm:$0xff]
  %v2124 = vld [vmem:[%s27 + $0x408] sm:$0xff]
  %v2125 = vld [vmem:[%s27 + $0x410] sm:$0xff]
  %v2126 = vld [vmem:[%s27 + $0x418] sm:$0xff]
  %v2127 = vld [vmem:[%s27 + $0x420] sm:$0xff]
  %v2128 = vld [vmem:[%s27 + $0x428] sm:$0xff]
  %v2129 = vld [vmem:[%s27 + $0x430] sm:$0xff]
  %v2130 = vld [vmem:[%s27 + $0x438] sm:$0xff]
  %v2131 = vld [vmem:[%s27 + $0x440] sm:$0xff]
  %v2132 = vld [vmem:[%s27 + $0x448] sm:$0xff]
  %v2133 = vld [vmem:[%s27 + $0x450] sm:$0xff]
  %v2134 = vld [vmem:[%s27 + $0x458] sm:$0xff]
  %v2135 = vld [vmem:[%s27 + $0x460] sm:$0xff]
  %v2136 = vld [vmem:[%s27 + $0x468] sm:$0xff]
  %v2137 = vld [vmem:[%s27 + $0x470] sm:$0xff]
  %v2138 = vld [vmem:[%s27 + $0x478] sm:$0xff]
  %v2139 = vld [vmem:[%s27 + $0x480] sm:$0xff]
  %v2140 = vld [vmem:[%s27 + $0x488] sm:$0xff]
  %v2141 = vld [vmem:[%s27 + $0x490] sm:$0xff]
  %v2142 = vld [vmem:[%s27 + $0x498] sm:$0xff]
  %v2143 = vld [vmem:[%s27 + $0x4a0] sm:$0xff]
  %v2144 = vld [vmem:[%s27 + $0x4a8] sm:$0xff]
  %v2145 = vld [vmem:[%s27 + $0x4b0] sm:$0xff]
  %v2146 = vld [vmem:[%s27 + $0x4b8] sm:$0xff]
  %v2147 = vld [vmem:[%s27 + $0x4c0] sm:$0xff]
  %v2148 = vld [vmem:[%s27 + $0x4c8] sm:$0xff]
  %v2149 = vld [vmem:[%s27 + $0x4d0] sm:$0xff]
  %v2150 = vld [vmem:[%s27 + $0x4d8] sm:$0xff]
  %v2151 = vld [vmem:[%s27 + $0x4e0] sm:$0xff]
  %v2152 = vld [vmem:[%s27 + $0x4e8] sm:$0xff]
  %v2153 = vld [vmem:[%s27 + $0x4f0] sm:$0xff]
  %v2154 = vld [vmem:[%s27 + $0x4f8] sm:$0xff]
  %v2155 = vld [vmem:[%s27 + $0x500] sm:$0xff]
  %v2156 = vld [vmem:[%s27 + $0x508] sm:$0xff]
  %v2157 = vld [vmem:[%s27 + $0x510] sm:$0xff]
  %v2158 = vld [vmem:[%s27 + $0x518] sm:$0xff]
  %v2159 = vld [vmem:[%s27 + $0x520] sm:$0xff]
  %v2160 = vld [vmem:[%s27 + $0x528] sm:$0xff]
  %v2161 = vld [vmem:[%s27 + $0x530] sm:$0xff]
  %v2162 = vld [vmem:[%s27 + $0x538] sm:$0xff]
  %v2163 = vld [vmem:[%s27 + $0x540] sm:$0xff]
  %v2164 = vld [vmem:[%s27 + $0x548] sm:$0xff]
  %v2165 = vld [vmem:[%s27 + $0x550] sm:$0xff]
  %v2166 = vld [vmem:[%s27 + $0x558] sm:$0xff]
  %v2167 = vld [vmem:[%s27 + $0x560] sm:$0xff]
  %v2168 = vld [vmem:[%s27 + $0x568] sm:$0xff]
  %v2169 = vld [vmem:[%s27 + $0x570] sm:$0xff]
  %v2170 = vld [vmem:[%s27 + $0x578] sm:$0xff]
  %v2171 = vld [vmem:[%s27 + $0x580] sm:$0xff]
  %v2172 = vld [vmem:[%s27 + $0x588] sm:$0xff]
  %v2173 = vld [vmem:[%s27 + $0x590] sm:$0xff]
  %v2174 = vld [vmem:[%s27 + $0x598] sm:$0xff]
  %v2175 = vld [vmem:[%s27 + $0x5a0] sm:$0xff]
  %v2176 = vld [vmem:[%s27 + $0x5a8] sm:$0xff]
  %v2177 = vld [vmem:[%s27 + $0x5b0] sm:$0xff]
  %v2178 = vld [vmem:[%s27 + $0x5b8] sm:$0xff]
  %v2179 = vld [vmem:[%s27 + $0x5c0] sm:$0xff]
  %v2180 = vld [vmem:[%s27 + $0x5c8] sm:$0xff]
  %v2181 = vld [vmem:[%s27 + $0x5d0] sm:$0xff]
  %v2182 = vld [vmem:[%s27 + $0x5d8] sm:$0xff]
  %v2183 = vld [vmem:[%s27 + $0x5e0] sm:$0xff]
  %v2184 = vld [vmem:[%s27 + $0x5e8] sm:$0xff]
  %v2185 = vld [vmem:[%s27 + $0x5f0] sm:$0xff]
  %v2186 = vld [vmem:[%s27 + $0x5f8] sm:$0xff]
  %2187 = vmatprep.subr.mxu0 0.0
  %2188 = vmatpush1.msra.mxu0 %v2123
  %2189 = vmatprep.subr.mxu0 0.0
  %2190 = vmatpush1.msra.mxu0 %v2124
  %2191 = vmatprep.subr.mxu0 0.0
  %2192 = vmatpush1.msra.mxu0 %v2125
  %2193 = vmatprep.subr.mxu0 0.0
  %2194 = vmatpush1.msra.mxu0 %v2126
  %2195 = vmatprep.subr.mxu0 0.0
  %2196 = vmatpush1.msra.mxu0 %v2127
  %2197 = vmatprep.subr.mxu0 0.0
  %2198 = vmatpush1.msra.mxu0 %v2128
  %2199 = vmatprep.subr.mxu0 0.0
  %2200 = vmatpush1.msra.mxu0 %v2129
  %2201 = vmatprep.subr.mxu0 0.0
  %2202 = vmatpush1.msra.mxu0 %v2130
  %2203 = vmatprep.subr.mxu0 0.0
  %2204 = vmatpush1.msra.mxu0 %v2131
  %2205 = vmatprep.subr.mxu0 0.0
  %2206 = vmatpush1.msra.mxu0 %v2132
  %2207 = vmatprep.subr.mxu0 0.0
  %2208 = vmatpush1.msra.mxu0 %v2133
  %2209 = vmatprep.subr.mxu0 0.0
  %2210 = vmatpush1.msra.mxu0 %v2134
  %2211 = vmatprep.subr.mxu0 0.0
  %2212 = vmatpush1.msra.mxu0 %v2135
  %2213 = vmatprep.subr.mxu0 0.0
  %2214 = vmatpush1.msra.mxu0 %v2136
  %2215 = vmatprep.subr.mxu0 0.0
  %2216 = vmatpush1.msra.mxu0 %v2137
  %2217 = vmatprep.subr.mxu0 0.0
  %2218 = vmatpush1.msra.mxu0 %v2138
  %2219 = vmatprep.subr.mxu0 0.0
  %2220 = vmatpush1.msra.mxu0 %v2139
  %2221 = vmatprep.subr.mxu0 0.0
  %2222 = vmatpush1.msra.mxu0 %v2140
  %2223 = vmatprep.subr.mxu0 0.0
  %2224 = vmatpush1.msra.mxu0 %v2141
  %2225 = vmatprep.subr.mxu0 0.0
  %2226 = vmatpush1.msra.mxu0 %v2142
  %2227 = vmatprep.subr.mxu0 0.0
  %2228 = vmatpush1.msra.mxu0 %v2143
  %2229 = vmatprep.subr.mxu0 0.0
  %2230 = vmatpush1.msra.mxu0 %v2144
  %2231 = vmatprep.subr.mxu0 0.0
  %2232 = vmatpush1.msra.mxu0 %v2145
  %2233 = vmatprep.subr.mxu0 0.0
  %2234 = vmatpush1.msra.mxu0 %v2146
  %2235 = vmatprep.subr.mxu0 0.0
  %2236 = vmatpush1.msra.mxu0 %v2147
  %2237 = vmatprep.subr.mxu0 0.0
  %2238 = vmatpush1.msra.mxu0 %v2148
  %2239 = vmatprep.subr.mxu0 0.0
  %2240 = vmatpush1.msra.mxu0 %v2149
  %2241 = vmatprep.subr.mxu0 0.0
  %2242 = vmatpush1.msra.mxu0 %v2150
  %2243 = vmatprep.subr.mxu0 0.0
  %2244 = vmatpush1.msra.mxu0 %v2151
  %2245 = vmatprep.subr.mxu0 0.0
  %2246 = vmatpush1.msra.mxu0 %v2152
  %2247 = vmatprep.subr.mxu0 0.0
  %2248 = vmatpush1.msra.mxu0 %v2153
  %2249 = vmatprep.subr.mxu0 0.0
  %2250 = vmatpush1.msra.mxu0 %v2154
  %2251 = vmatprep.mubr.f32.mxu0 %v2116
  %2252 = vmatmul.mubr.f32.gmra.mrb[0].mxu0 %v2115
  %v2253 = vpop.f32.mrb[0].mxu0
  %v2254 = vadd.f32 0.0, %v2253
  %v2255 = vpop.f32.mrb[0].mxu0
  %2256 = vmatprep.mubr.f32.mxu0 %v2120
  %2257 = vmatmul.mubr.f32.gmra.mrb[0].mxu0 %v2119
  %v2258 = vpop.f32.mrb[0].mxu0
  %v2259 = vadd.f32 0.0, %v2258
  %v2260 = vpop.f32.mrb[0].mxu0
  %2261 = vdwg.mxu0
  %2262 = vmatprep.subr.mxu0 0.0
  %2263 = vmatpush1.msra.mxu0 %v2155
  %2264 = vmatprep.subr.mxu0 0.0
  %2265 = vmatpush1.msra.mxu0 %v2156
  %2266 = vmatprep.subr.mxu0 0.0
  %2267 = vmatpush1.msra.mxu0 %v2157
  %2268 = vmatprep.subr.mxu0 0.0
  %2269 = vmatpush1.msra.mxu0 %v2158
  %2270 = vmatprep.subr.mxu0 0.0
  %2271 = vmatpush1.msra.mxu0 %v2159
  %2272 = vmatprep.subr.mxu0 0.0
  %2273 = vmatpush1.msra.mxu0 %v2160
  %2274 = vmatprep.subr.mxu0 0.0
  %2275 = vmatpush1.msra.mxu0 %v2161
  %2276 = vmatprep.subr.mxu0 0.0
  %2277 = vmatpush1.msra.mxu0 %v2162
  %2278 = vmatprep.subr.mxu0 0.0
  %2279 = vmatpush1.msra.mxu0 %v2163
  %2280 = vmatprep.subr.mxu0 0.0
  %2281 = vmatpush1.msra.mxu0 %v2164
  %2282 = vmatprep.subr.mxu0 0.0
  %2283 = vmatpush1.msra.mxu0 %v2165
  %2284 = vmatprep.subr.mxu0 0.0
  %2285 = vmatpush1.msra.mxu0 %v2166
  %2286 = vmatprep.subr.mxu0 0.0
  %2287 = vmatpush1.msra.mxu0 %v2167
  %2288 = vmatprep.subr.mxu0 0.0
  %2289 = vmatpush1.msra.mxu0 %v2168
  %2290 = vmatprep.subr.mxu0 0.0
  %2291 = vmatpush1.msra.mxu0 %v2169
  %2292 = vmatprep.subr.mxu0 0.0
  %2293 = vmatpush1.msra.mxu0 %v2170
  %2294 = vmatprep.subr.mxu0 0.0
  %2295 = vmatpush1.msra.mxu0 %v2171
  %2296 = vmatprep.subr.mxu0 0.0
  %2297 = vmatpush1.msra.mxu0 %v2172
  %2298 = vmatprep.subr.mxu0 0.0
  %2299 = vmatpush1.msra.mxu0 %v2173
  %2300 = vmatprep.subr.mxu0 0.0
  %2301 = vmatpush1.msra.mxu0 %v2174
  %2302 = vmatprep.subr.mxu0 0.0
  %2303 = vmatpush1.msra.mxu0 %v2175
  %2304 = vmatprep.subr.mxu0 0.0
  %2305 = vmatpush1.msra.mxu0 %v2176
  %2306 = vmatprep.subr.mxu0 0.0
  %2307 = vmatpush1.msra.mxu0 %v2177
  %2308 = vmatprep.subr.mxu0 0.0
  %2309 = vmatpush1.msra.mxu0 %v2178
  %2310 = vmatprep.subr.mxu0 0.0
  %2311 = vmatpush1.msra.mxu0 %v2179
  %2312 = vmatprep.subr.mxu0 0.0
  %2313 = vmatpush1.msra.mxu0 %v2180
  %2314 = vmatprep.subr.mxu0 0.0
  %2315 = vmatpush1.msra.mxu0 %v2181
  %2316 = vmatprep.subr.mxu0 0.0
  %2317 = vmatpush1.msra.mxu0 %v2182
  %2318 = vmatprep.subr.mxu0 0.0
  %2319 = vmatpush1.msra.mxu0 %v2183
  %2320 = vmatprep.subr.mxu0 0.0
  %2321 = vmatpush1.msra.mxu0 %v2184
  %2322 = vmatprep.subr.mxu0 0.0
  %2323 = vmatpush1.msra.mxu0 %v2185
  %2324 = vmatprep.subr.mxu0 0.0
  %2325 = vmatpush1.msra.mxu0 %v2186
  %2326 = vmatprep.mubr.f32.mxu0 %v2118
  %2327 = vmatmul.mubr.f32.gmra.mrb[0].mxu0 %v2117
  %v2328 = vpop.f32.mrb[0].mxu0
  %v2329 = vadd.f32 %v2254, %v2328
  %v2330 = vpop.f32.mrb[0].mxu0
  %2331 = vmatprep.mubr.f32.mxu0 %v2122
  %2332 = vmatmul.mubr.f32.gmra.mrb[0].mxu0 %v2121
  %v2333 = vpop.f32.mrb[0].mxu0
  %v2334 = vadd.f32 %v2259, %v2333
  %v2335 = vpop.f32.mrb[0].mxu0
  %2336 = vdwg.mxu0
  %v2337 = vadd.f32 %v1915, %v2329
  %v2338 = vadd.f32 %v1920, %v2334
  %v2339 = vld [vmem:[%s23 + $0x60] sm:$0xff]
  %v2340 = vld [vmem:[%s23 + $0x68] sm:$0xff]
  %v2341 = vld [vmem:[%s23 + $0x70] sm:$0xff]
  %v2342 = vld [vmem:[%s23 + $0x78] sm:$0xff]
  %v2343 = vld [vmem:[%s23 + $0xe0] sm:$0xff]
  %v2344 = vld [vmem:[%s23 + $0xe8] sm:$0xff]
  %v2345 = vld [vmem:[%s23 + $0xf0] sm:$0xff]
  %v2346 = vld [vmem:[%s23 + $0xf8] sm:$0xff]
  %v2347 = vld [vmem:[%s23 + $0x160] sm:$0xff]
  %v2348 = vld [vmem:[%s23 + $0x168] sm:$0xff]
  %v2349 = vld [vmem:[%s23 + $0x170] sm:$0xff]
  %v2350 = vld [vmem:[%s23 + $0x178] sm:$0xff]
  %v2351 = vld [vmem:[%s23 + $0x1e0] sm:$0xff]
  %v2352 = vld [vmem:[%s23 + $0x1e8] sm:$0xff]
  %v2353 = vld [vmem:[%s23 + $0x1f0] sm:$0xff]
  %v2354 = vld [vmem:[%s23 + $0x1f8] sm:$0xff]
  %v2355 = vld [vmem:[%s25 + $0xc] sm:$0xf]
  %v2357 = vlaneseq
  %v2358 = vshrl.u32 %v2357, 7
  %v2359 = vsub.s32 0, %v2358
  %v2360 = vrot.slane %v2355, %v2359
  %v2361 = vlaneseq
  %v2362 = vshrl.u32 %v2361, 7
  %v2363 = vsub.s32 1, %v2362
  %v2364 = vrot.slane %v2355, %v2363
  %v2365 = vlaneseq
  %v2366 = vshrl.u32 %v2365, 7
  %v2367 = vsub.s32 2, %v2366
  %v2368 = vrot.slane %v2355, %v2367
  %v2369 = vlaneseq
  %v2370 = vshrl.u32 %v2369, 7
  %v2371 = vsub.s32 3, %v2370
  %v2372 = vrot.slane %v2355, %v2371
  %2377 = vmatprep.subr.mxu0 %v2340
  %2378 = vmatpush1.msra.mxu0 %v2339
  %2379 = vmatprep.subr.mxu0 %v2344
  %2380 = vmatpush1.msra.mxu0 %v2343
  %2381 = vmatprep.subr.mxu0 %v2348
  %2382 = vmatpush1.msra.mxu0 %v2347
  %2383 = vmatprep.subr.mxu0 %v2352
  %2384 = vmatpush1.msra.mxu0 %v2351
  %2385 = vmatprep.subr.mxu0 0.0
  %2386 = vmatpush1.msra.mxu0 0.0
  %2387 = vmatprep.subr.mxu0 0.0
  %2388 = vmatpush1.msra.mxu0 0.0
  %2389 = vmatprep.subr.mxu0 0.0
  %2390 = vmatpush1.msra.mxu0 0.0
  %2391 = vmatprep.subr.mxu0 0.0
  %2392 = vmatpush1.msra.mxu0 0.0
  %2393 = vmatprep.subr.mxu0 0.0
  %2394 = vmatpush1.msra.mxu0 0.0
  %2395 = vmatprep.subr.mxu0 0.0
  %2396 = vmatpush1.msra.mxu0 0.0
  %2397 = vmatprep.subr.mxu0 0.0
  %2398 = vmatpush1.msra.mxu0 0.0
  %2399 = vmatprep.subr.mxu0 0.0
  %2400 = vmatpush1.msra.mxu0 0.0
  %2401 = vmatprep.subr.mxu0 0.0
  %2402 = vmatpush1.msra.mxu0 0.0
  %2403 = vmatprep.subr.mxu0 0.0
  %2404 = vmatpush1.msra.mxu0 0.0
  %2405 = vmatprep.subr.mxu0 0.0
  %2406 = vmatpush1.msra.mxu0 0.0
  %2407 = vmatprep.subr.mxu0 0.0
  %2408 = vmatpush1.msra.mxu0 0.0
  %2409 = vmatprep.subr.mxu0 0.0
  %2410 = vmatpush1.msra.mxu0 0.0
  %2411 = vmatprep.subr.mxu0 0.0
  %2412 = vmatpush1.msra.mxu0 0.0
  %2413 = vmatprep.subr.mxu0 0.0
  %2414 = vmatpush1.msra.mxu0 0.0
  %2415 = vmatprep.subr.mxu0 0.0
  %2416 = vmatpush1.msra.mxu0 0.0
  %2417 = vmatprep.subr.mxu0 0.0
  %2418 = vmatpush1.msra.mxu0 0.0
  %2419 = vmatprep.subr.mxu0 0.0
  %2420 = vmatpush1.msra.mxu0 0.0
  %2421 = vmatprep.subr.mxu0 0.0
  %2422 = vmatpush1.msra.mxu0 0.0
  %2423 = vmatprep.subr.mxu0 0.0
  %2424 = vmatpush1.msra.mxu0 0.0
  %2425 = vmatprep.subr.mxu0 0.0
  %2426 = vmatpush1.msra.mxu0 0.0
  %2427 = vmatprep.subr.mxu0 0.0
  %2428 = vmatpush1.msra.mxu0 0.0
  %2429 = vmatprep.subr.mxu0 0.0
  %2430 = vmatpush1.msra.mxu0 0.0
  %2431 = vmatprep.subr.mxu0 0.0
  %2432 = vmatpush1.msra.mxu0 0.0
  %2433 = vmatprep.subr.mxu0 0.0
  %2434 = vmatpush1.msra.mxu0 0.0
  %2435 = vmatprep.subr.mxu0 0.0
  %2436 = vmatpush1.msra.mxu0 0.0
  %2437 = vmatprep.subr.mxu0 0.0
  %2438 = vmatpush1.msra.mxu0 0.0
  %2439 = vmatprep.subr.mxu0 0.0
  %2440 = vmatpush1.msra.mxu0 0.0
  %2441 = vmatprep.mubr.f32.mxu0 0.0
  %2442 = vmatmul.mubr.f32.gmra.mrb[0].mxu0 %v1128
  %v2443 = vpop.f32.mrb[0].mxu0
  %v2444 = vadd.f32 %v2360, %v2443
  %v2445 = vpop.f32.mrb[0].mxu0
  %v2446 = vadd.f32 %v2364, %v2445
  %2447 = vmatprep.mubr.f32.mxu0 0.0
  %2448 = vmatmul.mubr.f32.gmra.mrb[0].mxu0 %v1131
  %v2449 = vpop.f32.mrb[0].mxu0
  %v2450 = vadd.f32 %v2360, %v2449
  %v2451 = vpop.f32.mrb[0].mxu0
  %v2452 = vadd.f32 %v2364, %v2451
  %2453 = vdwg.mxu0
  %2454 = vmatprep.subr.mxu0 %v2342
  %2455 = vmatpush1.msra.mxu0 %v2341
  %2456 = vmatprep.subr.mxu0 %v2346
  %2457 = vmatpush1.msra.mxu0 %v2345
  %2458 = vmatprep.subr.mxu0 %v2350
  %2459 = vmatpush1.msra.mxu0 %v2349
  %2460 = vmatprep.subr.mxu0 %v2354
  %2461 = vmatpush1.msra.mxu0 %v2353
  %2462 = vmatprep.subr.mxu0 0.0
  %2463 = vmatpush1.msra.mxu0 0.0
  %2464 = vmatprep.subr.mxu0 0.0
  %2465 = vmatpush1.msra.mxu0 0.0
  %2466 = vmatprep.subr.mxu0 0.0
  %2467 = vmatpush1.msra.mxu0 0.0
  %2468 = vmatprep.subr.mxu0 0.0
  %2469 = vmatpush1.msra.mxu0 0.0
  %2470 = vmatprep.subr.mxu0 0.0
  %2471 = vmatpush1.msra.mxu0 0.0
  %2472 = vmatprep.subr.mxu0 0.0
  %2473 = vmatpush1.msra.mxu0 0.0
  %2474 = vmatprep.subr.mxu0 0.0
  %2475 = vmatpush1.msra.mxu0 0.0
  %2476 = vmatprep.subr.mxu0 0.0
  %2477 = vmatpush1.msra.mxu0 0.0
  %2478 = vmatprep.subr.mxu0 0.0
  %2479 = vmatpush1.msra.mxu0 0.0
  %2480 = vmatprep.subr.mxu0 0.0
  %2481 = vmatpush1.msra.mxu0 0.0
  %2482 = vmatprep.subr.mxu0 0.0
  %2483 = vmatpush1.msra.mxu0 0.0
  %2484 = vmatprep.subr.mxu0 0.0
  %2485 = vmatpush1.msra.mxu0 0.0
  %2486 = vmatprep.subr.mxu0 0.0
  %2487 = vmatpush1.msra.mxu0 0.0
  %2488 = vmatprep.subr.mxu0 0.0
  %2489 = vmatpush1.msra.mxu0 0.0
  %2490 = vmatprep.subr.mxu0 0.0
  %2491 = vmatpush1.msra.mxu0 0.0
  %2492 = vmatprep.subr.mxu0 0.0
  %2493 = vmatpush1.msra.mxu0 0.0
  %2494 = vmatprep.subr.mxu0 0.0
  %2495 = vmatpush1.msra.mxu0 0.0
  %2496 = vmatprep.subr.mxu0 0.0
  %2497 = vmatpush1.msra.mxu0 0.0
  %2498 = vmatprep.subr.mxu0 0.0
  %2499 = vmatpush1.msra.mxu0 0.0
  %2500 = vmatprep.subr.mxu0 0.0
  %2501 = vmatpush1.msra.mxu0 0.0
  %2502 = vmatprep.subr.mxu0 0.0
  %2503 = vmatpush1.msra.mxu0 0.0
  %2504 = vmatprep.subr.mxu0 0.0
  %2505 = vmatpush1.msra.mxu0 0.0
  %2506 = vmatprep.subr.mxu0 0.0
  %2507 = vmatpush1.msra.mxu0 0.0
  %2508 = vmatprep.subr.mxu0 0.0
  %2509 = vmatpush1.msra.mxu0 0.0
  %2510 = vmatprep.subr.mxu0 0.0
  %2511 = vmatpush1.msra.mxu0 0.0
  %2512 = vmatprep.subr.mxu0 0.0
  %2513 = vmatpush1.msra.mxu0 0.0
  %2514 = vmatprep.subr.mxu0 0.0
  %2515 = vmatpush1.msra.mxu0 0.0
  %2516 = vmatprep.subr.mxu0 0.0
  %2517 = vmatpush1.msra.mxu0 0.0
  %2518 = vmatprep.mubr.f32.mxu0 0.0
  %2519 = vmatmul.mubr.f32.gmra.mrb[0].mxu0 %v1128
  %v2520 = vpop.f32.mrb[0].mxu0
  %v2521 = vadd.f32 %v2368, %v2520
  %v2522 = vpop.f32.mrb[0].mxu0
  %v2523 = vadd.f32 %v2372, %v2522
  %2524 = vmatprep.mubr.f32.mxu0 0.0
  %2525 = vmatmul.mubr.f32.gmra.mrb[0].mxu0 %v1131
  %v2526 = vpop.f32.mrb[0].mxu0
  %v2527 = vadd.f32 %v2368, %v2526
  %v2528 = vpop.f32.mrb[0].mxu0
  %v2529 = vadd.f32 %v2372, %v2528
  %2530 = vdwg.mxu0
  %v2531 = vmax.f32 %v2444, 0.0
  %v2532 = vmax.f32 %v2446, 0.0
  %v2533 = vmax.f32 %v2521, 0.0
  %v2534 = vmax.f32 %v2523, 0.0
  %v2535 = vmax.f32 %v2450, 0.0
  %v2536 = vmax.f32 %v2452, 0.0
  %v2537 = vmax.f32 %v2527, 0.0
  %v2538 = vmax.f32 %v2529, 0.0
  %v2539 = vld [vmem:[%s27 + $0x600] sm:$0xff]
  %v2540 = vld [vmem:[%s27 + $0x608] sm:$0xff]
  %v2541 = vld [vmem:[%s27 + $0x610] sm:$0xff]
  %v2542 = vld [vmem:[%s27 + $0x618] sm:$0xff]
  %v2543 = vld [vmem:[%s27 + $0x620] sm:$0xff]
  %v2544 = vld [vmem:[%s27 + $0x628] sm:$0xff]
  %v2545 = vld [vmem:[%s27 + $0x630] sm:$0xff]
  %v2546 = vld [vmem:[%s27 + $0x638] sm:$0xff]
  %v2547 = vld [vmem:[%s27 + $0x640] sm:$0xff]
  %v2548 = vld [vmem:[%s27 + $0x648] sm:$0xff]
  %v2549 = vld [vmem:[%s27 + $0x650] sm:$0xff]
  %v2550 = vld [vmem:[%s27 + $0x658] sm:$0xff]
  %v2551 = vld [vmem:[%s27 + $0x660] sm:$0xff]
  %v2552 = vld [vmem:[%s27 + $0x668] sm:$0xff]
  %v2553 = vld [vmem:[%s27 + $0x670] sm:$0xff]
  %v2554 = vld [vmem:[%s27 + $0x678] sm:$0xff]
  %v2555 = vld [vmem:[%s27 + $0x680] sm:$0xff]
  %v2556 = vld [vmem:[%s27 + $0x688] sm:$0xff]
  %v2557 = vld [vmem:[%s27 + $0x690] sm:$0xff]
  %v2558 = vld [vmem:[%s27 + $0x698] sm:$0xff]
  %v2559 = vld [vmem:[%s27 + $0x6a0] sm:$0xff]
  %v2560 = vld [vmem:[%s27 + $0x6a8] sm:$0xff]
  %v2561 = vld [vmem:[%s27 + $0x6b0] sm:$0xff]
  %v2562 = vld [vmem:[%s27 + $0x6b8] sm:$0xff]
  %v2563 = vld [vmem:[%s27 + $0x6c0] sm:$0xff]
  %v2564 = vld [vmem:[%s27 + $0x6c8] sm:$0xff]
  %v2565 = vld [vmem:[%s27 + $0x6d0] sm:$0xff]
  %v2566 = vld [vmem:[%s27 + $0x6d8] sm:$0xff]
  %v2567 = vld [vmem:[%s27 + $0x6e0] sm:$0xff]
  %v2568 = vld [vmem:[%s27 + $0x6e8] sm:$0xff]
  %v2569 = vld [vmem:[%s27 + $0x6f0] sm:$0xff]
  %v2570 = vld [vmem:[%s27 + $0x6f8] sm:$0xff]
  %v2571 = vld [vmem:[%s27 + $0x700] sm:$0xff]
  %v2572 = vld [vmem:[%s27 + $0x708] sm:$0xff]
  %v2573 = vld [vmem:[%s27 + $0x710] sm:$0xff]
  %v2574 = vld [vmem:[%s27 + $0x718] sm:$0xff]
  %v2575 = vld [vmem:[%s27 + $0x720] sm:$0xff]
  %v2576 = vld [vmem:[%s27 + $0x728] sm:$0xff]
  %v2577 = vld [vmem:[%s27 + $0x730] sm:$0xff]
  %v2578 = vld [vmem:[%s27 + $0x738] sm:$0xff]
  %v2579 = vld [vmem:[%s27 + $0x740] sm:$0xff]
  %v2580 = vld [vmem:[%s27 + $0x748] sm:$0xff]
  %v2581 = vld [vmem:[%s27 + $0x750] sm:$0xff]
  %v2582 = vld [vmem:[%s27 + $0x758] sm:$0xff]
  %v2583 = vld [vmem:[%s27 + $0x760] sm:$0xff]
  %v2584 = vld [vmem:[%s27 + $0x768] sm:$0xff]
  %v2585 = vld [vmem:[%s27 + $0x770] sm:$0xff]
  %v2586 = vld [vmem:[%s27 + $0x778] sm:$0xff]
  %v2587 = vld [vmem:[%s27 + $0x780] sm:$0xff]
  %v2588 = vld [vmem:[%s27 + $0x788] sm:$0xff]
  %v2589 = vld [vmem:[%s27 + $0x790] sm:$0xff]
  %v2590 = vld [vmem:[%s27 + $0x798] sm:$0xff]
  %v2591 = vld [vmem:[%s27 + $0x7a0] sm:$0xff]
  %v2592 = vld [vmem:[%s27 + $0x7a8] sm:$0xff]
  %v2593 = vld [vmem:[%s27 + $0x7b0] sm:$0xff]
  %v2594 = vld [vmem:[%s27 + $0x7b8] sm:$0xff]
  %v2595 = vld [vmem:[%s27 + $0x7c0] sm:$0xff]
  %v2596 = vld [vmem:[%s27 + $0x7c8] sm:$0xff]
  %v2597 = vld [vmem:[%s27 + $0x7d0] sm:$0xff]
  %v2598 = vld [vmem:[%s27 + $0x7d8] sm:$0xff]
  %v2599 = vld [vmem:[%s27 + $0x7e0] sm:$0xff]
  %v2600 = vld [vmem:[%s27 + $0x7e8] sm:$0xff]
  %v2601 = vld [vmem:[%s27 + $0x7f0] sm:$0xff]
  %v2602 = vld [vmem:[%s27 + $0x7f8] sm:$0xff]
  %2603 = vmatprep.subr.mxu0 0.0
  %2604 = vmatpush1.msra.mxu0 %v2539
  %2605 = vmatprep.subr.mxu0 0.0
  %2606 = vmatpush1.msra.mxu0 %v2540
  %2607 = vmatprep.subr.mxu0 0.0
  %2608 = vmatpush1.msra.mxu0 %v2541
  %2609 = vmatprep.subr.mxu0 0.0
  %2610 = vmatpush1.msra.mxu0 %v2542
  %2611 = vmatprep.subr.mxu0 0.0
  %2612 = vmatpush1.msra.mxu0 %v2543
  %2613 = vmatprep.subr.mxu0 0.0
  %2614 = vmatpush1.msra.mxu0 %v2544
  %2615 = vmatprep.subr.mxu0 0.0
  %2616 = vmatpush1.msra.mxu0 %v2545
  %2617 = vmatprep.subr.mxu0 0.0
  %2618 = vmatpush1.msra.mxu0 %v2546
  %2619 = vmatprep.subr.mxu0 0.0
  %2620 = vmatpush1.msra.mxu0 %v2547
  %2621 = vmatprep.subr.mxu0 0.0
  %2622 = vmatpush1.msra.mxu0 %v2548
  %2623 = vmatprep.subr.mxu0 0.0
  %2624 = vmatpush1.msra.mxu0 %v2549
  %2625 = vmatprep.subr.mxu0 0.0
  %2626 = vmatpush1.msra.mxu0 %v2550
  %2627 = vmatprep.subr.mxu0 0.0
  %2628 = vmatpush1.msra.mxu0 %v2551
  %2629 = vmatprep.subr.mxu0 0.0
  %2630 = vmatpush1.msra.mxu0 %v2552
  %2631 = vmatprep.subr.mxu0 0.0
  %2632 = vmatpush1.msra.mxu0 %v2553
  %2633 = vmatprep.subr.mxu0 0.0
  %2634 = vmatpush1.msra.mxu0 %v2554
  %2635 = vmatprep.subr.mxu0 0.0
  %2636 = vmatpush1.msra.mxu0 %v2555
  %2637 = vmatprep.subr.mxu0 0.0
  %2638 = vmatpush1.msra.mxu0 %v2556
  %2639 = vmatprep.subr.mxu0 0.0
  %2640 = vmatpush1.msra.mxu0 %v2557
  %2641 = vmatprep.subr.mxu0 0.0
  %2642 = vmatpush1.msra.mxu0 %v2558
  %2643 = vmatprep.subr.mxu0 0.0
  %2644 = vmatpush1.msra.mxu0 %v2559
  %2645 = vmatprep.subr.mxu0 0.0
  %2646 = vmatpush1.msra.mxu0 %v2560
  %2647 = vmatprep.subr.mxu0 0.0
  %2648 = vmatpush1.msra.mxu0 %v2561
  %2649 = vmatprep.subr.mxu0 0.0
  %2650 = vmatpush1.msra.mxu0 %v2562
  %2651 = vmatprep.subr.mxu0 0.0
  %2652 = vmatpush1.msra.mxu0 %v2563
  %2653 = vmatprep.subr.mxu0 0.0
  %2654 = vmatpush1.msra.mxu0 %v2564
  %2655 = vmatprep.subr.mxu0 0.0
  %2656 = vmatpush1.msra.mxu0 %v2565
  %2657 = vmatprep.subr.mxu0 0.0
  %2658 = vmatpush1.msra.mxu0 %v2566
  %2659 = vmatprep.subr.mxu0 0.0
  %2660 = vmatpush1.msra.mxu0 %v2567
  %2661 = vmatprep.subr.mxu0 0.0
  %2662 = vmatpush1.msra.mxu0 %v2568
  %2663 = vmatprep.subr.mxu0 0.0
  %2664 = vmatpush1.msra.mxu0 %v2569
  %2665 = vmatprep.subr.mxu0 0.0
  %2666 = vmatpush1.msra.mxu0 %v2570
  %2667 = vmatprep.mubr.f32.mxu0 %v2532
  %2668 = vmatmul.mubr.f32.gmra.mrb[0].mxu0 %v2531
  %v2669 = vpop.f32.mrb[0].mxu0
  %v2670 = vadd.f32 0.0, %v2669
  %v2671 = vpop.f32.mrb[0].mxu0
  %2672 = vmatprep.mubr.f32.mxu0 %v2536
  %2673 = vmatmul.mubr.f32.gmra.mrb[0].mxu0 %v2535
  %v2674 = vpop.f32.mrb[0].mxu0
  %v2675 = vadd.f32 0.0, %v2674
  %v2676 = vpop.f32.mrb[0].mxu0
  %2677 = vdwg.mxu0
  %2678 = vmatprep.subr.mxu0 0.0
  %2679 = vmatpush1.msra.mxu0 %v2571
  %2680 = vmatprep.subr.mxu0 0.0
  %2681 = vmatpush1.msra.mxu0 %v2572
  %2682 = vmatprep.subr.mxu0 0.0
  %2683 = vmatpush1.msra.mxu0 %v2573
  %2684 = vmatprep.subr.mxu0 0.0
  %2685 = vmatpush1.msra.mxu0 %v2574
  %2686 = vmatprep.subr.mxu0 0.0
  %2687 = vmatpush1.msra.mxu0 %v2575
  %2688 = vmatprep.subr.mxu0 0.0
  %2689 = vmatpush1.msra.mxu0 %v2576
  %2690 = vmatprep.subr.mxu0 0.0
  %2691 = vmatpush1.msra.mxu0 %v2577
  %2692 = vmatprep.subr.mxu0 0.0
  %2693 = vmatpush1.msra.mxu0 %v2578
  %2694 = vmatprep.subr.mxu0 0.0
  %2695 = vmatpush1.msra.mxu0 %v2579
  %2696 = vmatprep.subr.mxu0 0.0
  %2697 = vmatpush1.msra.mxu0 %v2580
  %2698 = vmatprep.subr.mxu0 0.0
  %2699 = vmatpush1.msra.mxu0 %v2581
  %2700 = vmatprep.subr.mxu0 0.0
  %2701 = vmatpush1.msra.mxu0 %v2582
  %2702 = vmatprep.subr.mxu0 0.0
  %2703 = vmatpush1.msra.mxu0 %v2583
  %2704 = vmatprep.subr.mxu0 0.0
  %2705 = vmatpush1.msra.mxu0 %v2584
  %2706 = vmatprep.subr.mxu0 0.0
  %2707 = vmatpush1.msra.mxu0 %v2585
  %2708 = vmatprep.subr.mxu0 0.0
  %2709 = vmatpush1.msra.mxu0 %v2586
  %2710 = vmatprep.subr.mxu0 0.0
  %2711 = vmatpush1.msra.mxu0 %v2587
  %2712 = vmatprep.subr.mxu0 0.0
  %2713 = vmatpush1.msra.mxu0 %v2588
  %2714 = vmatprep.subr.mxu0 0.0
  %2715 = vmatpush1.msra.mxu0 %v2589
  %2716 = vmatprep.subr.mxu0 0.0
  %2717 = vmatpush1.msra.mxu0 %v2590
  %2718 = vmatprep.subr.mxu0 0.0
  %2719 = vmatpush1.msra.mxu0 %v2591
  %2720 = vmatprep.subr.mxu0 0.0
  %2721 = vmatpush1.msra.mxu0 %v2592
  %2722 = vmatprep.subr.mxu0 0.0
  %2723 = vmatpush1.msra.mxu0 %v2593
  %2724 = vmatprep.subr.mxu0 0.0
  %2725 = vmatpush1.msra.mxu0 %v2594
  %2726 = vmatprep.subr.mxu0 0.0
  %2727 = vmatpush1.msra.mxu0 %v2595
  %2728 = vmatprep.subr.mxu0 0.0
  %2729 = vmatpush1.msra.mxu0 %v2596
  %2730 = vmatprep.subr.mxu0 0.0
  %2731 = vmatpush1.msra.mxu0 %v2597
  %2732 = vmatprep.subr.mxu0 0.0
  %2733 = vmatpush1.msra.mxu0 %v2598
  %2734 = vmatprep.subr.mxu0 0.0
  %2735 = vmatpush1.msra.mxu0 %v2599
  %2736 = vmatprep.subr.mxu0 0.0
  %2737 = vmatpush1.msra.mxu0 %v2600
  %2738 = vmatprep.subr.mxu0 0.0
  %2739 = vmatpush1.msra.mxu0 %v2601
  %2740 = vmatprep.subr.mxu0 0.0
  %2741 = vmatpush1.msra.mxu0 %v2602
  %2742 = vmatprep.mubr.f32.mxu0 %v2534
  %2743 = vmatmul.mubr.f32.gmra.mrb[0].mxu0 %v2533
  %v2744 = vpop.f32.mrb[0].mxu0
  %v2745 = vadd.f32 %v2670, %v2744
  %v2746 = vpop.f32.mrb[0].mxu0
  %2747 = vmatprep.mubr.f32.mxu0 %v2538
  %2748 = vmatmul.mubr.f32.gmra.mrb[0].mxu0 %v2537
  %v2749 = vpop.f32.mrb[0].mxu0
  %v2750 = vadd.f32 %v2675, %v2749
  %v2751 = vpop.f32.mrb[0].mxu0
  %2752 = vdwg.mxu0
  %v2753 = vadd.f32 %v2337, %v2745
  %v2754 = vadd.f32 %v2338, %v2750
  %v2755 = vld [vmem:[%s29] sm:$0x1]
  %v2757 = vlaneseq
  %v2758 = vshrl.u32 %v2757, 7
  %v2759 = vsub.s32 0, %v2758
  %v2760 = vrot.slane %v2755, %v2759
  %v2762 = vadd.f32 %v2753, %v2760
  %v2763 = vadd.f32 %v2754, %v2760
  %v2764 = vadd.f32 %v1087, %v2762
  %v2765 = vadd.f32 %v1088, %v2763
  %v2766 = vld [vmem:[%s31] sm:$0x1]
  %v2767 = vld [vmem:[%s33] sm:$0x1]
  %v2768 = vsel %vm250, %v2764, 0.0
  %2769 = vadd.xlane.f32.xlu0 %v2768
  %v2770 = vpop.xlane.xlu0 %2769
  %v2771 = vsel %vm250, %v2765, 0.0
  %2772 = vadd.xlane.f32.xlu0 %v2771
  %v2773 = vpop.xlane.xlu0 %2772
  %v2774 = vmul.f32 %v2770, %v1052
  %v2775 = vmul.f32 %v2773, %v1052
  %v2776 = vsub.f32 %v2764, %v2774
  %v2777 = vsub.f32 %v2765, %v2775
  %v2778 = vmul.f32 %v2776, %v2776
  %v2779 = vmul.f32 %v2777, %v2777
  %v2780 = vsel %vm250, %v2778, 0.0
  %2781 = vadd.xlane.f32.xlu0 %v2780
  %v2782 = vpop.xlane.xlu0 %2781
  %v2783 = vsel %vm250, %v2779, 0.0
  %2784 = vadd.xlane.f32.xlu0 %v2783
  %v2785 = vpop.xlane.xlu0 %2784
  %v2786 = vmul.f32 %v2782, %v1052
  %v2787 = vmul.f32 %v2785, %v1052
  %v2788 = vadd.f32 %v2786, 1e-05
  %v2789 = vadd.f32 %v2787, 1e-05
  %v2790 = vrsqrt.pop %v2788
  %v2791 = vrsqrt.pop %v2789
  %v2792 = vmul.f32 %v2776, %v2790
  %v2793 = vmul.f32 %v2777, %v2791
  %v2795 = vlaneseq
  %v2796 = vshrl.u32 %v2795, 7
  %v2797 = vsub.s32 0, %v2796
  %v2798 = vrot.slane %v2766, %v2797
  %v2800 = vmul.f32 %v2792, %v2798
  %v2801 = vmul.f32 %v2793, %v2798
  %v2803 = vlaneseq
  %v2804 = vshrl.u32 %v2803, 7
  %v2805 = vsub.s32 0, %v2804
  %v2806 = vrot.slane %v2767, %v2805
  %v2808 = vadd.f32 %v2800, %v2806
  %v2809 = vadd.f32 %v2801, %v2806
  %v2810 = vld [vmem:[%s35] sm:$0xff]
  %v2811 = vld [vmem:[%s35 + $0x8] sm:$0xff]
  %v2812 = vld [vmem:[%s35 + $0x10] sm:$0xff]
  %v2813 = vld [vmem:[%s35 + $0x18] sm:$0xff]
  %v2814 = vld [vmem:[%s37] sm:$0x1]
  %v2816 = vlaneseq
  %v2817 = vshrl.u32 %v2816, 7
  %v2818 = vsub.s32 0, %v2817
  %v2819 = vrot.slane %v2814, %v2818
  %v2822 = vsel %vm250, %v2808, 0
  %v2825 = vsel %vm250, %v2809, 0
  %2827 = vmatprep.subr.mxu0 0.0
  %2828 = vmatpush1.msra.mxu0 %v2810
  %2829 = vmatprep.subr.mxu0 0.0
  %2830 = vmatpush1.msra.mxu0 %v2811
  %2831 = vmatprep.subr.mxu0 0.0
  %2832 = vmatpush1.msra.mxu0 %v2812
  %2833 = vmatprep.subr.mxu0 0.0
  %2834 = vmatpush1.msra.mxu0 %v2813
  %2835 = vmatprep.subr.mxu0 0.0
  %2836 = vmatpush1.msra.mxu0 0.0
  %2837 = vmatprep.subr.mxu0 0.0
  %2838 = vmatpush1.msra.mxu0 0.0
  %2839 = vmatprep.subr.mxu0 0.0
  %2840 = vmatpush1.msra.mxu0 0.0
  %2841 = vmatprep.subr.mxu0 0.0
  %2842 = vmatpush1.msra.mxu0 0.0
  %2843 = vmatprep.subr.mxu0 0.0
  %2844 = vmatpush1.msra.mxu0 0.0
  %2845 = vmatprep.subr.mxu0 0.0
  %2846 = vmatpush1.msra.mxu0 0.0
  %2847 = vmatprep.subr.mxu0 0.0
  %2848 = vmatpush1.msra.mxu0 0.0
  %2849 = vmatprep.subr.mxu0 0.0
  %2850 = vmatpush1.msra.mxu0 0.0
  %2851 = vmatprep.subr.mxu0 0.0
  %2852 = vmatpush1.msra.mxu0 0.0
  %2853 = vmatprep.subr.mxu0 0.0
  %2854 = vmatpush1.msra.mxu0 0.0
  %2855 = vmatprep.subr.mxu0 0.0
  %2856 = vmatpush1.msra.mxu0 0.0
  %2857 = vmatprep.subr.mxu0 0.0
  %2858 = vmatpush1.msra.mxu0 0.0
  %2859 = vmatprep.subr.mxu0 0.0
  %2860 = vmatpush1.msra.mxu0 0.0
  %2861 = vmatprep.subr.mxu0 0.0
  %2862 = vmatpush1.msra.mxu0 0.0
  %2863 = vmatprep.subr.mxu0 0.0
  %2864 = vmatpush1.msra.mxu0 0.0
  %2865 = vmatprep.subr.mxu0 0.0
  %2866 = vmatpush1.msra.mxu0 0.0
  %2867 = vmatprep.subr.mxu0 0.0
  %2868 = vmatpush1.msra.mxu0 0.0
  %2869 = vmatprep.subr.mxu0 0.0
  %2870 = vmatpush1.msra.mxu0 0.0
  %2871 = vmatprep.subr.mxu0 0.0
  %2872 = vmatpush1.msra.mxu0 0.0
  %2873 = vmatprep.subr.mxu0 0.0
  %2874 = vmatpush1.msra.mxu0 0.0
  %2875 = vmatprep.subr.mxu0 0.0
  %2876 = vmatpush1.msra.mxu0 0.0
  %2877 = vmatprep.subr.mxu0 0.0
  %2878 = vmatpush1.msra.mxu0 0.0
  %2879 = vmatprep.subr.mxu0 0.0
  %2880 = vmatpush1.msra.mxu0 0.0
  %2881 = vmatprep.subr.mxu0 0.0
  %2882 = vmatpush1.msra.mxu0 0.0
  %2883 = vmatprep.subr.mxu0 0.0
  %2884 = vmatpush1.msra.mxu0 0.0
  %2885 = vmatprep.subr.mxu0 0.0
  %2886 = vmatpush1.msra.mxu0 0.0
  %2887 = vmatprep.subr.mxu0 0.0
  %2888 = vmatpush1.msra.mxu0 0.0
  %2889 = vmatprep.subr.mxu0 0.0
  %2890 = vmatpush1.msra.mxu0 0.0
  %2891 = vmatprep.mubr.f32.mxu0 0.0
  %2892 = vmatmul.mubr.f32.gmra.mrb[0].mxu0 %v2822
  %v2893 = vpop.f32.mrb[0].mxu0
  %v2894 = vadd.f32 %v2819, %v2893
  %v2895 = vpop.f32.mrb[0].mxu0
  %2896 = vmatprep.mubr.f32.mxu0 0.0
  %2897 = vmatmul.mubr.f32.gmra.mrb[0].mxu0 %v2825
  %v2898 = vpop.f32.mrb[0].mxu0
  %v2899 = vadd.f32 %v2819, %v2898
  %v2900 = vpop.f32.mrb[0].mxu0
  %2901 = vdwg.mxu0
  %v2902 = vmul.f32 %v2894, %v341
  %v2903 = vmul.f32 %v2894, %v343
  %v2904 = vmul.f32 %v2894, %v345
  %v2905 = vmul.f32 %v2894, %v347
  %v2906 = vmul.f32 %v2894, %v349
  %v2907 = vmul.f32 %v2894, %v351
  %v2908 = vmul.f32 %v2894, %v353
  %v2909 = vmul.f32 %v2894, %v355
  %v2910 = vmul.f32 %v2899, %v341
  %v2911 = vmul.f32 %v2899, %v343
  %v2912 = vmul.f32 %v2899, %v345
  %v2913 = vmul.f32 %v2899, %v347
  %v2914 = vmul.f32 %v2899, %v349
  %v2915 = vmul.f32 %v2899, %v351
  %v2916 = vmul.f32 %v2899, %v353
  %v2917 = vmul.f32 %v2899, %v355
  %v2918 = vmul.f32 %v2894, %v381
  %v2919 = vmul.f32 %v2894, %v383
  %v2920 = vmul.f32 %v2894, %v385
  %v2921 = vmul.f32 %v2894, %v387
  %v2922 = vmul.f32 %v2894, %v389
  %v2923 = vmul.f32 %v2894, %v391
  %v2924 = vmul.f32 %v2894, %v393
  %v2925 = vmul.f32 %v2894, %v395
  %v2926 = vmul.f32 %v2899, %v381
  %v2927 = vmul.f32 %v2899, %v383
  %v2928 = vmul.f32 %v2899, %v385
  %v2929 = vmul.f32 %v2899, %v387
  %v2930 = vmul.f32 %v2899, %v389
  %v2931 = vmul.f32 %v2899, %v391
  %v2932 = vmul.f32 %v2899, %v393
  %v2933 = vmul.f32 %v2899, %v395
  %2942 = vrot.lane.b32.xlu0 %v2902, 96
  %v2943 = vpop.permute.xlu0 %2942
  %2944 = vrot.lane.b32.xlu0 %v2903, 96
  %v2945 = vpop.permute.xlu0 %2944
  %2946 = vrot.lane.b32.xlu0 %v2904, 96
  %v2947 = vpop.permute.xlu0 %2946
  %2948 = vrot.lane.b32.xlu0 %v2905, 96
  %v2949 = vpop.permute.xlu0 %2948
  %2950 = vrot.lane.b32.xlu0 %v2906, 96
  %v2951 = vpop.permute.xlu0 %2950
  %2952 = vrot.lane.b32.xlu0 %v2907, 96
  %v2953 = vpop.permute.xlu0 %2952
  %2954 = vrot.lane.b32.xlu0 %v2908, 96
  %v2955 = vpop.permute.xlu0 %2954
  %2956 = vrot.lane.b32.xlu0 %v2909, 96
  %v2957 = vpop.permute.xlu0 %2956
  %v2959 = vsel %vm250, %v2894, 0
  %v2961 = vsel %vm250, %v2943, 0
  %v2963 = vsel %vm250, %v2945, 0
  %v2965 = vsel %vm250, %v2947, 0
  %v2967 = vsel %vm250, %v2949, 0
  %v2969 = vsel %vm250, %v2951, 0
  %v2971 = vsel %vm250, %v2953, 0
  %v2973 = vsel %vm250, %v2955, 0
  %v2975 = vsel %vm250, %v2957, 0
  %2977 = vmatprep.subr.mxu0 0.0
  %2978 = vmatpush1.xpose.msra.mxu0 %v2961
  %2979 = vmatprep.subr.mxu0 0.0
  %2980 = vmatpush1.xpose.msra.mxu0 %v2963
  %2981 = vmatprep.subr.mxu0 0.0
  %2982 = vmatpush1.xpose.msra.mxu0 %v2965
  %2983 = vmatprep.subr.mxu0 0.0
  %2984 = vmatpush1.xpose.msra.mxu0 %v2967
  %2985 = vmatprep.subr.mxu0 0.0
  %2986 = vmatpush1.xpose.msra.mxu0 %v2969
  %2987 = vmatprep.subr.mxu0 0.0
  %2988 = vmatpush1.xpose.msra.mxu0 %v2971
  %2989 = vmatprep.subr.mxu0 0.0
  %2990 = vmatpush1.xpose.msra.mxu0 %v2973
  %2991 = vmatprep.subr.mxu0 0.0
  %2992 = vmatpush1.xpose.msra.mxu0 %v2975
  %2993 = vmatprep.subr.mxu0 0.0
  %2994 = vmatpush1.xpose.msra.mxu0 0.0
  %2995 = vmatprep.subr.mxu0 0.0
  %2996 = vmatpush1.xpose.msra.mxu0 0.0
  %2997 = vmatprep.subr.mxu0 0.0
  %2998 = vmatpush1.xpose.msra.mxu0 0.0
  %2999 = vmatprep.subr.mxu0 0.0
  %3000 = vmatpush1.xpose.msra.mxu0 0.0
  %3001 = vmatprep.subr.mxu0 0.0
  %3002 = vmatpush1.xpose.msra.mxu0 0.0
  %3003 = vmatprep.subr.mxu0 0.0
  %3004 = vmatpush1.xpose.msra.mxu0 0.0
  %3005 = vmatprep.subr.mxu0 0.0
  %3006 = vmatpush1.xpose.msra.mxu0 0.0
  %3007 = vmatprep.subr.mxu0 0.0
  %3008 = vmatpush1.xpose.msra.mxu0 0.0
  %3009 = vmatprep.subr.mxu0 0.0
  %3010 = vmatpush1.xpose.msra.mxu0 0.0
  %3011 = vmatprep.subr.mxu0 0.0
  %3012 = vmatpush1.xpose.msra.mxu0 0.0
  %3013 = vmatprep.subr.mxu0 0.0
  %3014 = vmatpush1.xpose.msra.mxu0 0.0
  %3015 = vmatprep.subr.mxu0 0.0
  %3016 = vmatpush1.xpose.msra.mxu0 0.0
  %3017 = vmatprep.subr.mxu0 0.0
  %3018 = vmatpush1.xpose.msra.mxu0 0.0
  %3019 = vmatprep.subr.mxu0 0.0
  %3020 = vmatpush1.xpose.msra.mxu0 0.0
  %3021 = vmatprep.subr.mxu0 0.0
  %3022 = vmatpush1.xpose.msra.mxu0 0.0
  %3023 = vmatprep.subr.mxu0 0.0
  %3024 = vmatpush1.xpose.msra.mxu0 0.0
  %3025 = vmatprep.subr.mxu0 0.0
  %3026 = vmatpush1.xpose.msra.mxu0 0.0
  %3027 = vmatprep.subr.mxu0 0.0
  %3028 = vmatpush1.xpose.msra.mxu0 0.0
  %3029 = vmatprep.subr.mxu0 0.0
  %3030 = vmatpush1.xpose.msra.mxu0 0.0
  %3031 = vmatprep.subr.mxu0 0.0
  %3032 = vmatpush1.xpose.msra.mxu0 0.0
  %3033 = vmatprep.subr.mxu0 0.0
  %3034 = vmatpush1.xpose.msra.mxu0 0.0
  %3035 = vmatprep.subr.mxu0 0.0
  %3036 = vmatpush1.xpose.msra.mxu0 0.0
  %3037 = vmatprep.subr.mxu0 0.0
  %3038 = vmatpush1.xpose.msra.mxu0 0.0
  %3039 = vmatprep.subr.mxu0 0.0
  %3040 = vmatpush1.xpose.msra.mxu0 0.0
  %3041 = vmatprep.mubr.f32.mxu0 0.0
  %3042 = vmatmul.mubr.f32.gmra.mrb[0].mxu0 %v2959
  %v3043 = vpop.f32.mrb[0].mxu0
  %v3044 = vadd.f32 0.0, %v3043
  %v3045 = vpop.f32.mrb[0].mxu0
  %3046 = vdwg.mxu0
  %3055 = vrot.lane.b32.xlu0 %v2910, 96
  %v3056 = vpop.permute.xlu0 %3055
  %3057 = vrot.lane.b32.xlu0 %v2911, 96
  %v3058 = vpop.permute.xlu0 %3057
  %3059 = vrot.lane.b32.xlu0 %v2912, 96
  %v3060 = vpop.permute.xlu0 %3059
  %3061 = vrot.lane.b32.xlu0 %v2913, 96
  %v3062 = vpop.permute.xlu0 %3061
  %3063 = vrot.lane.b32.xlu0 %v2914, 96
  %v3064 = vpop.permute.xlu0 %3063
  %3065 = vrot.lane.b32.xlu0 %v2915, 96
  %v3066 = vpop.permute.xlu0 %3065
  %3067 = vrot.lane.b32.xlu0 %v2916, 96
  %v3068 = vpop.permute.xlu0 %3067
  %3069 = vrot.lane.b32.xlu0 %v2917, 96
  %v3070 = vpop.permute.xlu0 %3069
  %v3072 = vsel %vm250, %v2899, 0
  %v3074 = vsel %vm250, %v3056, 0
  %v3076 = vsel %vm250, %v3058, 0
  %v3078 = vsel %vm250, %v3060, 0
  %v3080 = vsel %vm250, %v3062, 0
  %v3082 = vsel %vm250, %v3064, 0
  %v3084 = vsel %vm250, %v3066, 0
  %v3086 = vsel %vm250, %v3068, 0
  %v3088 = vsel %vm250, %v3070, 0
  %3090 = vmatprep.subr.mxu0 0.0
  %3091 = vmatpush1.xpose.msra.mxu0 %v3074
  %3092 = vmatprep.subr.mxu0 0.0
  %3093 = vmatpush1.xpose.msra.mxu0 %v3076
  %3094 = vmatprep.subr.mxu0 0.0
  %3095 = vmatpush1.xpose.msra.mxu0 %v3078
  %3096 = vmatprep.subr.mxu0 0.0
  %3097 = vmatpush1.xpose.msra.mxu0 %v3080
  %3098 = vmatprep.subr.mxu0 0.0
  %3099 = vmatpush1.xpose.msra.mxu0 %v3082
  %3100 = vmatprep.subr.mxu0 0.0
  %3101 = vmatpush1.xpose.msra.mxu0 %v3084
  %3102 = vmatprep.subr.mxu0 0.0
  %3103 = vmatpush1.xpose.msra.mxu0 %v3086
  %3104 = vmatprep.subr.mxu0 0.0
  %3105 = vmatpush1.xpose.msra.mxu0 %v3088
  %3106 = vmatprep.subr.mxu0 0.0
  %3107 = vmatpush1.xpose.msra.mxu0 0.0
  %3108 = vmatprep.subr.mxu0 0.0
  %3109 = vmatpush1.xpose.msra.mxu0 0.0
  %3110 = vmatprep.subr.mxu0 0.0
  %3111 = vmatpush1.xpose.msra.mxu0 0.0
  %3112 = vmatprep.subr.mxu0 0.0
  %3113 = vmatpush1.xpose.msra.mxu0 0.0
  %3114 = vmatprep.subr.mxu0 0.0
  %3115 = vmatpush1.xpose.msra.mxu0 0.0
  %3116 = vmatprep.subr.mxu0 0.0
  %3117 = vmatpush1.xpose.msra.mxu0 0.0
  %3118 = vmatprep.subr.mxu0 0.0
  %3119 = vmatpush1.xpose.msra.mxu0 0.0
  %3120 = vmatprep.subr.mxu0 0.0
  %3121 = vmatpush1.xpose.msra.mxu0 0.0
  %3122 = vmatprep.subr.mxu0 0.0
  %3123 = vmatpush1.xpose.msra.mxu0 0.0
  %3124 = vmatprep.subr.mxu0 0.0
  %3125 = vmatpush1.xpose.msra.mxu0 0.0
  %3126 = vmatprep.subr.mxu0 0.0
  %3127 = vmatpush1.xpose.msra.mxu0 0.0
  %3128 = vmatprep.subr.mxu0 0.0
  %3129 = vmatpush1.xpose.msra.mxu0 0.0
  %3130 = vmatprep.subr.mxu0 0.0
  %3131 = vmatpush1.xpose.msra.mxu0 0.0
  %3132 = vmatprep.subr.mxu0 0.0
  %3133 = vmatpush1.xpose.msra.mxu0 0.0
  %3134 = vmatprep.subr.mxu0 0.0
  %3135 = vmatpush1.xpose.msra.mxu0 0.0
  %3136 = vmatprep.subr.mxu0 0.0
  %3137 = vmatpush1.xpose.msra.mxu0 0.0
  %3138 = vmatprep.subr.mxu0 0.0
  %3139 = vmatpush1.xpose.msra.mxu0 0.0
  %3140 = vmatprep.subr.mxu0 0.0
  %3141 = vmatpush1.xpose.msra.mxu0 0.0
  %3142 = vmatprep.subr.mxu0 0.0
  %3143 = vmatpush1.xpose.msra.mxu0 0.0
  %3144 = vmatprep.subr.mxu0 0.0
  %3145 = vmatpush1.xpose.msra.mxu0 0.0
  %3146 = vmatprep.subr.mxu0 0.0
  %3147 = vmatpush1.xpose.msra.mxu0 0.0
  %3148 = vmatprep.subr.mxu0 0.0
  %3149 = vmatpush1.xpose.msra.mxu0 0.0
  %3150 = vmatprep.subr.mxu0 0.0
  %3151 = vmatpush1.xpose.msra.mxu0 0.0
  %3152 = vmatprep.subr.mxu0 0.0
  %3153 = vmatpush1.xpose.msra.mxu0 0.0
  %3154 = vmatprep.mubr.f32.mxu0 0.0
  %3155 = vmatmul.mubr.f32.gmra.mrb[0].mxu0 %v3072
  %v3156 = vpop.f32.mrb[0].mxu0
  %v3157 = vadd.f32 0.0, %v3156
  %v3158 = vpop.f32.mrb[0].mxu0
  %3159 = vdwg.mxu0
  %v3160 = vmul.f32 %v3044, 0.5
  %v3161 = vmul.f32 %v3157, 0.5
  %v3162 = vsel %vm648, %v3160, -inf
  %3163 = vmax.xlane.f32.xlu0 %v3162
  %v3164 = vpop.xlane.xlu0 %3163
  %v3165 = vsel %vm648, %v3161, -inf
  %3166 = vmax.xlane.f32.xlu0 %v3165
  %v3167 = vpop.xlane.xlu0 %3166
  %v3168 = vsub.f32 %v3160, %v3164
  %v3169 = vsub.f32 %v3161, %v3167
  %v3170 = vmul.f32 %v3168, 1.442695
  %v3171 = vpow.pop %v3170
  %v3172 = vmul.f32 %v3169, 1.442695
  %v3173 = vpow.pop %v3172
  %3182 = vrot.lane.b32.xlu0 %v2918, 64
  %v3183 = vpop.permute.xlu0 %3182
  %3184 = vrot.lane.b32.xlu0 %v2919, 64
  %v3185 = vpop.permute.xlu0 %3184
  %3186 = vrot.lane.b32.xlu0 %v2920, 64
  %v3187 = vpop.permute.xlu0 %3186
  %3188 = vrot.lane.b32.xlu0 %v2921, 64
  %v3189 = vpop.permute.xlu0 %3188
  %3190 = vrot.lane.b32.xlu0 %v2922, 64
  %v3191 = vpop.permute.xlu0 %3190
  %3192 = vrot.lane.b32.xlu0 %v2923, 64
  %v3193 = vpop.permute.xlu0 %3192
  %3194 = vrot.lane.b32.xlu0 %v2924, 64
  %v3195 = vpop.permute.xlu0 %3194
  %3196 = vrot.lane.b32.xlu0 %v2925, 64
  %v3197 = vpop.permute.xlu0 %3196
  %v3207 = vsel %vm648, %v3171, 0
  %3209 = vmatprep.subr.mxu0 0.0
  %3210 = vmatpush1.msra.mxu0 %v3183
  %3211 = vmatprep.subr.mxu0 0.0
  %3212 = vmatpush1.msra.mxu0 %v3185
  %3213 = vmatprep.subr.mxu0 0.0
  %3214 = vmatpush1.msra.mxu0 %v3187
  %3215 = vmatprep.subr.mxu0 0.0
  %3216 = vmatpush1.msra.mxu0 %v3189
  %3217 = vmatprep.subr.mxu0 0.0
  %3218 = vmatpush1.msra.mxu0 %v3191
  %3219 = vmatprep.subr.mxu0 0.0
  %3220 = vmatpush1.msra.mxu0 %v3193
  %3221 = vmatprep.subr.mxu0 0.0
  %3222 = vmatpush1.msra.mxu0 %v3195
  %3223 = vmatprep.subr.mxu0 0.0
  %3224 = vmatpush1.msra.mxu0 %v3197
  %3225 = vmatprep.subr.mxu0 0.0
  %3226 = vmatpush1.msra.mxu0 0.0
  %3227 = vmatprep.subr.mxu0 0.0
  %3228 = vmatpush1.msra.mxu0 0.0
  %3229 = vmatprep.subr.mxu0 0.0
  %3230 = vmatpush1.msra.mxu0 0.0
  %3231 = vmatprep.subr.mxu0 0.0
  %3232 = vmatpush1.msra.mxu0 0.0
  %3233 = vmatprep.subr.mxu0 0.0
  %3234 = vmatpush1.msra.mxu0 0.0
  %3235 = vmatprep.subr.mxu0 0.0
  %3236 = vmatpush1.msra.mxu0 0.0
  %3237 = vmatprep.subr.mxu0 0.0
  %3238 = vmatpush1.msra.mxu0 0.0
  %3239 = vmatprep.subr.mxu0 0.0
  %3240 = vmatpush1.msra.mxu0 0.0
  %3241 = vmatprep.subr.mxu0 0.0
  %3242 = vmatpush1.msra.mxu0 0.0
  %3243 = vmatprep.subr.mxu0 0.0
  %3244 = vmatpush1.msra.mxu0 0.0
  %3245 = vmatprep.subr.mxu0 0.0
  %3246 = vmatpush1.msra.mxu0 0.0
  %3247 = vmatprep.subr.mxu0 0.0
  %3248 = vmatpush1.msra.mxu0 0.0
  %3249 = vmatprep.subr.mxu0 0.0
  %3250 = vmatpush1.msra.mxu0 0.0
  %3251 = vmatprep.subr.mxu0 0.0
  %3252 = vmatpush1.msra.mxu0 0.0
  %3253 = vmatprep.subr.mxu0 0.0
  %3254 = vmatpush1.msra.mxu0 0.0
  %3255 = vmatprep.subr.mxu0 0.0
  %3256 = vmatpush1.msra.mxu0 0.0
  %3257 = vmatprep.subr.mxu0 0.0
  %3258 = vmatpush1.msra.mxu0 0.0
  %3259 = vmatprep.subr.mxu0 0.0
  %3260 = vmatpush1.msra.mxu0 0.0
  %3261 = vmatprep.subr.mxu0 0.0
  %3262 = vmatpush1.msra.mxu0 0.0
  %3263 = vmatprep.subr.mxu0 0.0
  %3264 = vmatpush1.msra.mxu0 0.0
  %3265 = vmatprep.subr.mxu0 0.0
  %3266 = vmatpush1.msra.mxu0 0.0
  %3267 = vmatprep.subr.mxu0 0.0
  %3268 = vmatpush1.msra.mxu0 0.0
  %3269 = vmatprep.subr.mxu0 0.0
  %3270 = vmatpush1.msra.mxu0 0.0
  %3271 = vmatprep.subr.mxu0 0.0
  %3272 = vmatpush1.msra.mxu0 0.0
  %3273 = vmatprep.mubr.f32.mxu0 0.0
  %3274 = vmatmul.mubr.f32.gmra.mrb[0].mxu0 %v3207
  %v3275 = vpop.f32.mrb[0].mxu0
  %v3276 = vadd.f32 0.0, %v3275
  %v3277 = vpop.f32.mrb[0].mxu0
  %3278 = vdwg.mxu0
  %3287 = vrot.lane.b32.xlu0 %v2926, 64
  %v3288 = vpop.permute.xlu0 %3287
  %3289 = vrot.lane.b32.xlu0 %v2927, 64
  %v3290 = vpop.permute.xlu0 %3289
  %3291 = vrot.lane.b32.xlu0 %v2928, 64
  %v3292 = vpop.permute.xlu0 %3291
  %3293 = vrot.lane.b32.xlu0 %v2929, 64
  %v3294 = vpop.permute.xlu0 %3293
  %3295 = vrot.lane.b32.xlu0 %v2930, 64
  %v3296 = vpop.permute.xlu0 %3295
  %3297 = vrot.lane.b32.xlu0 %v2931, 64
  %v3298 = vpop.permute.xlu0 %3297
  %3299 = vrot.lane.b32.xlu0 %v2932, 64
  %v3300 = vpop.permute.xlu0 %3299
  %3301 = vrot.lane.b32.xlu0 %v2933, 64
  %v3302 = vpop.permute.xlu0 %3301
  %v3312 = vsel %vm648, %v3173, 0
  %3314 = vmatprep.subr.mxu0 0.0
  %3315 = vmatpush1.msra.mxu0 %v3288
  %3316 = vmatprep.subr.mxu0 0.0
  %3317 = vmatpush1.msra.mxu0 %v3290
  %3318 = vmatprep.subr.mxu0 0.0
  %3319 = vmatpush1.msra.mxu0 %v3292
  %3320 = vmatprep.subr.mxu0 0.0
  %3321 = vmatpush1.msra.mxu0 %v3294
  %3322 = vmatprep.subr.mxu0 0.0
  %3323 = vmatpush1.msra.mxu0 %v3296
  %3324 = vmatprep.subr.mxu0 0.0
  %3325 = vmatpush1.msra.mxu0 %v3298
  %3326 = vmatprep.subr.mxu0 0.0
  %3327 = vmatpush1.msra.mxu0 %v3300
  %3328 = vmatprep.subr.mxu0 0.0
  %3329 = vmatpush1.msra.mxu0 %v3302
  %3330 = vmatprep.subr.mxu0 0.0
  %3331 = vmatpush1.msra.mxu0 0.0
  %3332 = vmatprep.subr.mxu0 0.0
  %3333 = vmatpush1.msra.mxu0 0.0
  %3334 = vmatprep.subr.mxu0 0.0
  %3335 = vmatpush1.msra.mxu0 0.0
  %3336 = vmatprep.subr.mxu0 0.0
  %3337 = vmatpush1.msra.mxu0 0.0
  %3338 = vmatprep.subr.mxu0 0.0
  %3339 = vmatpush1.msra.mxu0 0.0
  %3340 = vmatprep.subr.mxu0 0.0
  %3341 = vmatpush1.msra.mxu0 0.0
  %3342 = vmatprep.subr.mxu0 0.0
  %3343 = vmatpush1.msra.mxu0 0.0
  %3344 = vmatprep.subr.mxu0 0.0
  %3345 = vmatpush1.msra.mxu0 0.0
  %3346 = vmatprep.subr.mxu0 0.0
  %3347 = vmatpush1.msra.mxu0 0.0
  %3348 = vmatprep.subr.mxu0 0.0
  %3349 = vmatpush1.msra.mxu0 0.0
  %3350 = vmatprep.subr.mxu0 0.0
  %3351 = vmatpush1.msra.mxu0 0.0
  %3352 = vmatprep.subr.mxu0 0.0
  %3353 = vmatpush1.msra.mxu0 0.0
  %3354 = vmatprep.subr.mxu0 0.0
  %3355 = vmatpush1.msra.mxu0 0.0
  %3356 = vmatprep.subr.mxu0 0.0
  %3357 = vmatpush1.msra.mxu0 0.0
  %3358 = vmatprep.subr.mxu0 0.0
  %3359 = vmatpush1.msra.mxu0 0.0
  %3360 = vmatprep.subr.mxu0 0.0
  %3361 = vmatpush1.msra.mxu0 0.0
  %3362 = vmatprep.subr.mxu0 0.0
  %3363 = vmatpush1.msra.mxu0 0.0
  %3364 = vmatprep.subr.mxu0 0.0
  %3365 = vmatpush1.msra.mxu0 0.0
  %3366 = vmatprep.subr.mxu0 0.0
  %3367 = vmatpush1.msra.mxu0 0.0
  %3368 = vmatprep.subr.mxu0 0.0
  %3369 = vmatpush1.msra.mxu0 0.0
  %3370 = vmatprep.subr.mxu0 0.0
  %3371 = vmatpush1.msra.mxu0 0.0
  %3372 = vmatprep.subr.mxu0 0.0
  %3373 = vmatpush1.msra.mxu0 0.0
  %3374 = vmatprep.subr.mxu0 0.0
  %3375 = vmatpush1.msra.mxu0 0.0
  %3376 = vmatprep.subr.mxu0 0.0
  %3377 = vmatpush1.msra.mxu0 0.0
  %3378 = vmatprep.mubr.f32.mxu0 0.0
  %3379 = vmatmul.mubr.f32.gmra.mrb[0].mxu0 %v3312
  %v3380 = vpop.f32.mrb[0].mxu0
  %v3381 = vadd.f32 0.0, %v3380
  %v3382 = vpop.f32.mrb[0].mxu0
  %3383 = vdwg.mxu0
  %3384 = vmatprep.subr.mxu0 0.0
  %3385 = vmatpush1.msra.mxu0 %v132
  %3386 = vmatprep.subr.mxu0 0.0
  %3387 = vmatpush1.msra.mxu0 %v133
  %3388 = vmatprep.subr.mxu0 0.0
  %3389 = vmatpush1.msra.mxu0 %v134
  %3390 = vmatprep.subr.mxu0 0.0
  %3391 = vmatpush1.msra.mxu0 %v135
  %3392 = vmatprep.subr.mxu0 0.0
  %3393 = vmatpush1.msra.mxu0 %v136
  %3394 = vmatprep.subr.mxu0 0.0
  %3395 = vmatpush1.msra.mxu0 %v137
  %3396 = vmatprep.subr.mxu0 0.0
  %3397 = vmatpush1.msra.mxu0 %v138
  %3398 = vmatprep.subr.mxu0 0.0
  %3399 = vmatpush1.msra.mxu0 %v139
  %3400 = vmatprep.subr.mxu0 0.0
  %3401 = vmatpush1.msra.mxu0 0.0
  %3402 = vmatprep.subr.mxu0 0.0
  %3403 = vmatpush1.msra.mxu0 0.0
  %3404 = vmatprep.subr.mxu0 0.0
  %3405 = vmatpush1.msra.mxu0 0.0
  %3406 = vmatprep.subr.mxu0 0.0
  %3407 = vmatpush1.msra.mxu0 0.0
  %3408 = vmatprep.subr.mxu0 0.0
  %3409 = vmatpush1.msra.mxu0 0.0
  %3410 = vmatprep.subr.mxu0 0.0
  %3411 = vmatpush1.msra.mxu0 0.0
  %3412 = vmatprep.subr.mxu0 0.0
  %3413 = vmatpush1.msra.mxu0 0.0
  %3414 = vmatprep.subr.mxu0 0.0
  %3415 = vmatpush1.msra.mxu0 0.0
  %3416 = vmatprep.subr.mxu0 0.0
  %3417 = vmatpush1.msra.mxu0 0.0
  %3418 = vmatprep.subr.mxu0 0.0
  %3419 = vmatpush1.msra.mxu0 0.0
  %3420 = vmatprep.subr.mxu0 0.0
  %3421 = vmatpush1.msra.mxu0 0.0
  %3422 = vmatprep.subr.mxu0 0.0
  %3423 = vmatpush1.msra.mxu0 0.0
  %3424 = vmatprep.subr.mxu0 0.0
  %3425 = vmatpush1.msra.mxu0 0.0
  %3426 = vmatprep.subr.mxu0 0.0
  %3427 = vmatpush1.msra.mxu0 0.0
  %3428 = vmatprep.subr.mxu0 0.0
  %3429 = vmatpush1.msra.mxu0 0.0
  %3430 = vmatprep.subr.mxu0 0.0
  %3431 = vmatpush1.msra.mxu0 0.0
  %3432 = vmatprep.subr.mxu0 0.0
  %3433 = vmatpush1.msra.mxu0 0.0
  %3434 = vmatprep.subr.mxu0 0.0
  %3435 = vmatpush1.msra.mxu0 0.0
  %3436 = vmatprep.subr.mxu0 0.0
  %3437 = vmatpush1.msra.mxu0 0.0
  %3438 = vmatprep.subr.mxu0 0.0
  %3439 = vmatpush1.msra.mxu0 0.0
  %3440 = vmatprep.subr.mxu0 0.0
  %3441 = vmatpush1.msra.mxu0 0.0
  %3442 = vmatprep.subr.mxu0 0.0
  %3443 = vmatpush1.msra.mxu0 0.0
  %3444 = vmatprep.subr.mxu0 0.0
  %3445 = vmatpush1.msra.mxu0 0.0
  %3446 = vmatprep.subr.mxu0 0.0
  %3447 = vmatpush1.msra.mxu0 0.0
  %3448 = vmatprep.mubr.f32.mxu0 0.0
  %3449 = vmatmul.mubr.f32.gmra.mrb[0].mxu0 %v3207
  %v3450 = vpop.f32.mrb[0].mxu0
  %v3451 = vadd.f32 0.0, %v3450
  %v3452 = vpop.f32.mrb[0].mxu0
  %3453 = vmatprep.mubr.f32.mxu0 0.0
  %3454 = vmatmul.mubr.f32.gmra.mrb[0].mxu0 %v3312
  %v3455 = vpop.f32.mrb[0].mxu0
  %v3456 = vadd.f32 0.0, %v3455
  %v3457 = vpop.f32.mrb[0].mxu0
  %3458 = vdwg.mxu0
  %v3459 = vrcp.pop %v3451
  %v3460 = vmul.f32 %v3276, %v3459
  %v3461 = vrcp.pop %v3456
  %v3462 = vmul.f32 %v3381, %v3461
  %v3463 = vld [vmem:[%s39] sm:$0xff]
  %v3464 = vld [vmem:[%s39 + $0x8] sm:$0xff]
  %v3465 = vld [vmem:[%s39 + $0x10] sm:$0xff]
  %v3466 = vld [vmem:[%s39 + $0x18] sm:$0xff]
  %v3467 = vld [vmem:[%s41] sm:$0x1]
  %v3469 = vlaneseq
  %v3470 = vshrl.u32 %v3469, 7
  %v3471 = vsub.s32 0, %v3470
  %v3472 = vrot.slane %v3467, %v3471
  %v3475 = vsel %vm250, %v3460, 0
  %v3478 = vsel %vm250, %v3462, 0
  %3480 = vmatprep.subr.mxu0 0.0
  %3481 = vmatpush1.msra.mxu0 %v3463
  %3482 = vmatprep.subr.mxu0 0.0
  %3483 = vmatpush1.msra.mxu0 %v3464
  %3484 = vmatprep.subr.mxu0 0.0
  %3485 = vmatpush1.msra.mxu0 %v3465
  %3486 = vmatprep.subr.mxu0 0.0
  %3487 = vmatpush1.msra.mxu0 %v3466
  %3488 = vmatprep.subr.mxu0 0.0
  %3489 = vmatpush1.msra.mxu0 0.0
  %3490 = vmatprep.subr.mxu0 0.0
  %3491 = vmatpush1.msra.mxu0 0.0
  %3492 = vmatprep.subr.mxu0 0.0
  %3493 = vmatpush1.msra.mxu0 0.0
  %3494 = vmatprep.subr.mxu0 0.0
  %3495 = vmatpush1.msra.mxu0 0.0
  %3496 = vmatprep.subr.mxu0 0.0
  %3497 = vmatpush1.msra.mxu0 0.0
  %3498 = vmatprep.subr.mxu0 0.0
  %3499 = vmatpush1.msra.mxu0 0.0
  %3500 = vmatprep.subr.mxu0 0.0
  %3501 = vmatpush1.msra.mxu0 0.0
  %3502 = vmatprep.subr.mxu0 0.0
  %3503 = vmatpush1.msra.mxu0 0.0
  %3504 = vmatprep.subr.mxu0 0.0
  %3505 = vmatpush1.msra.mxu0 0.0
  %3506 = vmatprep.subr.mxu0 0.0
  %3507 = vmatpush1.msra.mxu0 0.0
  %3508 = vmatprep.subr.mxu0 0.0
  %3509 = vmatpush1.msra.mxu0 0.0
  %3510 = vmatprep.subr.mxu0 0.0
  %3511 = vmatpush1.msra.mxu0 0.0
  %3512 = vmatprep.subr.mxu0 0.0
  %3513 = vmatpush1.msra.mxu0 0.0
  %3514 = vmatprep.subr.mxu0 0.0
  %3515 = vmatpush1.msra.mxu0 0.0
  %3516 = vmatprep.subr.mxu0 0.0
  %3517 = vmatpush1.msra.mxu0 0.0
  %3518 = vmatprep.subr.mxu0 0.0
  %3519 = vmatpush1.msra.mxu0 0.0
  %3520 = vmatprep.subr.mxu0 0.0
  %3521 = vmatpush1.msra.mxu0 0.0
  %3522 = vmatprep.subr.mxu0 0.0
  %3523 = vmatpush1.msra.mxu0 0.0
  %3524 = vmatprep.subr.mxu0 0.0
  %3525 = vmatpush1.msra.mxu0 0.0
  %3526 = vmatprep.subr.mxu0 0.0
  %3527 = vmatpush1.msra.mxu0 0.0
  %3528 = vmatprep.subr.mxu0 0.0
  %3529 = vmatpush1.msra.mxu0 0.0
  %3530 = vmatprep.subr.mxu0 0.0
  %3531 = vmatpush1.msra.mxu0 0.0
  %3532 = vmatprep.subr.mxu0 0.0
  %3533 = vmatpush1.msra.mxu0 0.0
  %3534 = vmatprep.subr.mxu0 0.0
  %3535 = vmatpush1.msra.mxu0 0.0
  %3536 = vmatprep.subr.mxu0 0.0
  %3537 = vmatpush1.msra.mxu0 0.0
  %3538 = vmatprep.subr.mxu0 0.0
  %3539 = vmatpush1.msra.mxu0 0.0
  %3540 = vmatprep.subr.mxu0 0.0
  %3541 = vmatpush1.msra.mxu0 0.0
  %3542 = vmatprep.subr.mxu0 0.0
  %3543 = vmatpush1.msra.mxu0 0.0
  %3544 = vmatprep.mubr.f32.mxu0 0.0
  %3545 = vmatmul.mubr.f32.gmra.mrb[0].mxu0 %v3475
  %v3546 = vpop.f32.mrb[0].mxu0
  %v3547 = vadd.f32 %v3472, %v3546
  %v3548 = vpop.f32.mrb[0].mxu0
  %3549 = vmatprep.mubr.f32.mxu0 0.0
  %3550 = vmatmul.mubr.f32.gmra.mrb[0].mxu0 %v3478
  %v3551 = vpop.f32.mrb[0].mxu0
  %v3552 = vadd.f32 %v3472, %v3551
  %v3553 = vpop.f32.mrb[0].mxu0
  %3554 = vdwg.mxu0
  %v3555 = vadd.f32 %v2808, %v3547
  %v3556 = vadd.f32 %v2809, %v3552
  %v3557 = vld [vmem:[%s43] sm:$0x1]
  %v3558 = vld [vmem:[%s45] sm:$0x1]
  %v3559 = vsel %vm250, %v3555, 0.0
  %3560 = vadd.xlane.f32.xlu0 %v3559
  %v3561 = vpop.xlane.xlu0 %3560
  %v3562 = vsel %vm250, %v3556, 0.0
  %3563 = vadd.xlane.f32.xlu0 %v3562
  %v3564 = vpop.xlane.xlu0 %3563
  %v3565 = vmul.f32 %v3561, %v1052
  %v3566 = vmul.f32 %v3564, %v1052
  %v3567 = vsub.f32 %v3555, %v3565
  %v3568 = vsub.f32 %v3556, %v3566
  %v3569 = vmul.f32 %v3567, %v3567
  %v3570 = vmul.f32 %v3568, %v3568
  %v3571 = vsel %vm250, %v3569, 0.0
  %3572 = vadd.xlane.f32.xlu0 %v3571
  %v3573 = vpop.xlane.xlu0 %3572
  %v3574 = vsel %vm250, %v3570, 0.0
  %3575 = vadd.xlane.f32.xlu0 %v3574
  %v3576 = vpop.xlane.xlu0 %3575
  %v3577 = vmul.f32 %v3573, %v1052
  %v3578 = vmul.f32 %v3576, %v1052
  %v3579 = vadd.f32 %v3577, 1e-05
  %v3580 = vadd.f32 %v3578, 1e-05
  %v3581 = vrsqrt.pop %v3579
  %v3582 = vrsqrt.pop %v3580
  %v3583 = vmul.f32 %v3567, %v3581
  %v3584 = vmul.f32 %v3568, %v3582
  %v3586 = vlaneseq
  %v3587 = vshrl.u32 %v3586, 7
  %v3588 = vsub.s32 0, %v3587
  %v3589 = vrot.slane %v3557, %v3588
  %v3591 = vmul.f32 %v3583, %v3589
  %v3592 = vmul.f32 %v3584, %v3589
  %v3594 = vlaneseq
  %v3595 = vshrl.u32 %v3594, 7
  %v3596 = vsub.s32 0, %v3595
  %v3597 = vrot.slane %v3558, %v3596
  %v3599 = vadd.f32 %v3591, %v3597
  %v3600 = vadd.f32 %v3592, %v3597
  %v3601 = vld [vmem:[%s47] sm:$0xff]
  %v3602 = vld [vmem:[%s47 + $0x8] sm:$0xff]
  %v3603 = vld [vmem:[%s47 + $0x10] sm:$0xff]
  %v3604 = vld [vmem:[%s47 + $0x18] sm:$0xff]
  %v3605 = vld [vmem:[%s47 + $0x80] sm:$0xff]
  %v3606 = vld [vmem:[%s47 + $0x88] sm:$0xff]
  %v3607 = vld [vmem:[%s47 + $0x90] sm:$0xff]
  %v3608 = vld [vmem:[%s47 + $0x98] sm:$0xff]
  %v3609 = vld [vmem:[%s47 + $0x100] sm:$0xff]
  %v3610 = vld [vmem:[%s47 + $0x108] sm:$0xff]
  %v3611 = vld [vmem:[%s47 + $0x110] sm:$0xff]
  %v3612 = vld [vmem:[%s47 + $0x118] sm:$0xff]
  %v3613 = vld [vmem:[%s47 + $0x180] sm:$0xff]
  %v3614 = vld [vmem:[%s47 + $0x188] sm:$0xff]
  %v3615 = vld [vmem:[%s47 + $0x190] sm:$0xff]
  %v3616 = vld [vmem:[%s47 + $0x198] sm:$0xff]
  %v3617 = vld [vmem:[%s49] sm:$0xf]
  %v3619 = vlaneseq
  %v3620 = vshrl.u32 %v3619, 7
  %v3621 = vsub.s32 0, %v3620
  %v3622 = vrot.slane %v3617, %v3621
  %v3623 = vlaneseq
  %v3624 = vshrl.u32 %v3623, 7
  %v3625 = vsub.s32 1, %v3624
  %v3626 = vrot.slane %v3617, %v3625
  %v3627 = vlaneseq
  %v3628 = vshrl.u32 %v3627, 7
  %v3629 = vsub.s32 2, %v3628
  %v3630 = vrot.slane %v3617, %v3629
  %v3631 = vlaneseq
  %v3632 = vshrl.u32 %v3631, 7
  %v3633 = vsub.s32 3, %v3632
  %v3634 = vrot.slane %v3617, %v3633
  %v3640 = vsel %vm250, %v3599, 0
  %v3643 = vsel %vm250, %v3600, 0
  %3645 = vmatprep.subr.mxu0 %v3602
  %3646 = vmatpush1.msra.mxu0 %v3601
  %3647 = vmatprep.subr.mxu0 %v3606
  %3648 = vmatpush1.msra.mxu0 %v3605
  %3649 = vmatprep.subr.mxu0 %v3610
  %3650 = vmatpush1.msra.mxu0 %v3609
  %3651 = vmatprep.subr.mxu0 %v3614
  %3652 = vmatpush1.msra.mxu0 %v3613
  %3653 = vmatprep.subr.mxu0 0.0
  %3654 = vmatpush1.msra.mxu0 0.0
  %3655 = vmatprep.subr.mxu0 0.0
  %3656 = vmatpush1.msra.mxu0 0.0
  %3657 = vmatprep.subr.mxu0 0.0
  %3658 = vmatpush1.msra.mxu0 0.0
  %3659 = vmatprep.subr.mxu0 0.0
  %3660 = vmatpush1.msra.mxu0 0.0
  %3661 = vmatprep.subr.mxu0 0.0
  %3662 = vmatpush1.msra.mxu0 0.0
  %3663 = vmatprep.subr.mxu0 0.0
  %3664 = vmatpush1.msra.mxu0 0.0
  %3665 = vmatprep.subr.mxu0 0.0
  %3666 = vmatpush1.msra.mxu0 0.0
  %3667 = vmatprep.subr.mxu0 0.0
  %3668 = vmatpush1.msra.mxu0 0.0
  %3669 = vmatprep.subr.mxu0 0.0
  %3670 = vmatpush1.msra.mxu0 0.0
  %3671 = vmatprep.subr.mxu0 0.0
  %3672 = vmatpush1.msra.mxu0 0.0
  %3673 = vmatprep.subr.mxu0 0.0
  %3674 = vmatpush1.msra.mxu0 0.0
  %3675 = vmatprep.subr.mxu0 0.0
  %3676 = vmatpush1.msra.mxu0 0.0
  %3677 = vmatprep.subr.mxu0 0.0
  %3678 = vmatpush1.msra.mxu0 0.0
  %3679 = vmatprep.subr.mxu0 0.0
  %3680 = vmatpush1.msra.mxu0 0.0
  %3681 = vmatprep.subr.mxu0 0.0
  %3682 = vmatpush1.msra.mxu0 0.0
  %3683 = vmatprep.subr.mxu0 0.0
  %3684 = vmatpush1.msra.mxu0 0.0
  %3685 = vmatprep.subr.mxu0 0.0
  %3686 = vmatpush1.msra.mxu0 0.0
  %3687 = vmatprep.subr.mxu0 0.0
  %3688 = vmatpush1.msra.mxu0 0.0
  %3689 = vmatprep.subr.mxu0 0.0
  %3690 = vmatpush1.msra.mxu0 0.0
  %3691 = vmatprep.subr.mxu0 0.0
  %3692 = vmatpush1.msra.mxu0 0.0
  %3693 = vmatprep.subr.mxu0 0.0
  %3694 = vmatpush1.msra.mxu0 0.0
  %3695 = vmatprep.subr.mxu0 0.0
  %3696 = vmatpush1.msra.mxu0 0.0
  %3697 = vmatprep.subr.mxu0 0.0
  %3698 = vmatpush1.msra.mxu0 0.0
  %3699 = vmatprep.subr.mxu0 0.0
  %3700 = vmatpush1.msra.mxu0 0.0
  %3701 = vmatprep.subr.mxu0 0.0
  %3702 = vmatpush1.msra.mxu0 0.0
  %3703 = vmatprep.subr.mxu0 0.0
  %3704 = vmatpush1.msra.mxu0 0.0
  %3705 = vmatprep.subr.mxu0 0.0
  %3706 = vmatpush1.msra.mxu0 0.0
  %3707 = vmatprep.subr.mxu0 0.0
  %3708 = vmatpush1.msra.mxu0 0.0
  %3709 = vmatprep.mubr.f32.mxu0 0.0
  %3710 = vmatmul.mubr.f32.gmra.mrb[0].mxu0 %v3640
  %v3711 = vpop.f32.mrb[0].mxu0
  %v3712 = vadd.f32 %v3622, %v3711
  %v3713 = vpop.f32.mrb[0].mxu0
  %v3714 = vadd.f32 %v3626, %v3713
  %3715 = vmatprep.mubr.f32.mxu0 0.0
  %3716 = vmatmul.mubr.f32.gmra.mrb[0].mxu0 %v3643
  %v3717 = vpop.f32.mrb[0].mxu0
  %v3718 = vadd.f32 %v3622, %v3717
  %v3719 = vpop.f32.mrb[0].mxu0
  %v3720 = vadd.f32 %v3626, %v3719
  %3721 = vdwg.mxu0
  %3722 = vmatprep.subr.mxu0 %v3604
  %3723 = vmatpush1.msra.mxu0 %v3603
  %3724 = vmatprep.subr.mxu0 %v3608
  %3725 = vmatpush1.msra.mxu0 %v3607
  %3726 = vmatprep.subr.mxu0 %v3612
  %3727 = vmatpush1.msra.mxu0 %v3611
  %3728 = vmatprep.subr.mxu0 %v3616
  %3729 = vmatpush1.msra.mxu0 %v3615
  %3730 = vmatprep.subr.mxu0 0.0
  %3731 = vmatpush1.msra.mxu0 0.0
  %3732 = vmatprep.subr.mxu0 0.0
  %3733 = vmatpush1.msra.mxu0 0.0
  %3734 = vmatprep.subr.mxu0 0.0
  %3735 = vmatpush1.msra.mxu0 0.0
  %3736 = vmatprep.subr.mxu0 0.0
  %3737 = vmatpush1.msra.mxu0 0.0
  %3738 = vmatprep.subr.mxu0 0.0
  %3739 = vmatpush1.msra.mxu0 0.0
  %3740 = vmatprep.subr.mxu0 0.0
  %3741 = vmatpush1.msra.mxu0 0.0
  %3742 = vmatprep.subr.mxu0 0.0
  %3743 = vmatpush1.msra.mxu0 0.0
  %3744 = vmatprep.subr.mxu0 0.0
  %3745 = vmatpush1.msra.mxu0 0.0
  %3746 = vmatprep.subr.mxu0 0.0
  %3747 = vmatpush1.msra.mxu0 0.0
  %3748 = vmatprep.subr.mxu0 0.0
  %3749 = vmatpush1.msra.mxu0 0.0
  %3750 = vmatprep.subr.mxu0 0.0
  %3751 = vmatpush1.msra.mxu0 0.0
  %3752 = vmatprep.subr.mxu0 0.0
  %3753 = vmatpush1.msra.mxu0 0.0
  %3754 = vmatprep.subr.mxu0 0.0
  %3755 = vmatpush1.msra.mxu0 0.0
  %3756 = vmatprep.subr.mxu0 0.0
  %3757 = vmatpush1.msra.mxu0 0.0
  %3758 = vmatprep.subr.mxu0 0.0
  %3759 = vmatpush1.msra.mxu0 0.0
  %3760 = vmatprep.subr.mxu0 0.0
  %3761 = vmatpush1.msra.mxu0 0.0
  %3762 = vmatprep.subr.mxu0 0.0
  %3763 = vmatpush1.msra.mxu0 0.0
  %3764 = vmatprep.subr.mxu0 0.0
  %3765 = vmatpush1.msra.mxu0 0.0
  %3766 = vmatprep.subr.mxu0 0.0
  %3767 = vmatpush1.msra.mxu0 0.0
  %3768 = vmatprep.subr.mxu0 0.0
  %3769 = vmatpush1.msra.mxu0 0.0
  %3770 = vmatprep.subr.mxu0 0.0
  %3771 = vmatpush1.msra.mxu0 0.0
  %3772 = vmatprep.subr.mxu0 0.0
  %3773 = vmatpush1.msra.mxu0 0.0
  %3774 = vmatprep.subr.mxu0 0.0
  %3775 = vmatpush1.msra.mxu0 0.0
  %3776 = vmatprep.subr.mxu0 0.0
  %3777 = vmatpush1.msra.mxu0 0.0
  %3778 = vmatprep.subr.mxu0 0.0
  %3779 = vmatpush1.msra.mxu0 0.0
  %3780 = vmatprep.subr.mxu0 0.0
  %3781 = vmatpush1.msra.mxu0 0.0
  %3782 = vmatprep.subr.mxu0 0.0
  %3783 = vmatpush1.msra.mxu0 0.0
  %3784 = vmatprep.subr.mxu0 0.0
  %3785 = vmatpush1.msra.mxu0 0.0
  %3786 = vmatprep.mubr.f32.mxu0 0.0
  %3787 = vmatmul.mubr.f32.gmra.mrb[0].mxu0 %v3640
  %v3788 = vpop.f32.mrb[0].mxu0
  %v3789 = vadd.f32 %v3630, %v3788
  %v3790 = vpop.f32.mrb[0].mxu0
  %v3791 = vadd.f32 %v3634, %v3790
  %3792 = vmatprep.mubr.f32.mxu0 0.0
  %3793 = vmatmul.mubr.f32.gmra.mrb[0].mxu0 %v3643
  %v3794 = vpop.f32.mrb[0].mxu0
  %v3795 = vadd.f32 %v3630, %v3794
  %v3796 = vpop.f32.mrb[0].mxu0
  %v3797 = vadd.f32 %v3634, %v3796
  %3798 = vdwg.mxu0
  %v3799 = vmax.f32 %v3712, 0.0
  %v3800 = vmax.f32 %v3714, 0.0
  %v3801 = vmax.f32 %v3789, 0.0
  %v3802 = vmax.f32 %v3791, 0.0
  %v3803 = vmax.f32 %v3718, 0.0
  %v3804 = vmax.f32 %v3720, 0.0
  %v3805 = vmax.f32 %v3795, 0.0
  %v3806 = vmax.f32 %v3797, 0.0
  %v3807 = vld [vmem:[%s51] sm:$0xff]
  %v3808 = vld [vmem:[%s51 + $0x8] sm:$0xff]
  %v3809 = vld [vmem:[%s51 + $0x10] sm:$0xff]
  %v3810 = vld [vmem:[%s51 + $0x18] sm:$0xff]
  %v3811 = vld [vmem:[%s51 + $0x20] sm:$0xff]
  %v3812 = vld [vmem:[%s51 + $0x28] sm:$0xff]
  %v3813 = vld [vmem:[%s51 + $0x30] sm:$0xff]
  %v3814 = vld [vmem:[%s51 + $0x38] sm:$0xff]
  %v3815 = vld [vmem:[%s51 + $0x40] sm:$0xff]
  %v3816 = vld [vmem:[%s51 + $0x48] sm:$0xff]
  %v3817 = vld [vmem:[%s51 + $0x50] sm:$0xff]
  %v3818 = vld [vmem:[%s51 + $0x58] sm:$0xff]
  %v3819 = vld [vmem:[%s51 + $0x60] sm:$0xff]
  %v3820 = vld [vmem:[%s51 + $0x68] sm:$0xff]
  %v3821 = vld [vmem:[%s51 + $0x70] sm:$0xff]
  %v3822 = vld [vmem:[%s51 + $0x78] sm:$0xff]
  %v3823 = vld [vmem:[%s51 + $0x80] sm:$0xff]
  %v3824 = vld [vmem:[%s51 + $0x88] sm:$0xff]
  %v3825 = vld [vmem:[%s51 + $0x90] sm:$0xff]
  %v3826 = vld [vmem:[%s51 + $0x98] sm:$0xff]
  %v3827 = vld [vmem:[%s51 + $0xa0] sm:$0xff]
  %v3828 = vld [vmem:[%s51 + $0xa8] sm:$0xff]
  %v3829 = vld [vmem:[%s51 + $0xb0] sm:$0xff]
  %v3830 = vld [vmem:[%s51 + $0xb8] sm:$0xff]
  %v3831 = vld [vmem:[%s51 + $0xc0] sm:$0xff]
  %v3832 = vld [vmem:[%s51 + $0xc8] sm:$0xff]
  %v3833 = vld [vmem:[%s51 + $0xd0] sm:$0xff]
  %v3834 = vld [vmem:[%s51 + $0xd8] sm:$0xff]
  %v3835 = vld [vmem:[%s51 + $0xe0] sm:$0xff]
  %v3836 = vld [vmem:[%s51 + $0xe8] sm:$0xff]
  %v3837 = vld [vmem:[%s51 + $0xf0] sm:$0xff]
  %v3838 = vld [vmem:[%s51 + $0xf8] sm:$0xff]
  %v3839 = vld [vmem:[%s51 + $0x100] sm:$0xff]
  %v3840 = vld [vmem:[%s51 + $0x108] sm:$0xff]
  %v3841 = vld [vmem:[%s51 + $0x110] sm:$0xff]
  %v3842 = vld [vmem:[%s51 + $0x118] sm:$0xff]
  %v3843 = vld [vmem:[%s51 + $0x120] sm:$0xff]
  %v3844 = vld [vmem:[%s51 + $0x128] sm:$0xff]
  %v3845 = vld [vmem:[%s51 + $0x130] sm:$0xff]
  %v3846 = vld [vmem:[%s51 + $0x138] sm:$0xff]
  %v3847 = vld [vmem:[%s51 + $0x140] sm:$0xff]
  %v3848 = vld [vmem:[%s51 + $0x148] sm:$0xff]
  %v3849 = vld [vmem:[%s51 + $0x150] sm:$0xff]
  %v3850 = vld [vmem:[%s51 + $0x158] sm:$0xff]
  %v3851 = vld [vmem:[%s51 + $0x160] sm:$0xff]
  %v3852 = vld [vmem:[%s51 + $0x168] sm:$0xff]
  %v3853 = vld [vmem:[%s51 + $0x170] sm:$0xff]
  %v3854 = vld [vmem:[%s51 + $0x178] sm:$0xff]
  %v3855 = vld [vmem:[%s51 + $0x180] sm:$0xff]
  %v3856 = vld [vmem:[%s51 + $0x188] sm:$0xff]
  %v3857 = vld [vmem:[%s51 + $0x190] sm:$0xff]
  %v3858 = vld [vmem:[%s51 + $0x198] sm:$0xff]
  %v3859 = vld [vmem:[%s51 + $0x1a0] sm:$0xff]
  %v3860 = vld [vmem:[%s51 + $0x1a8] sm:$0xff]
  %v3861 = vld [vmem:[%s51 + $0x1b0] sm:$0xff]
  %v3862 = vld [vmem:[%s51 + $0x1b8] sm:$0xff]
  %v3863 = vld [vmem:[%s51 + $0x1c0] sm:$0xff]
  %v3864 = vld [vmem:[%s51 + $0x1c8] sm:$0xff]
  %v3865 = vld [vmem:[%s51 + $0x1d0] sm:$0xff]
  %v3866 = vld [vmem:[%s51 + $0x1d8] sm:$0xff]
  %v3867 = vld [vmem:[%s51 + $0x1e0] sm:$0xff]
  %v3868 = vld [vmem:[%s51 + $0x1e8] sm:$0xff]
  %v3869 = vld [vmem:[%s51 + $0x1f0] sm:$0xff]
  %v3870 = vld [vmem:[%s51 + $0x1f8] sm:$0xff]
  %v3871 = vld [vmem:[%s47 + $0x20] sm:$0xff]
  %v3872 = vld [vmem:[%s47 + $0x28] sm:$0xff]
  %v3873 = vld [vmem:[%s47 + $0x30] sm:$0xff]
  %v3874 = vld [vmem:[%s47 + $0x38] sm:$0xff]
  %v3875 = vld [vmem:[%s47 + $0xa0] sm:$0xff]
  %v3876 = vld [vmem:[%s47 + $0xa8] sm:$0xff]
  %v3877 = vld [vmem:[%s47 + $0xb0] sm:$0xff]
  %v3878 = vld [vmem:[%s47 + $0xb8] sm:$0xff]
  %v3879 = vld [vmem:[%s47 + $0x120] sm:$0xff]
  %v3880 = vld [vmem:[%s47 + $0x128] sm:$0xff]
  %v3881 = vld [vmem:[%s47 + $0x130] sm:$0xff]
  %v3882 = vld [vmem:[%s47 + $0x138] sm:$0xff]
  %v3883 = vld [vmem:[%s47 + $0x1a0] sm:$0xff]
  %v3884 = vld [vmem:[%s47 + $0x1a8] sm:$0xff]
  %v3885 = vld [vmem:[%s47 + $0x1b0] sm:$0xff]
  %v3886 = vld [vmem:[%s47 + $0x1b8] sm:$0xff]
  %v3887 = vld [vmem:[%s49 + $0x4] sm:$0xf]
  %v3889 = vlaneseq
  %v3890 = vshrl.u32 %v3889, 7
  %v3891 = vsub.s32 0, %v3890
  %v3892 = vrot.slane %v3887, %v3891
  %v3893 = vlaneseq
  %v3894 = vshrl.u32 %v3893, 7
  %v3895 = vsub.s32 1, %v3894
  %v3896 = vrot.slane %v3887, %v3895
  %v3897 = vlaneseq
  %v3898 = vshrl.u32 %v3897, 7
  %v3899 = vsub.s32 2, %v3898
  %v3900 = vrot.slane %v3887, %v3899
  %v3901 = vlaneseq
  %v3902 = vshrl.u32 %v3901, 7
  %v3903 = vsub.s32 3, %v3902
  %v3904 = vrot.slane %v3887, %v3903
  %3909 = vmatprep.subr.mxu0 %v3872
  %3910 = vmatpush1.msra.mxu0 %v3871
  %3911 = vmatprep.subr.mxu0 %v3876
  %3912 = vmatpush1.msra.mxu0 %v3875
  %3913 = vmatprep.subr.mxu0 %v3880
  %3914 = vmatpush1.msra.mxu0 %v3879
  %3915 = vmatprep.subr.mxu0 %v3884
  %3916 = vmatpush1.msra.mxu0 %v3883
  %3917 = vmatprep.subr.mxu0 0.0
  %3918 = vmatpush1.msra.mxu0 0.0
  %3919 = vmatprep.subr.mxu0 0.0
  %3920 = vmatpush1.msra.mxu0 0.0
  %3921 = vmatprep.subr.mxu0 0.0
  %3922 = vmatpush1.msra.mxu0 0.0
  %3923 = vmatprep.subr.mxu0 0.0
  %3924 = vmatpush1.msra.mxu0 0.0
  %3925 = vmatprep.subr.mxu0 0.0
  %3926 = vmatpush1.msra.mxu0 0.0
  %3927 = vmatprep.subr.mxu0 0.0
  %3928 = vmatpush1.msra.mxu0 0.0
  %3929 = vmatprep.subr.mxu0 0.0
  %3930 = vmatpush1.msra.mxu0 0.0
  %3931 = vmatprep.subr.mxu0 0.0
  %3932 = vmatpush1.msra.mxu0 0.0
  %3933 = vmatprep.subr.mxu0 0.0
  %3934 = vmatpush1.msra.mxu0 0.0
  %3935 = vmatprep.subr.mxu0 0.0
  %3936 = vmatpush1.msra.mxu0 0.0
  %3937 = vmatprep.subr.mxu0 0.0
  %3938 = vmatpush1.msra.mxu0 0.0
  %3939 = vmatprep.subr.mxu0 0.0
  %3940 = vmatpush1.msra.mxu0 0.0
  %3941 = vmatprep.subr.mxu0 0.0
  %3942 = vmatpush1.msra.mxu0 0.0
  %3943 = vmatprep.subr.mxu0 0.0
  %3944 = vmatpush1.msra.mxu0 0.0
  %3945 = vmatprep.subr.mxu0 0.0
  %3946 = vmatpush1.msra.mxu0 0.0
  %3947 = vmatprep.subr.mxu0 0.0
  %3948 = vmatpush1.msra.mxu0 0.0
  %3949 = vmatprep.subr.mxu0 0.0
  %3950 = vmatpush1.msra.mxu0 0.0
  %3951 = vmatprep.subr.mxu0 0.0
  %3952 = vmatpush1.msra.mxu0 0.0
  %3953 = vmatprep.subr.mxu0 0.0
  %3954 = vmatpush1.msra.mxu0 0.0
  %3955 = vmatprep.subr.mxu0 0.0
  %3956 = vmatpush1.msra.mxu0 0.0
  %3957 = vmatprep.subr.mxu0 0.0
  %3958 = vmatpush1.msra.mxu0 0.0
  %3959 = vmatprep.subr.mxu0 0.0
  %3960 = vmatpush1.msra.mxu0 0.0
  %3961 = vmatprep.subr.mxu0 0.0
  %3962 = vmatpush1.msra.mxu0 0.0
  %3963 = vmatprep.subr.mxu0 0.0
  %3964 = vmatpush1.msra.mxu0 0.0
  %3965 = vmatprep.subr.mxu0 0.0
  %3966 = vmatpush1.msra.mxu0 0.0
  %3967 = vmatprep.subr.mxu0 0.0
  %3968 = vmatpush1.msra.mxu0 0.0
  %3969 = vmatprep.subr.mxu0 0.0
  %3970 = vmatpush1.msra.mxu0 0.0
  %3971 = vmatprep.subr.mxu0 0.0
  %3972 = vmatpush1.msra.mxu0 0.0
  %3973 = vmatprep.mubr.f32.mxu0 0.0
  %3974 = vmatmul.mubr.f32.gmra.mrb[0].mxu0 %v3640
  %v3975 = vpop.f32.mrb[0].mxu0
  %v3976 = vadd.f32 %v3892, %v3975
  %v3977 = vpop.f32.mrb[0].mxu0
  %v3978 = vadd.f32 %v3896, %v3977
  %3979 = vmatprep.mubr.f32.mxu0 0.0
  %3980 = vmatmul.mubr.f32.gmra.mrb[0].mxu0 %v3643
  %v3981 = vpop.f32.mrb[0].mxu0
  %v3982 = vadd.f32 %v3892, %v3981
  %v3983 = vpop.f32.mrb[0].mxu0
  %v3984 = vadd.f32 %v3896, %v3983
  %3985 = vdwg.mxu0
  %3986 = vmatprep.subr.mxu0 %v3874
  %3987 = vmatpush1.msra.mxu0 %v3873
  %3988 = vmatprep.subr.mxu0 %v3878
  %3989 = vmatpush1.msra.mxu0 %v3877
  %3990 = vmatprep.subr.mxu0 %v3882
  %3991 = vmatpush1.msra.mxu0 %v3881
  %3992 = vmatprep.subr.mxu0 %v3886
  %3993 = vmatpush1.msra.mxu0 %v3885
  %3994 = vmatprep.subr.mxu0 0.0
  %3995 = vmatpush1.msra.mxu0 0.0
  %3996 = vmatprep.subr.mxu0 0.0
  %3997 = vmatpush1.msra.mxu0 0.0
  %3998 = vmatprep.subr.mxu0 0.0
  %3999 = vmatpush1.msra.mxu0 0.0
  %4000 = vmatprep.subr.mxu0 0.0
  %4001 = vmatpush1.msra.mxu0 0.0
  %4002 = vmatprep.subr.mxu0 0.0
  %4003 = vmatpush1.msra.mxu0 0.0
  %4004 = vmatprep.subr.mxu0 0.0
  %4005 = vmatpush1.msra.mxu0 0.0
  %4006 = vmatprep.subr.mxu0 0.0
  %4007 = vmatpush1.msra.mxu0 0.0
  %4008 = vmatprep.subr.mxu0 0.0
  %4009 = vmatpush1.msra.mxu0 0.0
  %4010 = vmatprep.subr.mxu0 0.0
  %4011 = vmatpush1.msra.mxu0 0.0
  %4012 = vmatprep.subr.mxu0 0.0
  %4013 = vmatpush1.msra.mxu0 0.0
  %4014 = vmatprep.subr.mxu0 0.0
  %4015 = vmatpush1.msra.mxu0 0.0
  %4016 = vmatprep.subr.mxu0 0.0
  %4017 = vmatpush1.msra.mxu0 0.0
  %4018 = vmatprep.subr.mxu0 0.0
  %4019 = vmatpush1.msra.mxu0 0.0
  %4020 = vmatprep.subr.mxu0 0.0
  %4021 = vmatpush1.msra.mxu0 0.0
  %4022 = vmatprep.subr.mxu0 0.0
  %4023 = vmatpush1.msra.mxu0 0.0
  %4024 = vmatprep.subr.mxu0 0.0
  %4025 = vmatpush1.msra.mxu0 0.0
  %4026 = vmatprep.subr.mxu0 0.0
  %4027 = vmatpush1.msra.mxu0 0.0
  %4028 = vmatprep.subr.mxu0 0.0
  %4029 = vmatpush1.msra.mxu0 0.0
  %4030 = vmatprep.subr.mxu0 0.0
  %4031 = vmatpush1.msra.mxu0 0.0
  %4032 = vmatprep.subr.mxu0 0.0
  %4033 = vmatpush1.msra.mxu0 0.0
  %4034 = vmatprep.subr.mxu0 0.0
  %4035 = vmatpush1.msra.mxu0 0.0
  %4036 = vmatprep.subr.mxu0 0.0
  %4037 = vmatpush1.msra.mxu0 0.0
  %4038 = vmatprep.subr.mxu0 0.0
  %4039 = vmatpush1.msra.mxu0 0.0
  %4040 = vmatprep.subr.mxu0 0.0
  %4041 = vmatpush1.msra.mxu0 0.0
  %4042 = vmatprep.subr.mxu0 0.0
  %4043 = vmatpush1.msra.mxu0 0.0
  %4044 = vmatprep.subr.mxu0 0.0
  %4045 = vmatpush1.msra.mxu0 0.0
  %4046 = vmatprep.subr.mxu0 0.0
  %4047 = vmatpush1.msra.mxu0 0.0
  %4048 = vmatprep.subr.mxu0 0.0
  %4049 = vmatpush1.msra.mxu0 0.0
  %4050 = vmatprep.mubr.f32.mxu0 0.0
  %4051 = vmatmul.mubr.f32.gmra.mrb[0].mxu0 %v3640
  %v4052 = vpop.f32.mrb[0].mxu0
  %v4053 = vadd.f32 %v3900, %v4052
  %v4054 = vpop.f32.mrb[0].mxu0
  %v4055 = vadd.f32 %v3904, %v4054
  %4056 = vmatprep.mubr.f32.mxu0 0.0
  %4057 = vmatmul.mubr.f32.gmra.mrb[0].mxu0 %v3643
  %v4058 = vpop.f32.mrb[0].mxu0
  %v4059 = vadd.f32 %v3900, %v4058
  %v4060 = vpop.f32.mrb[0].mxu0
  %v4061 = vadd.f32 %v3904, %v4060
  %4062 = vdwg.mxu0
  %v4063 = vmax.f32 %v3976, 0.0
  %v4064 = vmax.f32 %v3978, 0.0
  %v4065 = vmax.f32 %v4053, 0.0
  %v4066 = vmax.f32 %v4055, 0.0
  %v4067 = vmax.f32 %v3982, 0.0
  %v4068 = vmax.f32 %v3984, 0.0
  %v4069 = vmax.f32 %v4059, 0.0
  %v4070 = vmax.f32 %v4061, 0.0
  %v4071 = vld [vmem:[%s51 + $0x200] sm:$0xff]
  %v4072 = vld [vmem:[%s51 + $0x208] sm:$0xff]
  %v4073 = vld [vmem:[%s51 + $0x210] sm:$0xff]
  %v4074 = vld [vmem:[%s51 + $0x218] sm:$0xff]
  %v4075 = vld [vmem:[%s51 + $0x220] sm:$0xff]
  %v4076 = vld [vmem:[%s51 + $0x228] sm:$0xff]
  %v4077 = vld [vmem:[%s51 + $0x230] sm:$0xff]
  %v4078 = vld [vmem:[%s51 + $0x238] sm:$0xff]
  %v4079 = vld [vmem:[%s51 + $0x240] sm:$0xff]
  %v4080 = vld [vmem:[%s51 + $0x248] sm:$0xff]
  %v4081 = vld [vmem:[%s51 + $0x250] sm:$0xff]
  %v4082 = vld [vmem:[%s51 + $0x258] sm:$0xff]
  %v4083 = vld [vmem:[%s51 + $0x260] sm:$0xff]
  %v4084 = vld [vmem:[%s51 + $0x268] sm:$0xff]
  %v4085 = vld [vmem:[%s51 + $0x270] sm:$0xff]
  %v4086 = vld [vmem:[%s51 + $0x278] sm:$0xff]
  %v4087 = vld [vmem:[%s51 + $0x280] sm:$0xff]
  %v4088 = vld [vmem:[%s51 + $0x288] sm:$0xff]
  %v4089 = vld [vmem:[%s51 + $0x290] sm:$0xff]
  %v4090 = vld [vmem:[%s51 + $0x298] sm:$0xff]
  %v4091 = vld [vmem:[%s51 + $0x2a0] sm:$0xff]
  %v4092 = vld [vmem:[%s51 + $0x2a8] sm:$0xff]
  %v4093 = vld [vmem:[%s51 + $0x2b0] sm:$0xff]
  %v4094 = vld [vmem:[%s51 + $0x2b8] sm:$0xff]
  %v4095 = vld [vmem:[%s51 + $0x2c0] sm:$0xff]
  %v4096 = vld [vmem:[%s51 + $0x2c8] sm:$0xff]
  %v4097 = vld [vmem:[%s51 + $0x2d0] sm:$0xff]
  %v4098 = vld [vmem:[%s51 + $0x2d8] sm:$0xff]
  %v4099 = vld [vmem:[%s51 + $0x2e0] sm:$0xff]
  %v4100 = vld [vmem:[%s51 + $0x2e8] sm:$0xff]
  %v4101 = vld [vmem:[%s51 + $0x2f0] sm:$0xff]
  %v4102 = vld [vmem:[%s51 + $0x2f8] sm:$0xff]
  %v4103 = vld [vmem:[%s51 + $0x300] sm:$0xff]
  %v4104 = vld [vmem:[%s51 + $0x308] sm:$0xff]
  %v4105 = vld [vmem:[%s51 + $0x310] sm:$0xff]
  %v4106 = vld [vmem:[%s51 + $0x318] sm:$0xff]
  %v4107 = vld [vmem:[%s51 + $0x320] sm:$0xff]
  %v4108 = vld [vmem:[%s51 + $0x328] sm:$0xff]
  %v4109 = vld [vmem:[%s51 + $0x330] sm:$0xff]
  %v4110 = vld [vmem:[%s51 + $0x338] sm:$0xff]
  %v4111 = vld [vmem:[%s51 + $0x340] sm:$0xff]
  %v4112 = vld [vmem:[%s51 + $0x348] sm:$0xff]
  %v4113 = vld [vmem:[%s51 + $0x350] sm:$0xff]
  %v4114 = vld [vmem:[%s51 + $0x358] sm:$0xff]
  %v4115 = vld [vmem:[%s51 + $0x360] sm:$0xff]
  %v4116 = vld [vmem:[%s51 + $0x368] sm:$0xff]
  %v4117 = vld [vmem:[%s51 + $0x370] sm:$0xff]
  %v4118 = vld [vmem:[%s51 + $0x378] sm:$0xff]
  %v4119 = vld [vmem:[%s51 + $0x380] sm:$0xff]
  %v4120 = vld [vmem:[%s51 + $0x388] sm:$0xff]
  %v4121 = vld [vmem:[%s51 + $0x390] sm:$0xff]
  %v4122 = vld [vmem:[%s51 + $0x398] sm:$0xff]
  %v4123 = vld [vmem:[%s51 + $0x3a0] sm:$0xff]
  %v4124 = vld [vmem:[%s51 + $0x3a8] sm:$0xff]
  %v4125 = vld [vmem:[%s51 + $0x3b0] sm:$0xff]
  %v4126 = vld [vmem:[%s51 + $0x3b8] sm:$0xff]
  %v4127 = vld [vmem:[%s51 + $0x3c0] sm:$0xff]
  %v4128 = vld [vmem:[%s51 + $0x3c8] sm:$0xff]
  %v4129 = vld [vmem:[%s51 + $0x3d0] sm:$0xff]
  %v4130 = vld [vmem:[%s51 + $0x3d8] sm:$0xff]
  %v4131 = vld [vmem:[%s51 + $0x3e0] sm:$0xff]
  %v4132 = vld [vmem:[%s51 + $0x3e8] sm:$0xff]
  %v4133 = vld [vmem:[%s51 + $0x3f0] sm:$0xff]
  %v4134 = vld [vmem:[%s51 + $0x3f8] sm:$0xff]
  %4135 = vmatprep.subr.mxu0 0.0
  %4136 = vmatpush1.msra.mxu0 %v4071
  %4137 = vmatprep.subr.mxu0 0.0
  %4138 = vmatpush1.msra.mxu0 %v4072
  %4139 = vmatprep.subr.mxu0 0.0
  %4140 = vmatpush1.msra.mxu0 %v4073
  %4141 = vmatprep.subr.mxu0 0.0
  %4142 = vmatpush1.msra.mxu0 %v4074
  %4143 = vmatprep.subr.mxu0 0.0
  %4144 = vmatpush1.msra.mxu0 %v4075
  %4145 = vmatprep.subr.mxu0 0.0
  %4146 = vmatpush1.msra.mxu0 %v4076
  %4147 = vmatprep.subr.mxu0 0.0
  %4148 = vmatpush1.msra.mxu0 %v4077
  %4149 = vmatprep.subr.mxu0 0.0
  %4150 = vmatpush1.msra.mxu0 %v4078
  %4151 = vmatprep.subr.mxu0 0.0
  %4152 = vmatpush1.msra.mxu0 %v4079
  %4153 = vmatprep.subr.mxu0 0.0
  %4154 = vmatpush1.msra.mxu0 %v4080
  %4155 = vmatprep.subr.mxu0 0.0
  %4156 = vmatpush1.msra.mxu0 %v4081
  %4157 = vmatprep.subr.mxu0 0.0
  %4158 = vmatpush1.msra.mxu0 %v4082
  %4159 = vmatprep.subr.mxu0 0.0
  %4160 = vmatpush1.msra.mxu0 %v4083
  %4161 = vmatprep.subr.mxu0 0.0
  %4162 = vmatpush1.msra.mxu0 %v4084
  %4163 = vmatprep.subr.mxu0 0.0
  %4164 = vmatpush1.msra.mxu0 %v4085
  %4165 = vmatprep.subr.mxu0 0.0
  %4166 = vmatpush1.msra.mxu0 %v4086
  %4167 = vmatprep.subr.mxu0 0.0
  %4168 = vmatpush1.msra.mxu0 %v4087
  %4169 = vmatprep.subr.mxu0 0.0
  %4170 = vmatpush1.msra.mxu0 %v4088
  %4171 = vmatprep.subr.mxu0 0.0
  %4172 = vmatpush1.msra.mxu0 %v4089
  %4173 = vmatprep.subr.mxu0 0.0
  %4174 = vmatpush1.msra.mxu0 %v4090
  %4175 = vmatprep.subr.mxu0 0.0
  %4176 = vmatpush1.msra.mxu0 %v4091
  %4177 = vmatprep.subr.mxu0 0.0
  %4178 = vmatpush1.msra.mxu0 %v4092
  %4179 = vmatprep.subr.mxu0 0.0
  %4180 = vmatpush1.msra.mxu0 %v4093
  %4181 = vmatprep.subr.mxu0 0.0
  %4182 = vmatpush1.msra.mxu0 %v4094
  %4183 = vmatprep.subr.mxu0 0.0
  %4184 = vmatpush1.msra.mxu0 %v4095
  %4185 = vmatprep.subr.mxu0 0.0
  %4186 = vmatpush1.msra.mxu0 %v4096
  %4187 = vmatprep.subr.mxu0 0.0
  %4188 = vmatpush1.msra.mxu0 %v4097
  %4189 = vmatprep.subr.mxu0 0.0
  %4190 = vmatpush1.msra.mxu0 %v4098
  %4191 = vmatprep.subr.mxu0 0.0
  %4192 = vmatpush1.msra.mxu0 %v4099
  %4193 = vmatprep.subr.mxu0 0.0
  %4194 = vmatpush1.msra.mxu0 %v4100
  %4195 = vmatprep.subr.mxu0 0.0
  %4196 = vmatpush1.msra.mxu0 %v4101
  %4197 = vmatprep.subr.mxu0 0.0
  %4198 = vmatpush1.msra.mxu0 %v4102
  %4199 = vmatprep.mubr.f32.mxu0 %v4064
  %4200 = vmatmul.mubr.f32.gmra.mrb[0].mxu0 %v4063
  %v4201 = vpop.f32.mrb[0].mxu0
  %v4202 = vadd.f32 0.0, %v4201
  %v4203 = vpop.f32.mrb[0].mxu0
  %4204 = vmatprep.mubr.f32.mxu0 %v4068
  %4205 = vmatmul.mubr.f32.gmra.mrb[0].mxu0 %v4067
  %v4206 = vpop.f32.mrb[0].mxu0
  %v4207 = vadd.f32 0.0, %v4206
  %v4208 = vpop.f32.mrb[0].mxu0
  %4209 = vdwg.mxu0
  %4210 = vmatprep.subr.mxu0 0.0
  %4211 = vmatpush1.msra.mxu0 %v4103
  %4212 = vmatprep.subr.mxu0 0.0
  %4213 = vmatpush1.msra.mxu0 %v4104
  %4214 = vmatprep.subr.mxu0 0.0
  %4215 = vmatpush1.msra.mxu0 %v4105
  %4216 = vmatprep.subr.mxu0 0.0
  %4217 = vmatpush1.msra.mxu0 %v4106
  %4218 = vmatprep.subr.mxu0 0.0
  %4219 = vmatpush1.msra.mxu0 %v4107
  %4220 = vmatprep.subr.mxu0 0.0
  %4221 = vmatpush1.msra.mxu0 %v4108
  %4222 = vmatprep.subr.mxu0 0.0
  %4223 = vmatpush1.msra.mxu0 %v4109
  %4224 = vmatprep.subr.mxu0 0.0
  %4225 = vmatpush1.msra.mxu0 %v4110
  %4226 = vmatprep.subr.mxu0 0.0
  %4227 = vmatpush1.msra.mxu0 %v4111
  %4228 = vmatprep.subr.mxu0 0.0
  %4229 = vmatpush1.msra.mxu0 %v4112
  %4230 = vmatprep.subr.mxu0 0.0
  %4231 = vmatpush1.msra.mxu0 %v4113
  %4232 = vmatprep.subr.mxu0 0.0
  %4233 = vmatpush1.msra.mxu0 %v4114
  %4234 = vmatprep.subr.mxu0 0.0
  %4235 = vmatpush1.msra.mxu0 %v4115
  %4236 = vmatprep.subr.mxu0 0.0
  %4237 = vmatpush1.msra.mxu0 %v4116
  %4238 = vmatprep.subr.mxu0 0.0
  %4239 = vmatpush1.msra.mxu0 %v4117
  %4240 = vmatprep.subr.mxu0 0.0
  %4241 = vmatpush1.msra.mxu0 %v4118
  %4242 = vmatprep.subr.mxu0 0.0
  %4243 = vmatpush1.msra.mxu0 %v4119
  %4244 = vmatprep.subr.mxu0 0.0
  %4245 = vmatpush1.msra.mxu0 %v4120
  %4246 = vmatprep.subr.mxu0 0.0
  %4247 = vmatpush1.msra.mxu0 %v4121
  %4248 = vmatprep.subr.mxu0 0.0
  %4249 = vmatpush1.msra.mxu0 %v4122
  %4250 = vmatprep.subr.mxu0 0.0
  %4251 = vmatpush1.msra.mxu0 %v4123
  %4252 = vmatprep.subr.mxu0 0.0
  %4253 = vmatpush1.msra.mxu0 %v4124
  %4254 = vmatprep.subr.mxu0 0.0
  %4255 = vmatpush1.msra.mxu0 %v4125
  %4256 = vmatprep.subr.mxu0 0.0
  %4257 = vmatpush1.msra.mxu0 %v4126
  %4258 = vmatprep.subr.mxu0 0.0
  %4259 = vmatpush1.msra.mxu0 %v4127
  %4260 = vmatprep.subr.mxu0 0.0
  %4261 = vmatpush1.msra.mxu0 %v4128
  %4262 = vmatprep.subr.mxu0 0.0
  %4263 = vmatpush1.msra.mxu0 %v4129
  %4264 = vmatprep.subr.mxu0 0.0
  %4265 = vmatpush1.msra.mxu0 %v4130
  %4266 = vmatprep.subr.mxu0 0.0
  %4267 = vmatpush1.msra.mxu0 %v4131
  %4268 = vmatprep.subr.mxu0 0.0
  %4269 = vmatpush1.msra.mxu0 %v4132
  %4270 = vmatprep.subr.mxu0 0.0
  %4271 = vmatpush1.msra.mxu0 %v4133
  %4272 = vmatprep.subr.mxu0 0.0
  %4273 = vmatpush1.msra.mxu0 %v4134
  %4274 = vmatprep.mubr.f32.mxu0 %v4066
  %4275 = vmatmul.mubr.f32.gmra.mrb[0].mxu0 %v4065
  %v4276 = vpop.f32.mrb[0].mxu0
  %v4277 = vadd.f32 %v4202, %v4276
  %v4278 = vpop.f32.mrb[0].mxu0
  %4279 = vmatprep.mubr.f32.mxu0 %v4070
  %4280 = vmatmul.mubr.f32.gmra.mrb[0].mxu0 %v4069
  %v4281 = vpop.f32.mrb[0].mxu0
  %v4282 = vadd.f32 %v4207, %v4281
  %v4283 = vpop.f32.mrb[0].mxu0
  %4284 = vdwg.mxu0
  %4285 = vmatprep.subr.mxu0 0.0
  %4286 = vmatpush1.msra.mxu0 %v3807
  %4287 = vmatprep.subr.mxu0 0.0
  %4288 = vmatpush1.msra.mxu0 %v3808
  %4289 = vmatprep.subr.mxu0 0.0
  %4290 = vmatpush1.msra.mxu0 %v3809
  %4291 = vmatprep.subr.mxu0 0.0
  %4292 = vmatpush1.msra.mxu0 %v3810
  %4293 = vmatprep.subr.mxu0 0.0
  %4294 = vmatpush1.msra.mxu0 %v3811
  %4295 = vmatprep.subr.mxu0 0.0
  %4296 = vmatpush1.msra.mxu0 %v3812
  %4297 = vmatprep.subr.mxu0 0.0
  %4298 = vmatpush1.msra.mxu0 %v3813
  %4299 = vmatprep.subr.mxu0 0.0
  %4300 = vmatpush1.msra.mxu0 %v3814
  %4301 = vmatprep.subr.mxu0 0.0
  %4302 = vmatpush1.msra.mxu0 %v3815
  %4303 = vmatprep.subr.mxu0 0.0
  %4304 = vmatpush1.msra.mxu0 %v3816
  %4305 = vmatprep.subr.mxu0 0.0
  %4306 = vmatpush1.msra.mxu0 %v3817
  %4307 = vmatprep.subr.mxu0 0.0
  %4308 = vmatpush1.msra.mxu0 %v3818
  %4309 = vmatprep.subr.mxu0 0.0
  %4310 = vmatpush1.msra.mxu0 %v3819
  %4311 = vmatprep.subr.mxu0 0.0
  %4312 = vmatpush1.msra.mxu0 %v3820
  %4313 = vmatprep.subr.mxu0 0.0
  %4314 = vmatpush1.msra.mxu0 %v3821
  %4315 = vmatprep.subr.mxu0 0.0
  %4316 = vmatpush1.msra.mxu0 %v3822
  %4317 = vmatprep.subr.mxu0 0.0
  %4318 = vmatpush1.msra.mxu0 %v3823
  %4319 = vmatprep.subr.mxu0 0.0
  %4320 = vmatpush1.msra.mxu0 %v3824
  %4321 = vmatprep.subr.mxu0 0.0
  %4322 = vmatpush1.msra.mxu0 %v3825
  %4323 = vmatprep.subr.mxu0 0.0
  %4324 = vmatpush1.msra.mxu0 %v3826
  %4325 = vmatprep.subr.mxu0 0.0
  %4326 = vmatpush1.msra.mxu0 %v3827
  %4327 = vmatprep.subr.mxu0 0.0
  %4328 = vmatpush1.msra.mxu0 %v3828
  %4329 = vmatprep.subr.mxu0 0.0
  %4330 = vmatpush1.msra.mxu0 %v3829
  %4331 = vmatprep.subr.mxu0 0.0
  %4332 = vmatpush1.msra.mxu0 %v3830
  %4333 = vmatprep.subr.mxu0 0.0
  %4334 = vmatpush1.msra.mxu0 %v3831
  %4335 = vmatprep.subr.mxu0 0.0
  %4336 = vmatpush1.msra.mxu0 %v3832
  %4337 = vmatprep.subr.mxu0 0.0
  %4338 = vmatpush1.msra.mxu0 %v3833
  %4339 = vmatprep.subr.mxu0 0.0
  %4340 = vmatpush1.msra.mxu0 %v3834
  %4341 = vmatprep.subr.mxu0 0.0
  %4342 = vmatpush1.msra.mxu0 %v3835
  %4343 = vmatprep.subr.mxu0 0.0
  %4344 = vmatpush1.msra.mxu0 %v3836
  %4345 = vmatprep.subr.mxu0 0.0
  %4346 = vmatpush1.msra.mxu0 %v3837
  %4347 = vmatprep.subr.mxu0 0.0
  %4348 = vmatpush1.msra.mxu0 %v3838
  %4349 = vmatprep.mubr.f32.mxu0 %v3800
  %4350 = vmatmul.mubr.f32.gmra.mrb[0].mxu0 %v3799
  %v4351 = vpop.f32.mrb[0].mxu0
  %v4352 = vadd.f32 %v4277, %v4351
  %v4353 = vpop.f32.mrb[0].mxu0
  %4354 = vmatprep.mubr.f32.mxu0 %v3804
  %4355 = vmatmul.mubr.f32.gmra.mrb[0].mxu0 %v3803
  %v4356 = vpop.f32.mrb[0].mxu0
  %v4357 = vadd.f32 %v4282, %v4356
  %v4358 = vpop.f32.mrb[0].mxu0
  %4359 = vdwg.mxu0
  %4360 = vmatprep.subr.mxu0 0.0
  %4361 = vmatpush1.msra.mxu0 %v3839
  %4362 = vmatprep.subr.mxu0 0.0
  %4363 = vmatpush1.msra.mxu0 %v3840
  %4364 = vmatprep.subr.mxu0 0.0
  %4365 = vmatpush1.msra.mxu0 %v3841
  %4366 = vmatprep.subr.mxu0 0.0
  %4367 = vmatpush1.msra.mxu0 %v3842
  %4368 = vmatprep.subr.mxu0 0.0
  %4369 = vmatpush1.msra.mxu0 %v3843
  %4370 = vmatprep.subr.mxu0 0.0
  %4371 = vmatpush1.msra.mxu0 %v3844
  %4372 = vmatprep.subr.mxu0 0.0
  %4373 = vmatpush1.msra.mxu0 %v3845
  %4374 = vmatprep.subr.mxu0 0.0
  %4375 = vmatpush1.msra.mxu0 %v3846
  %4376 = vmatprep.subr.mxu0 0.0
  %4377 = vmatpush1.msra.mxu0 %v3847
  %4378 = vmatprep.subr.mxu0 0.0
  %4379 = vmatpush1.msra.mxu0 %v3848
  %4380 = vmatprep.subr.mxu0 0.0
  %4381 = vmatpush1.msra.mxu0 %v3849
  %4382 = vmatprep.subr.mxu0 0.0
  %4383 = vmatpush1.msra.mxu0 %v3850
  %4384 = vmatprep.subr.mxu0 0.0
  %4385 = vmatpush1.msra.mxu0 %v3851
  %4386 = vmatprep.subr.mxu0 0.0
  %4387 = vmatpush1.msra.mxu0 %v3852
  %4388 = vmatprep.subr.mxu0 0.0
  %4389 = vmatpush1.msra.mxu0 %v3853
  %4390 = vmatprep.subr.mxu0 0.0
  %4391 = vmatpush1.msra.mxu0 %v3854
  %4392 = vmatprep.subr.mxu0 0.0
  %4393 = vmatpush1.msra.mxu0 %v3855
  %4394 = vmatprep.subr.mxu0 0.0
  %4395 = vmatpush1.msra.mxu0 %v3856
  %4396 = vmatprep.subr.mxu0 0.0
  %4397 = vmatpush1.msra.mxu0 %v3857
  %4398 = vmatprep.subr.mxu0 0.0
  %4399 = vmatpush1.msra.mxu0 %v3858
  %4400 = vmatprep.subr.mxu0 0.0
  %4401 = vmatpush1.msra.mxu0 %v3859
  %4402 = vmatprep.subr.mxu0 0.0
  %4403 = vmatpush1.msra.mxu0 %v3860
  %4404 = vmatprep.subr.mxu0 0.0
  %4405 = vmatpush1.msra.mxu0 %v3861
  %4406 = vmatprep.subr.mxu0 0.0
  %4407 = vmatpush1.msra.mxu0 %v3862
  %4408 = vmatprep.subr.mxu0 0.0
  %4409 = vmatpush1.msra.mxu0 %v3863
  %4410 = vmatprep.subr.mxu0 0.0
  %4411 = vmatpush1.msra.mxu0 %v3864
  %4412 = vmatprep.subr.mxu0 0.0
  %4413 = vmatpush1.msra.mxu0 %v3865
  %4414 = vmatprep.subr.mxu0 0.0
  %4415 = vmatpush1.msra.mxu0 %v3866
  %4416 = vmatprep.subr.mxu0 0.0
  %4417 = vmatpush1.msra.mxu0 %v3867
  %4418 = vmatprep.subr.mxu0 0.0
  %4419 = vmatpush1.msra.mxu0 %v3868
  %4420 = vmatprep.subr.mxu0 0.0
  %4421 = vmatpush1.msra.mxu0 %v3869
  %4422 = vmatprep.subr.mxu0 0.0
  %4423 = vmatpush1.msra.mxu0 %v3870
  %4424 = vmatprep.mubr.f32.mxu0 %v3802
  %4425 = vmatmul.mubr.f32.gmra.mrb[0].mxu0 %v3801
  %v4426 = vpop.f32.mrb[0].mxu0
  %v4427 = vadd.f32 %v4352, %v4426
  %v4428 = vpop.f32.mrb[0].mxu0
  %4429 = vmatprep.mubr.f32.mxu0 %v3806
  %4430 = vmatmul.mubr.f32.gmra.mrb[0].mxu0 %v3805
  %v4431 = vpop.f32.mrb[0].mxu0
  %v4432 = vadd.f32 %v4357, %v4431
  %v4433 = vpop.f32.mrb[0].mxu0
  %4434 = vdwg.mxu0
  %v4435 = vld [vmem:[%s47 + $0x40] sm:$0xff]
  %v4436 = vld [vmem:[%s47 + $0x48] sm:$0xff]
  %v4437 = vld [vmem:[%s47 + $0x50] sm:$0xff]
  %v4438 = vld [vmem:[%s47 + $0x58] sm:$0xff]
  %v4439 = vld [vmem:[%s47 + $0xc0] sm:$0xff]
  %v4440 = vld [vmem:[%s47 + $0xc8] sm:$0xff]
  %v4441 = vld [vmem:[%s47 + $0xd0] sm:$0xff]
  %v4442 = vld [vmem:[%s47 + $0xd8] sm:$0xff]
  %v4443 = vld [vmem:[%s47 + $0x140] sm:$0xff]
  %v4444 = vld [vmem:[%s47 + $0x148] sm:$0xff]
  %v4445 = vld [vmem:[%s47 + $0x150] sm:$0xff]
  %v4446 = vld [vmem:[%s47 + $0x158] sm:$0xff]
  %v4447 = vld [vmem:[%s47 + $0x1c0] sm:$0xff]
  %v4448 = vld [vmem:[%s47 + $0x1c8] sm:$0xff]
  %v4449 = vld [vmem:[%s47 + $0x1d0] sm:$0xff]
  %v4450 = vld [vmem:[%s47 + $0x1d8] sm:$0xff]
  %v4451 = vld [vmem:[%s49 + $0x8] sm:$0xf]
  %v4453 = vlaneseq
  %v4454 = vshrl.u32 %v4453, 7
  %v4455 = vsub.s32 0, %v4454
  %v4456 = vrot.slane %v4451, %v4455
  %v4457 = vlaneseq
  %v4458 = vshrl.u32 %v4457, 7
  %v4459 = vsub.s32 1, %v4458
  %v4460 = vrot.slane %v4451, %v4459
  %v4461 = vlaneseq
  %v4462 = vshrl.u32 %v4461, 7
  %v4463 = vsub.s32 2, %v4462
  %v4464 = vrot.slane %v4451, %v4463
  %v4465 = vlaneseq
  %v4466 = vshrl.u32 %v4465, 7
  %v4467 = vsub.s32 3, %v4466
  %v4468 = vrot.slane %v4451, %v4467
  %4473 = vmatprep.subr.mxu0 %v4436
  %4474 = vmatpush1.msra.mxu0 %v4435
  %4475 = vmatprep.subr.mxu0 %v4440
  %4476 = vmatpush1.msra.mxu0 %v4439
  %4477 = vmatprep.subr.mxu0 %v4444
  %4478 = vmatpush1.msra.mxu0 %v4443
  %4479 = vmatprep.subr.mxu0 %v4448
  %4480 = vmatpush1.msra.mxu0 %v4447
  %4481 = vmatprep.subr.mxu0 0.0
  %4482 = vmatpush1.msra.mxu0 0.0
  %4483 = vmatprep.subr.mxu0 0.0
  %4484 = vmatpush1.msra.mxu0 0.0
  %4485 = vmatprep.subr.mxu0 0.0
  %4486 = vmatpush1.msra.mxu0 0.0
  %4487 = vmatprep.subr.mxu0 0.0
  %4488 = vmatpush1.msra.mxu0 0.0
  %4489 = vmatprep.subr.mxu0 0.0
  %4490 = vmatpush1.msra.mxu0 0.0
  %4491 = vmatprep.subr.mxu0 0.0
  %4492 = vmatpush1.msra.mxu0 0.0
  %4493 = vmatprep.subr.mxu0 0.0
  %4494 = vmatpush1.msra.mxu0 0.0
  %4495 = vmatprep.subr.mxu0 0.0
  %4496 = vmatpush1.msra.mxu0 0.0
  %4497 = vmatprep.subr.mxu0 0.0
  %4498 = vmatpush1.msra.mxu0 0.0
  %4499 = vmatprep.subr.mxu0 0.0
  %4500 = vmatpush1.msra.mxu0 0.0
  %4501 = vmatprep.subr.mxu0 0.0
  %4502 = vmatpush1.msra.mxu0 0.0
  %4503 = vmatprep.subr.mxu0 0.0
  %4504 = vmatpush1.msra.mxu0 0.0
  %4505 = vmatprep.subr.mxu0 0.0
  %4506 = vmatpush1.msra.mxu0 0.0
  %4507 = vmatprep.subr.mxu0 0.0
  %4508 = vmatpush1.msra.mxu0 0.0
  %4509 = vmatprep.subr.mxu0 0.0
  %4510 = vmatpush1.msra.mxu0 0.0
  %4511 = vmatprep.subr.mxu0 0.0
  %4512 = vmatpush1.msra.mxu0 0.0
  %4513 = vmatprep.subr.mxu0 0.0
  %4514 = vmatpush1.msra.mxu0 0.0
  %4515 = vmatprep.subr.mxu0 0.0
  %4516 = vmatpush1.msra.mxu0 0.0
  %4517 = vmatprep.subr.mxu0 0.0
  %4518 = vmatpush1.msra.mxu0 0.0
  %4519 = vmatprep.subr.mxu0 0.0
  %4520 = vmatpush1.msra.mxu0 0.0
  %4521 = vmatprep.subr.mxu0 0.0
  %4522 = vmatpush1.msra.mxu0 0.0
  %4523 = vmatprep.subr.mxu0 0.0
  %4524 = vmatpush1.msra.mxu0 0.0
  %4525 = vmatprep.subr.mxu0 0.0
  %4526 = vmatpush1.msra.mxu0 0.0
  %4527 = vmatprep.subr.mxu0 0.0
  %4528 = vmatpush1.msra.mxu0 0.0
  %4529 = vmatprep.subr.mxu0 0.0
  %4530 = vmatpush1.msra.mxu0 0.0
  %4531 = vmatprep.subr.mxu0 0.0
  %4532 = vmatpush1.msra.mxu0 0.0
  %4533 = vmatprep.subr.mxu0 0.0
  %4534 = vmatpush1.msra.mxu0 0.0
  %4535 = vmatprep.subr.mxu0 0.0
  %4536 = vmatpush1.msra.mxu0 0.0
  %4537 = vmatprep.mubr.f32.mxu0 0.0
  %4538 = vmatmul.mubr.f32.gmra.mrb[0].mxu0 %v3640
  %v4539 = vpop.f32.mrb[0].mxu0
  %v4540 = vadd.f32 %v4456, %v4539
  %v4541 = vpop.f32.mrb[0].mxu0
  %v4542 = vadd.f32 %v4460, %v4541
  %4543 = vmatprep.mubr.f32.mxu0 0.0
  %4544 = vmatmul.mubr.f32.gmra.mrb[0].mxu0 %v3643
  %v4545 = vpop.f32.mrb[0].mxu0
  %v4546 = vadd.f32 %v4456, %v4545
  %v4547 = vpop.f32.mrb[0].mxu0
  %v4548 = vadd.f32 %v4460, %v4547
  %4549 = vdwg.mxu0
  %4550 = vmatprep.subr.mxu0 %v4438
  %4551 = vmatpush1.msra.mxu0 %v4437
  %4552 = vmatprep.subr.mxu0 %v4442
  %4553 = vmatpush1.msra.mxu0 %v4441
  %4554 = vmatprep.subr.mxu0 %v4446
  %4555 = vmatpush1.msra.mxu0 %v4445
  %4556 = vmatprep.subr.mxu0 %v4450
  %4557 = vmatpush1.msra.mxu0 %v4449
  %4558 = vmatprep.subr.mxu0 0.0
  %4559 = vmatpush1.msra.mxu0 0.0
  %4560 = vmatprep.subr.mxu0 0.0
  %4561 = vmatpush1.msra.mxu0 0.0
  %4562 = vmatprep.subr.mxu0 0.0
  %4563 = vmatpush1.msra.mxu0 0.0
  %4564 = vmatprep.subr.mxu0 0.0
  %4565 = vmatpush1.msra.mxu0 0.0
  %4566 = vmatprep.subr.mxu0 0.0
  %4567 = vmatpush1.msra.mxu0 0.0
  %4568 = vmatprep.subr.mxu0 0.0
  %4569 = vmatpush1.msra.mxu0 0.0
  %4570 = vmatprep.subr.mxu0 0.0
  %4571 = vmatpush1.msra.mxu0 0.0
  %4572 = vmatprep.subr.mxu0 0.0
  %4573 = vmatpush1.msra.mxu0 0.0
  %4574 = vmatprep.subr.mxu0 0.0
  %4575 = vmatpush1.msra.mxu0 0.0
  %4576 = vmatprep.subr.mxu0 0.0
  %4577 = vmatpush1.msra.mxu0 0.0
  %4578 = vmatprep.subr.mxu0 0.0
  %4579 = vmatpush1.msra.mxu0 0.0
  %4580 = vmatprep.subr.mxu0 0.0
  %4581 = vmatpush1.msra.mxu0 0.0
  %4582 = vmatprep.subr.mxu0 0.0
  %4583 = vmatpush1.msra.mxu0 0.0
  %4584 = vmatprep.subr.mxu0 0.0
  %4585 = vmatpush1.msra.mxu0 0.0
  %4586 = vmatprep.subr.mxu0 0.0
  %4587 = vmatpush1.msra.mxu0 0.0
  %4588 = vmatprep.subr.mxu0 0.0
  %4589 = vmatpush1.msra.mxu0 0.0
  %4590 = vmatprep.subr.mxu0 0.0
  %4591 = vmatpush1.msra.mxu0 0.0
  %4592 = vmatprep.subr.mxu0 0.0
  %4593 = vmatpush1.msra.mxu0 0.0
  %4594 = vmatprep.subr.mxu0 0.0
  %4595 = vmatpush1.msra.mxu0 0.0
  %4596 = vmatprep.subr.mxu0 0.0
  %4597 = vmatpush1.msra.mxu0 0.0
  %4598 = vmatprep.subr.mxu0 0.0
  %4599 = vmatpush1.msra.mxu0 0.0
  %4600 = vmatprep.subr.mxu0 0.0
  %4601 = vmatpush1.msra.mxu0 0.0
  %4602 = vmatprep.subr.mxu0 0.0
  %4603 = vmatpush1.msra.mxu0 0.0
  %4604 = vmatprep.subr.mxu0 0.0
  %4605 = vmatpush1.msra.mxu0 0.0
  %4606 = vmatprep.subr.mxu0 0.0
  %4607 = vmatpush1.msra.mxu0 0.0
  %4608 = vmatprep.subr.mxu0 0.0
  %4609 = vmatpush1.msra.mxu0 0.0
  %4610 = vmatprep.subr.mxu0 0.0
  %4611 = vmatpush1.msra.mxu0 0.0
  %4612 = vmatprep.subr.mxu0 0.0
  %4613 = vmatpush1.msra.mxu0 0.0
  %4614 = vmatprep.mubr.f32.mxu0 0.0
  %4615 = vmatmul.mubr.f32.gmra.mrb[0].mxu0 %v3640
  %v4616 = vpop.f32.mrb[0].mxu0
  %v4617 = vadd.f32 %v4464, %v4616
  %v4618 = vpop.f32.mrb[0].mxu0
  %v4619 = vadd.f32 %v4468, %v4618
  %4620 = vmatprep.mubr.f32.mxu0 0.0
  %4621 = vmatmul.mubr.f32.gmra.mrb[0].mxu0 %v3643
  %v4622 = vpop.f32.mrb[0].mxu0
  %v4623 = vadd.f32 %v4464, %v4622
  %v4624 = vpop.f32.mrb[0].mxu0
  %v4625 = vadd.f32 %v4468, %v4624
  %4626 = vdwg.mxu0
  %v4627 = vmax.f32 %v4540, 0.0
  %v4628 = vmax.f32 %v4542, 0.0
  %v4629 = vmax.f32 %v4617, 0.0
  %v4630 = vmax.f32 %v4619, 0.0
  %v4631 = vmax.f32 %v4546, 0.0
  %v4632 = vmax.f32 %v4548, 0.0
  %v4633 = vmax.f32 %v4623, 0.0
  %v4634 = vmax.f32 %v4625, 0.0
  %v4635 = vld [vmem:[%s51 + $0x400] sm:$0xff]
  %v4636 = vld [vmem:[%s51 + $0x408] sm:$0xff]
  %v4637 = vld [vmem:[%s51 + $0x410] sm:$0xff]
  %v4638 = vld [vmem:[%s51 + $0x418] sm:$0xff]
  %v4639 = vld [vmem:[%s51 + $0x420] sm:$0xff]
  %v4640 = vld [vmem:[%s51 + $0x428] sm:$0xff]
  %v4641 = vld [vmem:[%s51 + $0x430] sm:$0xff]
  %v4642 = vld [vmem:[%s51 + $0x438] sm:$0xff]
  %v4643 = vld [vmem:[%s51 + $0x440] sm:$0xff]
  %v4644 = vld [vmem:[%s51 + $0x448] sm:$0xff]
  %v4645 = vld [vmem:[%s51 + $0x450] sm:$0xff]
  %v4646 = vld [vmem:[%s51 + $0x458] sm:$0xff]
  %v4647 = vld [vmem:[%s51 + $0x460] sm:$0xff]
  %v4648 = vld [vmem:[%s51 + $0x468] sm:$0xff]
  %v4649 = vld [vmem:[%s51 + $0x470] sm:$0xff]
  %v4650 = vld [vmem:[%s51 + $0x478] sm:$0xff]
  %v4651 = vld [vmem:[%s51 + $0x480] sm:$0xff]
  %v4652 = vld [vmem:[%s51 + $0x488] sm:$0xff]
  %v4653 = vld [vmem:[%s51 + $0x490] sm:$0xff]
  %v4654 = vld [vmem:[%s51 + $0x498] sm:$0xff]
  %v4655 = vld [vmem:[%s51 + $0x4a0] sm:$0xff]
  %v4656 = vld [vmem:[%s51 + $0x4a8] sm:$0xff]
  %v4657 = vld [vmem:[%s51 + $0x4b0] sm:$0xff]
  %v4658 = vld [vmem:[%s51 + $0x4b8] sm:$0xff]
  %v4659 = vld [vmem:[%s51 + $0x4c0] sm:$0xff]
  %v4660 = vld [vmem:[%s51 + $0x4c8] sm:$0xff]
  %v4661 = vld [vmem:[%s51 + $0x4d0] sm:$0xff]
  %v4662 = vld [vmem:[%s51 + $0x4d8] sm:$0xff]
  %v4663 = vld [vmem:[%s51 + $0x4e0] sm:$0xff]
  %v4664 = vld [vmem:[%s51 + $0x4e8] sm:$0xff]
  %v4665 = vld [vmem:[%s51 + $0x4f0] sm:$0xff]
  %v4666 = vld [vmem:[%s51 + $0x4f8] sm:$0xff]
  %v4667 = vld [vmem:[%s51 + $0x500] sm:$0xff]
  %v4668 = vld [vmem:[%s51 + $0x508] sm:$0xff]
  %v4669 = vld [vmem:[%s51 + $0x510] sm:$0xff]
  %v4670 = vld [vmem:[%s51 + $0x518] sm:$0xff]
  %v4671 = vld [vmem:[%s51 + $0x520] sm:$0xff]
  %v4672 = vld [vmem:[%s51 + $0x528] sm:$0xff]
  %v4673 = vld [vmem:[%s51 + $0x530] sm:$0xff]
  %v4674 = vld [vmem:[%s51 + $0x538] sm:$0xff]
  %v4675 = vld [vmem:[%s51 + $0x540] sm:$0xff]
  %v4676 = vld [vmem:[%s51 + $0x548] sm:$0xff]
  %v4677 = vld [vmem:[%s51 + $0x550] sm:$0xff]
  %v4678 = vld [vmem:[%s51 + $0x558] sm:$0xff]
  %v4679 = vld [vmem:[%s51 + $0x560] sm:$0xff]
  %v4680 = vld [vmem:[%s51 + $0x568] sm:$0xff]
  %v4681 = vld [vmem:[%s51 + $0x570] sm:$0xff]
  %v4682 = vld [vmem:[%s51 + $0x578] sm:$0xff]
  %v4683 = vld [vmem:[%s51 + $0x580] sm:$0xff]
  %v4684 = vld [vmem:[%s51 + $0x588] sm:$0xff]
  %v4685 = vld [vmem:[%s51 + $0x590] sm:$0xff]
  %v4686 = vld [vmem:[%s51 + $0x598] sm:$0xff]
  %v4687 = vld [vmem:[%s51 + $0x5a0] sm:$0xff]
  %v4688 = vld [vmem:[%s51 + $0x5a8] sm:$0xff]
  %v4689 = vld [vmem:[%s51 + $0x5b0] sm:$0xff]
  %v4690 = vld [vmem:[%s51 + $0x5b8] sm:$0xff]
  %v4691 = vld [vmem:[%s51 + $0x5c0] sm:$0xff]
  %v4692 = vld [vmem:[%s51 + $0x5c8] sm:$0xff]
  %v4693 = vld [vmem:[%s51 + $0x5d0] sm:$0xff]
  %v4694 = vld [vmem:[%s51 + $0x5d8] sm:$0xff]
  %v4695 = vld [vmem:[%s51 + $0x5e0] sm:$0xff]
  %v4696 = vld [vmem:[%s51 + $0x5e8] sm:$0xff]
  %v4697 = vld [vmem:[%s51 + $0x5f0] sm:$0xff]
  %v4698 = vld [vmem:[%s51 + $0x5f8] sm:$0xff]
  %4699 = vmatprep.subr.mxu0 0.0
  %4700 = vmatpush1.msra.mxu0 %v4635
  %4701 = vmatprep.subr.mxu0 0.0
  %4702 = vmatpush1.msra.mxu0 %v4636
  %4703 = vmatprep.subr.mxu0 0.0
  %4704 = vmatpush1.msra.mxu0 %v4637
  %4705 = vmatprep.subr.mxu0 0.0
  %4706 = vmatpush1.msra.mxu0 %v4638
  %4707 = vmatprep.subr.mxu0 0.0
  %4708 = vmatpush1.msra.mxu0 %v4639
  %4709 = vmatprep.subr.mxu0 0.0
  %4710 = vmatpush1.msra.mxu0 %v4640
  %4711 = vmatprep.subr.mxu0 0.0
  %4712 = vmatpush1.msra.mxu0 %v4641
  %4713 = vmatprep.subr.mxu0 0.0
  %4714 = vmatpush1.msra.mxu0 %v4642
  %4715 = vmatprep.subr.mxu0 0.0
  %4716 = vmatpush1.msra.mxu0 %v4643
  %4717 = vmatprep.subr.mxu0 0.0
  %4718 = vmatpush1.msra.mxu0 %v4644
  %4719 = vmatprep.subr.mxu0 0.0
  %4720 = vmatpush1.msra.mxu0 %v4645
  %4721 = vmatprep.subr.mxu0 0.0
  %4722 = vmatpush1.msra.mxu0 %v4646
  %4723 = vmatprep.subr.mxu0 0.0
  %4724 = vmatpush1.msra.mxu0 %v4647
  %4725 = vmatprep.subr.mxu0 0.0
  %4726 = vmatpush1.msra.mxu0 %v4648
  %4727 = vmatprep.subr.mxu0 0.0
  %4728 = vmatpush1.msra.mxu0 %v4649
  %4729 = vmatprep.subr.mxu0 0.0
  %4730 = vmatpush1.msra.mxu0 %v4650
  %4731 = vmatprep.subr.mxu0 0.0
  %4732 = vmatpush1.msra.mxu0 %v4651
  %4733 = vmatprep.subr.mxu0 0.0
  %4734 = vmatpush1.msra.mxu0 %v4652
  %4735 = vmatprep.subr.mxu0 0.0
  %4736 = vmatpush1.msra.mxu0 %v4653
  %4737 = vmatprep.subr.mxu0 0.0
  %4738 = vmatpush1.msra.mxu0 %v4654
  %4739 = vmatprep.subr.mxu0 0.0
  %4740 = vmatpush1.msra.mxu0 %v4655
  %4741 = vmatprep.subr.mxu0 0.0
  %4742 = vmatpush1.msra.mxu0 %v4656
  %4743 = vmatprep.subr.mxu0 0.0
  %4744 = vmatpush1.msra.mxu0 %v4657
  %4745 = vmatprep.subr.mxu0 0.0
  %4746 = vmatpush1.msra.mxu0 %v4658
  %4747 = vmatprep.subr.mxu0 0.0
  %4748 = vmatpush1.msra.mxu0 %v4659
  %4749 = vmatprep.subr.mxu0 0.0
  %4750 = vmatpush1.msra.mxu0 %v4660
  %4751 = vmatprep.subr.mxu0 0.0
  %4752 = vmatpush1.msra.mxu0 %v4661
  %4753 = vmatprep.subr.mxu0 0.0
  %4754 = vmatpush1.msra.mxu0 %v4662
  %4755 = vmatprep.subr.mxu0 0.0
  %4756 = vmatpush1.msra.mxu0 %v4663
  %4757 = vmatprep.subr.mxu0 0.0
  %4758 = vmatpush1.msra.mxu0 %v4664
  %4759 = vmatprep.subr.mxu0 0.0
  %4760 = vmatpush1.msra.mxu0 %v4665
  %4761 = vmatprep.subr.mxu0 0.0
  %4762 = vmatpush1.msra.mxu0 %v4666
  %4763 = vmatprep.mubr.f32.mxu0 %v4628
  %4764 = vmatmul.mubr.f32.gmra.mrb[0].mxu0 %v4627
  %v4765 = vpop.f32.mrb[0].mxu0
  %v4766 = vadd.f32 0.0, %v4765
  %v4767 = vpop.f32.mrb[0].mxu0
  %4768 = vmatprep.mubr.f32.mxu0 %v4632
  %4769 = vmatmul.mubr.f32.gmra.mrb[0].mxu0 %v4631
  %v4770 = vpop.f32.mrb[0].mxu0
  %v4771 = vadd.f32 0.0, %v4770
  %v4772 = vpop.f32.mrb[0].mxu0
  %4773 = vdwg.mxu0
  %4774 = vmatprep.subr.mxu0 0.0
  %4775 = vmatpush1.msra.mxu0 %v4667
  %4776 = vmatprep.subr.mxu0 0.0
  %4777 = vmatpush1.msra.mxu0 %v4668
  %4778 = vmatprep.subr.mxu0 0.0
  %4779 = vmatpush1.msra.mxu0 %v4669
  %4780 = vmatprep.subr.mxu0 0.0
  %4781 = vmatpush1.msra.mxu0 %v4670
  %4782 = vmatprep.subr.mxu0 0.0
  %4783 = vmatpush1.msra.mxu0 %v4671
  %4784 = vmatprep.subr.mxu0 0.0
  %4785 = vmatpush1.msra.mxu0 %v4672
  %4786 = vmatprep.subr.mxu0 0.0
  %4787 = vmatpush1.msra.mxu0 %v4673
  %4788 = vmatprep.subr.mxu0 0.0
  %4789 = vmatpush1.msra.mxu0 %v4674
  %4790 = vmatprep.subr.mxu0 0.0
  %4791 = vmatpush1.msra.mxu0 %v4675
  %4792 = vmatprep.subr.mxu0 0.0
  %4793 = vmatpush1.msra.mxu0 %v4676
  %4794 = vmatprep.subr.mxu0 0.0
  %4795 = vmatpush1.msra.mxu0 %v4677
  %4796 = vmatprep.subr.mxu0 0.0
  %4797 = vmatpush1.msra.mxu0 %v4678
  %4798 = vmatprep.subr.mxu0 0.0
  %4799 = vmatpush1.msra.mxu0 %v4679
  %4800 = vmatprep.subr.mxu0 0.0
  %4801 = vmatpush1.msra.mxu0 %v4680
  %4802 = vmatprep.subr.mxu0 0.0
  %4803 = vmatpush1.msra.mxu0 %v4681
  %4804 = vmatprep.subr.mxu0 0.0
  %4805 = vmatpush1.msra.mxu0 %v4682
  %4806 = vmatprep.subr.mxu0 0.0
  %4807 = vmatpush1.msra.mxu0 %v4683
  %4808 = vmatprep.subr.mxu0 0.0
  %4809 = vmatpush1.msra.mxu0 %v4684
  %4810 = vmatprep.subr.mxu0 0.0
  %4811 = vmatpush1.msra.mxu0 %v4685
  %4812 = vmatprep.subr.mxu0 0.0
  %4813 = vmatpush1.msra.mxu0 %v4686
  %4814 = vmatprep.subr.mxu0 0.0
  %4815 = vmatpush1.msra.mxu0 %v4687
  %4816 = vmatprep.subr.mxu0 0.0
  %4817 = vmatpush1.msra.mxu0 %v4688
  %4818 = vmatprep.subr.mxu0 0.0
  %4819 = vmatpush1.msra.mxu0 %v4689
  %4820 = vmatprep.subr.mxu0 0.0
  %4821 = vmatpush1.msra.mxu0 %v4690
  %4822 = vmatprep.subr.mxu0 0.0
  %4823 = vmatpush1.msra.mxu0 %v4691
  %4824 = vmatprep.subr.mxu0 0.0
  %4825 = vmatpush1.msra.mxu0 %v4692
  %4826 = vmatprep.subr.mxu0 0.0
  %4827 = vmatpush1.msra.mxu0 %v4693
  %4828 = vmatprep.subr.mxu0 0.0
  %4829 = vmatpush1.msra.mxu0 %v4694
  %4830 = vmatprep.subr.mxu0 0.0
  %4831 = vmatpush1.msra.mxu0 %v4695
  %4832 = vmatprep.subr.mxu0 0.0
  %4833 = vmatpush1.msra.mxu0 %v4696
  %4834 = vmatprep.subr.mxu0 0.0
  %4835 = vmatpush1.msra.mxu0 %v4697
  %4836 = vmatprep.subr.mxu0 0.0
  %4837 = vmatpush1.msra.mxu0 %v4698
  %4838 = vmatprep.mubr.f32.mxu0 %v4630
  %4839 = vmatmul.mubr.f32.gmra.mrb[0].mxu0 %v4629
  %v4840 = vpop.f32.mrb[0].mxu0
  %v4841 = vadd.f32 %v4766, %v4840
  %v4842 = vpop.f32.mrb[0].mxu0
  %4843 = vmatprep.mubr.f32.mxu0 %v4634
  %4844 = vmatmul.mubr.f32.gmra.mrb[0].mxu0 %v4633
  %v4845 = vpop.f32.mrb[0].mxu0
  %v4846 = vadd.f32 %v4771, %v4845
  %v4847 = vpop.f32.mrb[0].mxu0
  %4848 = vdwg.mxu0
  %v4849 = vadd.f32 %v4427, %v4841
  %v4850 = vadd.f32 %v4432, %v4846
  %v4851 = vld [vmem:[%s47 + $0x60] sm:$0xff]
  %v4852 = vld [vmem:[%s47 + $0x68] sm:$0xff]
  %v4853 = vld [vmem:[%s47 + $0x70] sm:$0xff]
  %v4854 = vld [vmem:[%s47 + $0x78] sm:$0xff]
  %v4855 = vld [vmem:[%s47 + $0xe0] sm:$0xff]
  %v4856 = vld [vmem:[%s47 + $0xe8] sm:$0xff]
  %v4857 = vld [vmem:[%s47 + $0xf0] sm:$0xff]
  %v4858 = vld [vmem:[%s47 + $0xf8] sm:$0xff]
  %v4859 = vld [vmem:[%s47 + $0x160] sm:$0xff]
  %v4860 = vld [vmem:[%s47 + $0x168] sm:$0xff]
  %v4861 = vld [vmem:[%s47 + $0x170] sm:$0xff]
  %v4862 = vld [vmem:[%s47 + $0x178] sm:$0xff]
  %v4863 = vld [vmem:[%s47 + $0x1e0] sm:$0xff]
  %v4864 = vld [vmem:[%s47 + $0x1e8] sm:$0xff]
  %v4865 = vld [vmem:[%s47 + $0x1f0] sm:$0xff]
  %v4866 = vld [vmem:[%s47 + $0x1f8] sm:$0xff]
  %v4867 = vld [vmem:[%s49 + $0xc] sm:$0xf]
  %v4869 = vlaneseq
  %v4870 = vshrl.u32 %v4869, 7
  %v4871 = vsub.s32 0, %v4870
  %v4872 = vrot.slane %v4867, %v4871
  %v4873 = vlaneseq
  %v4874 = vshrl.u32 %v4873, 7
  %v4875 = vsub.s32 1, %v4874
  %v4876 = vrot.slane %v4867, %v4875
  %v4877 = vlaneseq
  %v4878 = vshrl.u32 %v4877, 7
  %v4879 = vsub.s32 2, %v4878
  %v4880 = vrot.slane %v4867, %v4879
  %v4881 = vlaneseq
  %v4882 = vshrl.u32 %v4881, 7
  %v4883 = vsub.s32 3, %v4882
  %v4884 = vrot.slane %v4867, %v4883
  %4889 = vmatprep.subr.mxu0 %v4852
  %4890 = vmatpush1.msra.mxu0 %v4851
  %4891 = vmatprep.subr.mxu0 %v4856
  %4892 = vmatpush1.msra.mxu0 %v4855
  %4893 = vmatprep.subr.mxu0 %v4860
  %4894 = vmatpush1.msra.mxu0 %v4859
  %4895 = vmatprep.subr.mxu0 %v4864
  %4896 = vmatpush1.msra.mxu0 %v4863
  %4897 = vmatprep.subr.mxu0 0.0
  %4898 = vmatpush1.msra.mxu0 0.0
  %4899 = vmatprep.subr.mxu0 0.0
  %4900 = vmatpush1.msra.mxu0 0.0
  %4901 = vmatprep.subr.mxu0 0.0
  %4902 = vmatpush1.msra.mxu0 0.0
  %4903 = vmatprep.subr.mxu0 0.0
  %4904 = vmatpush1.msra.mxu0 0.0
  %4905 = vmatprep.subr.mxu0 0.0
  %4906 = vmatpush1.msra.mxu0 0.0
  %4907 = vmatprep.subr.mxu0 0.0
  %4908 = vmatpush1.msra.mxu0 0.0
  %4909 = vmatprep.subr.mxu0 0.0
  %4910 = vmatpush1.msra.mxu0 0.0
  %4911 = vmatprep.subr.mxu0 0.0
  %4912 = vmatpush1.msra.mxu0 0.0
  %4913 = vmatprep.subr.mxu0 0.0
  %4914 = vmatpush1.msra.mxu0 0.0
  %4915 = vmatprep.subr.mxu0 0.0
  %4916 = vmatpush1.msra.mxu0 0.0
  %4917 = vmatprep.subr.mxu0 0.0
  %4918 = vmatpush1.msra.mxu0 0.0
  %4919 = vmatprep.subr.mxu0 0.0
  %4920 = vmatpush1.msra.mxu0 0.0
  %4921 = vmatprep.subr.mxu0 0.0
  %4922 = vmatpush1.msra.mxu0 0.0
  %4923 = vmatprep.subr.mxu0 0.0
  %4924 = vmatpush1.msra.mxu0 0.0
  %4925 = vmatprep.subr.mxu0 0.0
  %4926 = vmatpush1.msra.mxu0 0.0
  %4927 = vmatprep.subr.mxu0 0.0
  %4928 = vmatpush1.msra.mxu0 0.0
  %4929 = vmatprep.subr.mxu0 0.0
  %4930 = vmatpush1.msra.mxu0 0.0
  %4931 = vmatprep.subr.mxu0 0.0
  %4932 = vmatpush1.msra.mxu0 0.0
  %4933 = vmatprep.subr.mxu0 0.0
  %4934 = vmatpush1.msra.mxu0 0.0
  %4935 = vmatprep.subr.mxu0 0.0
  %4936 = vmatpush1.msra.mxu0 0.0
  %4937 = vmatprep.subr.mxu0 0.0
  %4938 = vmatpush1.msra.mxu0 0.0
  %4939 = vmatprep.subr.mxu0 0.0
  %4940 = vmatpush1.msra.mxu0 0.0
  %4941 = vmatprep.subr.mxu0 0.0
  %4942 = vmatpush1.msra.mxu0 0.0
  %4943 = vmatprep.subr.mxu0 0.0
  %4944 = vmatpush1.msra.mxu0 0.0
  %4945 = vmatprep.subr.mxu0 0.0
  %4946 = vmatpush1.msra.mxu0 0.0
  %4947 = vmatprep.subr.mxu0 0.0
  %4948 = vmatpush1.msra.mxu0 0.0
  %4949 = vmatprep.subr.mxu0 0.0
  %4950 = vmatpush1.msra.mxu0 0.0
  %4951 = vmatprep.subr.mxu0 0.0
  %4952 = vmatpush1.msra.mxu0 0.0
  %4953 = vmatprep.mubr.f32.mxu0 0.0
  %4954 = vmatmul.mubr.f32.gmra.mrb[0].mxu0 %v3640
  %v4955 = vpop.f32.mrb[0].mxu0
  %v4956 = vadd.f32 %v4872, %v4955
  %v4957 = vpop.f32.mrb[0].mxu0
  %v4958 = vadd.f32 %v4876, %v4957
  %4959 = vmatprep.mubr.f32.mxu0 0.0
  %4960 = vmatmul.mubr.f32.gmra.mrb[0].mxu0 %v3643
  %v4961 = vpop.f32.mrb[0].mxu0
  %v4962 = vadd.f32 %v4872, %v4961
  %v4963 = vpop.f32.mrb[0].mxu0
  %v4964 = vadd.f32 %v4876, %v4963
  %4965 = vdwg.mxu0
  %4966 = vmatprep.subr.mxu0 %v4854
  %4967 = vmatpush1.msra.mxu0 %v4853
  %4968 = vmatprep.subr.mxu0 %v4858
  %4969 = vmatpush1.msra.mxu0 %v4857
  %4970 = vmatprep.subr.mxu0 %v4862
  %4971 = vmatpush1.msra.mxu0 %v4861
  %4972 = vmatprep.subr.mxu0 %v4866
  %4973 = vmatpush1.msra.mxu0 %v4865
  %4974 = vmatprep.subr.mxu0 0.0
  %4975 = vmatpush1.msra.mxu0 0.0
  %4976 = vmatprep.subr.mxu0 0.0
  %4977 = vmatpush1.msra.mxu0 0.0
  %4978 = vmatprep.subr.mxu0 0.0
  %4979 = vmatpush1.msra.mxu0 0.0
  %4980 = vmatprep.subr.mxu0 0.0
  %4981 = vmatpush1.msra.mxu0 0.0
  %4982 = vmatprep.subr.mxu0 0.0
  %4983 = vmatpush1.msra.mxu0 0.0
  %4984 = vmatprep.subr.mxu0 0.0
  %4985 = vmatpush1.msra.mxu0 0.0
  %4986 = vmatprep.subr.mxu0 0.0
  %4987 = vmatpush1.msra.mxu0 0.0
  %4988 = vmatprep.subr.mxu0 0.0
  %4989 = vmatpush1.msra.mxu0 0.0
  %4990 = vmatprep.subr.mxu0 0.0
  %4991 = vmatpush1.msra.mxu0 0.0
  %4992 = vmatprep.subr.mxu0 0.0
  %4993 = vmatpush1.msra.mxu0 0.0
  %4994 = vmatprep.subr.mxu0 0.0
  %4995 = vmatpush1.msra.mxu0 0.0
  %4996 = vmatprep.subr.mxu0 0.0
  %4997 = vmatpush1.msra.mxu0 0.0
  %4998 = vmatprep.subr.mxu0 0.0
  %4999 = vmatpush1.msra.mxu0 0.0
  %5000 = vmatprep.subr.mxu0 0.0
  %5001 = vmatpush1.msra.mxu0 0.0
  %5002 = vmatprep.subr.mxu0 0.0
  %5003 = vmatpush1.msra.mxu0 0.0
  %5004 = vmatprep.subr.mxu0 0.0
  %5005 = vmatpush1.msra.mxu0 0.0
  %5006 = vmatprep.subr.mxu0 0.0
  %5007 = vmatpush1.msra.mxu0 0.0
  %5008 = vmatprep.subr.mxu0 0.0
  %5009 = vmatpush1.msra.mxu0 0.0
  %5010 = vmatprep.subr.mxu0 0.0
  %5011 = vmatpush1.msra.mxu0 0.0
  %5012 = vmatprep.subr.mxu0 0.0
  %5013 = vmatpush1.msra.mxu0 0.0
  %5014 = vmatprep.subr.mxu0 0.0
  %5015 = vmatpush1.msra.mxu0 0.0
  %5016 = vmatprep.subr.mxu0 0.0
  %5017 = vmatpush1.msra.mxu0 0.0
  %5018 = vmatprep.subr.mxu0 0.0
  %5019 = vmatpush1.msra.mxu0 0.0
  %5020 = vmatprep.subr.mxu0 0.0
  %5021 = vmatpush1.msra.mxu0 0.0
  %5022 = vmatprep.subr.mxu0 0.0
  %5023 = vmatpush1.msra.mxu0 0.0
  %5024 = vmatprep.subr.mxu0 0.0
  %5025 = vmatpush1.msra.mxu0 0.0
  %5026 = vmatprep.subr.mxu0 0.0
  %5027 = vmatpush1.msra.mxu0 0.0
  %5028 = vmatprep.subr.mxu0 0.0
  %5029 = vmatpush1.msra.mxu0 0.0
  %5030 = vmatprep.mubr.f32.mxu0 0.0
  %5031 = vmatmul.mubr.f32.gmra.mrb[0].mxu0 %v3640
  %v5032 = vpop.f32.mrb[0].mxu0
  %v5033 = vadd.f32 %v4880, %v5032
  %v5034 = vpop.f32.mrb[0].mxu0
  %v5035 = vadd.f32 %v4884, %v5034
  %5036 = vmatprep.mubr.f32.mxu0 0.0
  %5037 = vmatmul.mubr.f32.gmra.mrb[0].mxu0 %v3643
  %v5038 = vpop.f32.mrb[0].mxu0
  %v5039 = vadd.f32 %v4880, %v5038
  %v5040 = vpop.f32.mrb[0].mxu0
  %v5041 = vadd.f32 %v4884, %v5040
  %5042 = vdwg.mxu0
  %v5043 = vmax.f32 %v4956, 0.0
  %v5044 = vmax.f32 %v4958, 0.0
  %v5045 = vmax.f32 %v5033, 0.0
  %v5046 = vmax.f32 %v5035, 0.0
  %v5047 = vmax.f32 %v4962, 0.0
  %v5048 = vmax.f32 %v4964, 0.0
  %v5049 = vmax.f32 %v5039, 0.0
  %v5050 = vmax.f32 %v5041, 0.0
  %v5051 = vld [vmem:[%s51 + $0x600] sm:$0xff]
  %v5052 = vld [vmem:[%s51 + $0x608] sm:$0xff]
  %v5053 = vld [vmem:[%s51 + $0x610] sm:$0xff]
  %v5054 = vld [vmem:[%s51 + $0x618] sm:$0xff]
  %v5055 = vld [vmem:[%s51 + $0x620] sm:$0xff]
  %v5056 = vld [vmem:[%s51 + $0x628] sm:$0xff]
  %v5057 = vld [vmem:[%s51 + $0x630] sm:$0xff]
  %v5058 = vld [vmem:[%s51 + $0x638] sm:$0xff]
  %v5059 = vld [vmem:[%s51 + $0x640] sm:$0xff]
  %v5060 = vld [vmem:[%s51 + $0x648] sm:$0xff]
  %v5061 = vld [vmem:[%s51 + $0x650] sm:$0xff]
  %v5062 = vld [vmem:[%s51 + $0x658] sm:$0xff]
  %v5063 = vld [vmem:[%s51 + $0x660] sm:$0xff]
  %v5064 = vld [vmem:[%s51 + $0x668] sm:$0xff]
  %v5065 = vld [vmem:[%s51 + $0x670] sm:$0xff]
  %v5066 = vld [vmem:[%s51 + $0x678] sm:$0xff]
  %v5067 = vld [vmem:[%s51 + $0x680] sm:$0xff]
  %v5068 = vld [vmem:[%s51 + $0x688] sm:$0xff]
  %v5069 = vld [vmem:[%s51 + $0x690] sm:$0xff]
  %v5070 = vld [vmem:[%s51 + $0x698] sm:$0xff]
  %v5071 = vld [vmem:[%s51 + $0x6a0] sm:$0xff]
  %v5072 = vld [vmem:[%s51 + $0x6a8] sm:$0xff]
  %v5073 = vld [vmem:[%s51 + $0x6b0] sm:$0xff]
  %v5074 = vld [vmem:[%s51 + $0x6b8] sm:$0xff]
  %v5075 = vld [vmem:[%s51 + $0x6c0] sm:$0xff]
  %v5076 = vld [vmem:[%s51 + $0x6c8] sm:$0xff]
  %v5077 = vld [vmem:[%s51 + $0x6d0] sm:$0xff]
  %v5078 = vld [vmem:[%s51 + $0x6d8] sm:$0xff]
  %v5079 = vld [vmem:[%s51 + $0x6e0] sm:$0xff]
  %v5080 = vld [vmem:[%s51 + $0x6e8] sm:$0xff]
  %v5081 = vld [vmem:[%s51 + $0x6f0] sm:$0xff]
  %v5082 = vld [vmem:[%s51 + $0x6f8] sm:$0xff]
  %v5083 = vld [vmem:[%s51 + $0x700] sm:$0xff]
  %v5084 = vld [vmem:[%s51 + $0x708] sm:$0xff]
  %v5085 = vld [vmem:[%s51 + $0x710] sm:$0xff]
  %v5086 = vld [vmem:[%s51 + $0x718] sm:$0xff]
  %v5087 = vld [vmem:[%s51 + $0x720] sm:$0xff]
  %v5088 = vld [vmem:[%s51 + $0x728] sm:$0xff]
  %v5089 = vld [vmem:[%s51 + $0x730] sm:$0xff]
  %v5090 = vld [vmem:[%s51 + $0x738] sm:$0xff]
  %v5091 = vld [vmem:[%s51 + $0x740] sm:$0xff]
  %v5092 = vld [vmem:[%s51 + $0x748] sm:$0xff]
  %v5093 = vld [vmem:[%s51 + $0x750] sm:$0xff]
  %v5094 = vld [vmem:[%s51 + $0x758] sm:$0xff]
  %v5095 = vld [vmem:[%s51 + $0x760] sm:$0xff]
  %v5096 = vld [vmem:[%s51 + $0x768] sm:$0xff]
  %v5097 = vld [vmem:[%s51 + $0x770] sm:$0xff]
  %v5098 = vld [vmem:[%s51 + $0x778] sm:$0xff]
  %v5099 = vld [vmem:[%s51 + $0x780] sm:$0xff]
  %v5100 = vld [vmem:[%s51 + $0x788] sm:$0xff]
  %v5101 = vld [vmem:[%s51 + $0x790] sm:$0xff]
  %v5102 = vld [vmem:[%s51 + $0x798] sm:$0xff]
  %v5103 = vld [vmem:[%s51 + $0x7a0] sm:$0xff]
  %v5104 = vld [vmem:[%s51 + $0x7a8] sm:$0xff]
  %v5105 = vld [vmem:[%s51 + $0x7b0] sm:$0xff]
  %v5106 = vld [vmem:[%s51 + $0x7b8] sm:$0xff]
  %v5107 = vld [vmem:[%s51 + $0x7c0] sm:$0xff]
  %v5108 = vld [vmem:[%s51 + $0x7c8] sm:$0xff]
  %v5109 = vld [vmem:[%s51 + $0x7d0] sm:$0xff]
  %v5110 = vld [vmem:[%s51 + $0x7d8] sm:$0xff]
  %v5111 = vld [vmem:[%s51 + $0x7e0] sm:$0xff]
  %v5112 = vld [vmem:[%s51 + $0x7e8] sm:$0xff]
  %v5113 = vld [vmem:[%s51 + $0x7f0] sm:$0xff]
  %v5114 = vld [vmem:[%s51 + $0x7f8] sm:$0xff]
  %5115 = vmatprep.subr.mxu0 0.0
  %5116 = vmatpush1.msra.mxu0 %v5051
  %5117 = vmatprep.subr.mxu0 0.0
  %5118 = vmatpush1.msra.mxu0 %v5052
  %5119 = vmatprep.subr.mxu0 0.0
  %5120 = vmatpush1.msra.mxu0 %v5053
  %5121 = vmatprep.subr.mxu0 0.0
  %5122 = vmatpush1.msra.mxu0 %v5054
  %5123 = vmatprep.subr.mxu0 0.0
  %5124 = vmatpush1.msra.mxu0 %v5055
  %5125 = vmatprep.subr.mxu0 0.0
  %5126 = vmatpush1.msra.mxu0 %v5056
  %5127 = vmatprep.subr.mxu0 0.0
  %5128 = vmatpush1.msra.mxu0 %v5057
  %5129 = vmatprep.subr.mxu0 0.0
  %5130 = vmatpush1.msra.mxu0 %v5058
  %5131 = vmatprep.subr.mxu0 0.0
  %5132 = vmatpush1.msra.mxu0 %v5059
  %5133 = vmatprep.subr.mxu0 0.0
  %5134 = vmatpush1.msra.mxu0 %v5060
  %5135 = vmatprep.subr.mxu0 0.0
  %5136 = vmatpush1.msra.mxu0 %v5061
  %5137 = vmatprep.subr.mxu0 0.0
  %5138 = vmatpush1.msra.mxu0 %v5062
  %5139 = vmatprep.subr.mxu0 0.0
  %5140 = vmatpush1.msra.mxu0 %v5063
  %5141 = vmatprep.subr.mxu0 0.0
  %5142 = vmatpush1.msra.mxu0 %v5064
  %5143 = vmatprep.subr.mxu0 0.0
  %5144 = vmatpush1.msra.mxu0 %v5065
  %5145 = vmatprep.subr.mxu0 0.0
  %5146 = vmatpush1.msra.mxu0 %v5066
  %5147 = vmatprep.subr.mxu0 0.0
  %5148 = vmatpush1.msra.mxu0 %v5067
  %5149 = vmatprep.subr.mxu0 0.0
  %5150 = vmatpush1.msra.mxu0 %v5068
  %5151 = vmatprep.subr.mxu0 0.0
  %5152 = vmatpush1.msra.mxu0 %v5069
  %5153 = vmatprep.subr.mxu0 0.0
  %5154 = vmatpush1.msra.mxu0 %v5070
  %5155 = vmatprep.subr.mxu0 0.0
  %5156 = vmatpush1.msra.mxu0 %v5071
  %5157 = vmatprep.subr.mxu0 0.0
  %5158 = vmatpush1.msra.mxu0 %v5072
  %5159 = vmatprep.subr.mxu0 0.0
  %5160 = vmatpush1.msra.mxu0 %v5073
  %5161 = vmatprep.subr.mxu0 0.0
  %5162 = vmatpush1.msra.mxu0 %v5074
  %5163 = vmatprep.subr.mxu0 0.0
  %5164 = vmatpush1.msra.mxu0 %v5075
  %5165 = vmatprep.subr.mxu0 0.0
  %5166 = vmatpush1.msra.mxu0 %v5076
  %5167 = vmatprep.subr.mxu0 0.0
  %5168 = vmatpush1.msra.mxu0 %v5077
  %5169 = vmatprep.subr.mxu0 0.0
  %5170 = vmatpush1.msra.mxu0 %v5078
  %5171 = vmatprep.subr.mxu0 0.0
  %5172 = vmatpush1.msra.mxu0 %v5079
  %5173 = vmatprep.subr.mxu0 0.0
  %5174 = vmatpush1.msra.mxu0 %v5080
  %5175 = vmatprep.subr.mxu0 0.0
  %5176 = vmatpush1.msra.mxu0 %v5081
  %5177 = vmatprep.subr.mxu0 0.0
  %5178 = vmatpush1.msra.mxu0 %v5082
  %5179 = vmatprep.mubr.f32.mxu0 %v5044
  %5180 = vmatmul.mubr.f32.gmra.mrb[0].mxu0 %v5043
  %v5181 = vpop.f32.mrb[0].mxu0
  %v5182 = vadd.f32 0.0, %v5181
  %v5183 = vpop.f32.mrb[0].mxu0
  %5184 = vmatprep.mubr.f32.mxu0 %v5048
  %5185 = vmatmul.mubr.f32.gmra.mrb[0].mxu0 %v5047
  %v5186 = vpop.f32.mrb[0].mxu0
  %v5187 = vadd.f32 0.0, %v5186
  %v5188 = vpop.f32.mrb[0].mxu0
  %5189 = vdwg.mxu0
  %5190 = vmatprep.subr.mxu0 0.0
  %5191 = vmatpush1.msra.mxu0 %v5083
  %5192 = vmatprep.subr.mxu0 0.0
  %5193 = vmatpush1.msra.mxu0 %v5084
  %5194 = vmatprep.subr.mxu0 0.0
  %5195 = vmatpush1.msra.mxu0 %v5085
  %5196 = vmatprep.subr.mxu0 0.0
  %5197 = vmatpush1.msra.mxu0 %v5086
  %5198 = vmatprep.subr.mxu0 0.0
  %5199 = vmatpush1.msra.mxu0 %v5087
  %5200 = vmatprep.subr.mxu0 0.0
  %5201 = vmatpush1.msra.mxu0 %v5088
  %5202 = vmatprep.subr.mxu0 0.0
  %5203 = vmatpush1.msra.mxu0 %v5089
  %5204 = vmatprep.subr.mxu0 0.0
  %5205 = vmatpush1.msra.mxu0 %v5090
  %5206 = vmatprep.subr.mxu0 0.0
  %5207 = vmatpush1.msra.mxu0 %v5091
  %5208 = vmatprep.subr.mxu0 0.0
  %5209 = vmatpush1.msra.mxu0 %v5092
  %5210 = vmatprep.subr.mxu0 0.0
  %5211 = vmatpush1.msra.mxu0 %v5093
  %5212 = vmatprep.subr.mxu0 0.0
  %5213 = vmatpush1.msra.mxu0 %v5094
  %5214 = vmatprep.subr.mxu0 0.0
  %5215 = vmatpush1.msra.mxu0 %v5095
  %5216 = vmatprep.subr.mxu0 0.0
  %5217 = vmatpush1.msra.mxu0 %v5096
  %5218 = vmatprep.subr.mxu0 0.0
  %5219 = vmatpush1.msra.mxu0 %v5097
  %5220 = vmatprep.subr.mxu0 0.0
  %5221 = vmatpush1.msra.mxu0 %v5098
  %5222 = vmatprep.subr.mxu0 0.0
  %5223 = vmatpush1.msra.mxu0 %v5099
  %5224 = vmatprep.subr.mxu0 0.0
  %5225 = vmatpush1.msra.mxu0 %v5100
  %5226 = vmatprep.subr.mxu0 0.0
  %5227 = vmatpush1.msra.mxu0 %v5101
  %5228 = vmatprep.subr.mxu0 0.0
  %5229 = vmatpush1.msra.mxu0 %v5102
  %5230 = vmatprep.subr.mxu0 0.0
  %5231 = vmatpush1.msra.mxu0 %v5103
  %5232 = vmatprep.subr.mxu0 0.0
  %5233 = vmatpush1.msra.mxu0 %v5104
  %5234 = vmatprep.subr.mxu0 0.0
  %5235 = vmatpush1.msra.mxu0 %v5105
  %5236 = vmatprep.subr.mxu0 0.0
  %5237 = vmatpush1.msra.mxu0 %v5106
  %5238 = vmatprep.subr.mxu0 0.0
  %5239 = vmatpush1.msra.mxu0 %v5107
  %5240 = vmatprep.subr.mxu0 0.0
  %5241 = vmatpush1.msra.mxu0 %v5108
  %5242 = vmatprep.subr.mxu0 0.0
  %5243 = vmatpush1.msra.mxu0 %v5109
  %5244 = vmatprep.subr.mxu0 0.0
  %5245 = vmatpush1.msra.mxu0 %v5110
  %5246 = vmatprep.subr.mxu0 0.0
  %5247 = vmatpush1.msra.mxu0 %v5111
  %5248 = vmatprep.subr.mxu0 0.0
  %5249 = vmatpush1.msra.mxu0 %v5112
  %5250 = vmatprep.subr.mxu0 0.0
  %5251 = vmatpush1.msra.mxu0 %v5113
  %5252 = vmatprep.subr.mxu0 0.0
  %5253 = vmatpush1.msra.mxu0 %v5114
  %5254 = vmatprep.mubr.f32.mxu0 %v5046
  %5255 = vmatmul.mubr.f32.gmra.mrb[0].mxu0 %v5045
  %v5256 = vpop.f32.mrb[0].mxu0
  %v5257 = vadd.f32 %v5182, %v5256
  %v5258 = vpop.f32.mrb[0].mxu0
  %5259 = vmatprep.mubr.f32.mxu0 %v5050
  %5260 = vmatmul.mubr.f32.gmra.mrb[0].mxu0 %v5049
  %v5261 = vpop.f32.mrb[0].mxu0
  %v5262 = vadd.f32 %v5187, %v5261
  %v5263 = vpop.f32.mrb[0].mxu0
  %5264 = vdwg.mxu0
  %v5265 = vadd.f32 %v4849, %v5257
  %v5266 = vadd.f32 %v4850, %v5262
  %v5267 = vld [vmem:[%s53] sm:$0x1]
  %v5269 = vlaneseq
  %v5270 = vshrl.u32 %v5269, 7
  %v5271 = vsub.s32 0, %v5270
  %v5272 = vrot.slane %v5267, %v5271
  %v5274 = vadd.f32 %v5265, %v5272
  %v5275 = vadd.f32 %v5266, %v5272
  %v5276 = vadd.f32 %v3599, %v5274
  %v5277 = vadd.f32 %v3600, %v5275
  %v5278 = vld [vmem:[%s55] sm:$0x1]
  %v5279 = vld [vmem:[%s57] sm:$0x1]
  %v5280 = vsel %vm250, %v5276, 0.0
  %5281 = vadd.xlane.f32.xlu0 %v5280
  %v5282 = vpop.xlane.xlu0 %5281
  %v5283 = vsel %vm250, %v5277, 0.0
  %5284 = vadd.xlane.f32.xlu0 %v5283
  %v5285 = vpop.xlane.xlu0 %5284
  %v5286 = vmul.f32 %v5282, %v1052
  %v5287 = vmul.f32 %v5285, %v1052
  %v5288 = vsub.f32 %v5276, %v5286
  %v5289 = vsub.f32 %v5277, %v5287
  %v5290 = vmul.f32 %v5288, %v5288
  %v5291 = vmul.f32 %v5289, %v5289
  %v5292 = vsel %vm250, %v5290, 0.0
  %5293 = vadd.xlane.f32.xlu0 %v5292
  %v5294 = vpop.xlane.xlu0 %5293
  %v5295 = vsel %vm250, %v5291, 0.0
  %5296 = vadd.xlane.f32.xlu0 %v5295
  %v5297 = vpop.xlane.xlu0 %5296
  %v5298 = vmul.f32 %v5294, %v1052
  %v5299 = vmul.f32 %v5297, %v1052
  %v5300 = vadd.f32 %v5298, 1e-05
  %v5301 = vadd.f32 %v5299, 1e-05
  %v5302 = vrsqrt.pop %v5300
  %v5303 = vrsqrt.pop %v5301
  %v5304 = vmul.f32 %v5288, %v5302
  %v5305 = vmul.f32 %v5289, %v5303
  %v5307 = vlaneseq
  %v5308 = vshrl.u32 %v5307, 7
  %v5309 = vsub.s32 0, %v5308
  %v5310 = vrot.slane %v5278, %v5309
  %v5312 = vmul.f32 %v5304, %v5310
  %v5313 = vmul.f32 %v5305, %v5310
  %v5315 = vlaneseq
  %v5316 = vshrl.u32 %v5315, 7
  %v5317 = vsub.s32 0, %v5316
  %v5318 = vrot.slane %v5279, %v5317
  %v5320 = vadd.f32 %v5312, %v5318
  %v5321 = vadd.f32 %v5313, %v5318
  %v5322 = vld [vmem:[%s59] sm:$0xff]
  %v5323 = vld [vmem:[%s59 + $0x8] sm:$0xff]
  %v5324 = vld [vmem:[%s59 + $0x10] sm:$0xff]
  %v5325 = vld [vmem:[%s59 + $0x18] sm:$0xff]
  %v5326 = vld [vmem:[#allocation2] sm:$0x1]
  %v5328 = vlaneseq
  %v5329 = vshrl.u32 %v5328, 7
  %v5330 = vsub.s32 0, %v5329
  %v5331 = vrot.slane %v5326, %v5330
  %v5334 = vsel %vm250, %v5320, 0
  %v5337 = vsel %vm250, %v5321, 0
  %5339 = vmatprep.subr.mxu0 0.0
  %5340 = vmatpush1.msra.mxu0 %v5322
  %5341 = vmatprep.subr.mxu0 0.0
  %5342 = vmatpush1.msra.mxu0 %v5323
  %5343 = vmatprep.subr.mxu0 0.0
  %5344 = vmatpush1.msra.mxu0 %v5324
  %5345 = vmatprep.subr.mxu0 0.0
  %5346 = vmatpush1.msra.mxu0 %v5325
  %5347 = vmatprep.subr.mxu0 0.0
  %5348 = vmatpush1.msra.mxu0 0.0
  %5349 = vmatprep.subr.mxu0 0.0
  %5350 = vmatpush1.msra.mxu0 0.0
  %5351 = vmatprep.subr.mxu0 0.0
  %5352 = vmatpush1.msra.mxu0 0.0
  %5353 = vmatprep.subr.mxu0 0.0
  %5354 = vmatpush1.msra.mxu0 0.0
  %5355 = vmatprep.subr.mxu0 0.0
  %5356 = vmatpush1.msra.mxu0 0.0
  %5357 = vmatprep.subr.mxu0 0.0
  %5358 = vmatpush1.msra.mxu0 0.0
  %5359 = vmatprep.subr.mxu0 0.0
  %5360 = vmatpush1.msra.mxu0 0.0
  %5361 = vmatprep.subr.mxu0 0.0
  %5362 = vmatpush1.msra.mxu0 0.0
  %5363 = vmatprep.subr.mxu0 0.0
  %5364 = vmatpush1.msra.mxu0 0.0
  %5365 = vmatprep.subr.mxu0 0.0
  %5366 = vmatpush1.msra.mxu0 0.0
  %5367 = vmatprep.subr.mxu0 0.0
  %5368 = vmatpush1.msra.mxu0 0.0
  %5369 = vmatprep.subr.mxu0 0.0
  %5370 = vmatpush1.msra.mxu0 0.0
  %5371 = vmatprep.subr.mxu0 0.0
  %5372 = vmatpush1.msra.mxu0 0.0
  %5373 = vmatprep.subr.mxu0 0.0
  %5374 = vmatpush1.msra.mxu0 0.0
  %5375 = vmatprep.subr.mxu0 0.0
  %5376 = vmatpush1.msra.mxu0 0.0
  %5377 = vmatprep.subr.mxu0 0.0
  %5378 = vmatpush1.msra.mxu0 0.0
  %5379 = vmatprep.subr.mxu0 0.0
  %5380 = vmatpush1.msra.mxu0 0.0
  %5381 = vmatprep.subr.mxu0 0.0
  %5382 = vmatpush1.msra.mxu0 0.0
  %5383 = vmatprep.subr.mxu0 0.0
  %5384 = vmatpush1.msra.mxu0 0.0
  %5385 = vmatprep.subr.mxu0 0.0
  %5386 = vmatpush1.msra.mxu0 0.0
  %5387 = vmatprep.subr.mxu0 0.0
  %5388 = vmatpush1.msra.mxu0 0.0
  %5389 = vmatprep.subr.mxu0 0.0
  %5390 = vmatpush1.msra.mxu0 0.0
  %5391 = vmatprep.subr.mxu0 0.0
  %5392 = vmatpush1.msra.mxu0 0.0
  %5393 = vmatprep.subr.mxu0 0.0
  %5394 = vmatpush1.msra.mxu0 0.0
  %5395 = vmatprep.subr.mxu0 0.0
  %5396 = vmatpush1.msra.mxu0 0.0
  %5397 = vmatprep.subr.mxu0 0.0
  %5398 = vmatpush1.msra.mxu0 0.0
  %5399 = vmatprep.subr.mxu0 0.0
  %5400 = vmatpush1.msra.mxu0 0.0
  %5401 = vmatprep.subr.mxu0 0.0
  %5402 = vmatpush1.msra.mxu0 0.0
  %5403 = vmatprep.mubr.f32.mxu0 0.0
  %5404 = vmatmul.mubr.f32.gmra.mrb[0].mxu0 %v5334
  %v5405 = vpop.f32.mrb[0].mxu0
  %v5406 = vadd.f32 %v5331, %v5405
  %v5407 = vpop.f32.mrb[0].mxu0
  %5408 = vmatprep.mubr.f32.mxu0 0.0
  %5409 = vmatmul.mubr.f32.gmra.mrb[0].mxu0 %v5337
  %v5410 = vpop.f32.mrb[0].mxu0
  %v5411 = vadd.f32 %v5331, %v5410
  %v5412 = vpop.f32.mrb[0].mxu0
  %5413 = vdwg.mxu0
  %vm5414 = vcmask 7168
  %5415 = vst.msk [vmem:[%s63] sm:$0xff] %vm5414, %v5406
  %5416 = vst.msk [vmem:[%s63 + $0x8] sm:$0xff] %vm5414, %v5411
  // Predicated region
  $region126: #{transformer_encoder_forward.1} parent=0 // pred_check
    _
  $region127: #{transformer_encoder_forward.1} parent=0 // pred_check_branch
    %5418 = sbr.rel (0) target = $region129
  $region128: #{transformer_encoder_forward.1} parent=0 // pred_region
    _
  $region129: #{transformer_encoder_forward.1} parent=0 // pred_fallthru
    _
  // Predicated region
  $region130: #{transformer_encoder_forward.1} parent=0 // pred_check
    _
  $region131: #{transformer_encoder_forward.1} parent=0 // pred_check_branch
    %5420 = sbr.rel (0) target = $region133
  $region132: #{transformer_encoder_forward.1} parent=0 // pred_region
    _
  $region133: #{transformer_encoder_forward.1} parent=0 // pred_fallthru
    _

</llo_original>
